<compile_context>
chip_gen: v6e
topology: v6e:2x2x1
jax: 0.10.0
libtpu: 0.0.40
codegen_flags: <defaults>
</compile_context>

<pallas_src>
import math

import jax
import jax.numpy as jnp
import numpy as np
from jax.experimental import pallas as pl
from jax.experimental.pallas import tpu as pltpu


# ----------------------------------------------------------------------------
# In-kernel helpers (all value-level; data stays in vregs / VMEM).
# ----------------------------------------------------------------------------

def _swish(z):
    # Exact z * sigmoid(z).  exp() runs on the EUP slot; divide is exact.
    return z * (1.0 / (1.0 + jnp.exp(-z)))


def _conv_lane_dense(x, w_ref, b_ref, mask_ref, imcol_ref, *, k, cin, W, HW):
    """'same' KxK conv, weight-stationary and lane-dense.

    x        : (cin, HW) f32 value  (channels on sublanes, pixels on lanes).
    w_ref    : (cout, k*k*cin) bf16 ref, rows ordered (dy, dx, ci).
    b_ref    : (cout, 1) f32 ref.
    mask_ref : (k, HW) f32 ref; row dx = x-validity mask for shift dx - k//2.
    imcol_ref: bf16 VMEM scratch, at least (k*k*cin, HW).

    Returns the (cout, HW) f32 pre-activation  W2d @ im2col + b.
    """
    p = k // 2
    S = p * W + p                                    # max |flat shift|
    zero = jnp.zeros((cin, S), jnp.float32)
    z = jnp.concatenate([zero, x, zero], axis=1)     # (cin, HW + 2S)
    masks = mask_ref[...]                            # (k, HW), loaded once
    for dy in range(k):
        for dx in range(k):
            t = dy * k + dx
            shift = (dy - p) * W + (dx - p)
            piece = z[:, S + shift:S + shift + HW]   # static lane shift (XLU)
            piece = piece * masks[dx:dx + 1, :]      # zero the x-wrap taps
            imcol_ref[t * cin:(t + 1) * cin, 0:HW] = piece.astype(imcol_ref.dtype)
    K = k * k * cin
    acc = jnp.dot(w_ref[...], imcol_ref[0:K, 0:HW],  # one big-K MXU matmul
                  preferred_element_type=jnp.float32)
    return acc + b_ref[...]


def _maxpool2x2_lane_dense(s, p_ref, *, W, HW):
    """2x2 / stride-2 max-pool in (C, H*W) layout.

    Window max = max of 4 lane-shifted copies (selected anchors never cross a
    row edge, so no masking needed); the stride-2 selection is an exact 0/1
    matmul with p_ref, keeping the result lane-dense.
    """
    C = s.shape[0]
    ext = jnp.concatenate([s, jnp.zeros((C, W + 1), jnp.float32)], axis=1)
    m4 = jnp.maximum(jnp.maximum(ext[:, 0:HW], ext[:, 1:HW + 1]),
                     jnp.maximum(ext[:, W:HW + W], ext[:, W + 1:HW + W + 1]))
    return jnp.dot(m4, p_ref[...], preferred_element_type=jnp.float32)


def _build_kernel(*, n_layers, C, cin0, side0, sides, F):
    HW0 = side0 * side0

    def kernel(*refs):
        i = 0
        x_ref = refs[i]; i += 1
        w0_ref, b0_ref, m0_ref = refs[i:i + 3]; i += 3
        blocks = []
        for _ in range(n_layers):
            blocks.append(refs[i:i + 6]); i += 6
        hw1_ref, hb1_ref, hw2_ref, hb2_ref = refs[i:i + 4]; i += 4
        o_ref = refs[i]; i += 1
        imcol_ref = refs[i]

        # Initial 3x3 conv + swish.
        a = _swish(_conv_lane_dense(x_ref[0], w0_ref, b0_ref, m0_ref, imcol_ref,
                                    k=3, cin=cin0, W=side0, HW=HW0))

        # Residual conv blocks + 2x2 max-pool, fully fused.
        for li in range(n_layers):
            w1_ref, b1_ref, w2_ref, b2_ref, mb_ref, p_ref = blocks[li]
            side = sides[li]
            HW = side * side
            y = _swish(_conv_lane_dense(a, w1_ref, b1_ref, mb_ref, imcol_ref,
                                        k=5, cin=C, W=side, HW=HW))
            y = _swish(_conv_lane_dense(y, w2_ref, b2_ref, mb_ref, imcol_ref,
                                        k=5, cin=C, W=side, HW=HW))
            # TODO(synk): Dropout(0.1) is the identity in eval mode; training
            # RNG masking is not implemented.
            a = _maxpool2x2_lane_dense(a + y, p_ref, W=side, HW=HW)

        # Row-major flatten of the (C, H*W) layout == torch.flatten on NCHW,
        # so out1_w is used unpermuted.  Both head Linears fused here.
        flat = jnp.concatenate([a[c:c + 1, :] for c in range(C)], axis=1)
        h = _swish(jnp.dot(flat.astype(jnp.bfloat16), hw1_ref[...],
                           preferred_element_type=jnp.float32) + hb1_ref[...])
        h = _swish(jnp.dot(h.astype(jnp.bfloat16), hw2_ref[...],
                           preferred_element_type=jnp.float32) + hb2_ref[...])
        o_ref[...] = h.reshape(1, 1, F).astype(o_ref.dtype)

    return kernel


# ----------------------------------------------------------------------------
# Forward wrapper: a single pallas_call for the whole network.
# ----------------------------------------------------------------------------

def cnn_features_forward(prep, x):
    """Mirror of CNNFeatures.forward (eval mode).  x: NCHW (or CHW) float32.

    The torch NaN assert is intentionally dropped (it forces a device->host
    sync and breaks under jit); validate inputs outside the jitted path.
    """
    added_batch = x.ndim == 3
    if added_batch:
        x = x[None]
    N, C0, H, W = x.shape
    assert H == W, "square spatial inputs expected"

    C, K0 = prep['w0'].shape
    cin0 = K0 // 9
    n_layers = len(prep['blocks'])
    F = prep['hw2'].shape[1]
    side0 = H
    HW0 = side0 * side0
    assert prep['mask0'].shape[1] == HW0, "prepared masks do not match input size"
    sides = [side0 // (2 ** i) for i in range(n_layers)]
    for s in sides:
        assert s % 2 == 0, "spatial side must be even before every pool"

    # The only host-side prep: NCHW -> (N, cin0, H*W) with the channel dim
    # zero-padded up to a sublane multiple.  Nothing else happens outside the
    # fused kernel.
    xr = x.reshape(N, C0, HW0)
    if cin0 > C0:
        xr = jnp.pad(xr, ((0, 0), (0, cin0 - C0), (0, 0)))

    inputs = [xr, prep['w0'], prep['b0'], prep['mask0']]
    for blk in prep['blocks']:
        inputs += [blk['w1'], blk['b1'], blk['w2'], blk['b2'],
                   blk['mask'], blk['pool']]
    inputs += [prep['hw1'], prep['hb1'], prep['hw2'], prep['hb2']]

    def rep_spec(arr):
        # Small weight/mask tensors: full-array block, constant index map
        # (never re-fetched across grid steps).
        return pl.BlockSpec(arr.shape, lambda b: (0,) * arr.ndim)

    in_specs = [pl.BlockSpec((1, cin0, HW0), lambda b: (b, 0, 0))]
    in_specs += [rep_spec(a) for a in inputs[1:]]

    max_k = max([9 * cin0] + [25 * C] * n_layers)
    kernel = _build_kernel(n_layers=n_layers, C=C, cin0=cin0,
                           side0=side0, sides=sides, F=F)

    out = pl.pallas_call(
        kernel,
        out_shape=jax.ShapeDtypeStruct((N, 1, F), jnp.float32),
        grid=(N,),
        in_specs=in_specs,
        out_specs=pl.BlockSpec((1, 1, F), lambda b: (b, 0, 0)),
        scratch_shapes=[pltpu.VMEM((max_k, HW0), jnp.bfloat16)],  # shared im2col
        compiler_params=pltpu.CompilerParams(
            dimension_semantics=("parallel",)),
    )(*inputs)

    out = out.reshape(N, F)
    if added_batch:
        out = out[0]
    return out


# ----------------------------------------------------------------------------
# Parameter init (PyTorch-style) and one-time kernel-layout preparation.
# ----------------------------------------------------------------------------

def _conv_init(key, k, cin, cout):
    bound = 1.0 / math.sqrt(k * k * cin)
    kw, kb = jax.random.split(key)
    w = jax.random.uniform(kw, (k, k, cin, cout), jnp.float32, -bound, bound)
    b = jax.random.uniform(kb, (cout,), jnp.float32, -bound, bound)
    return w, b


def _linear_init(key, cin, cout):
    bound = 1.0 / math.sqrt(cin)
    kw, kb = jax.random.split(key)
    w = jax.random.uniform(kw, (cin, cout), jnp.float32, -bound, bound)
    b = jax.random.uniform(kb, (cout,), jnp.float32, -bound, bound)
    return w, b


def init_params(seed, initial_side, initial_channels, layers, channels, feature_size):
    keys = jax.random.split(jax.random.PRNGKey(seed), 1 + 2 * layers + 2)
    params = {}
    params['init_w'], params['init_b'] = _conv_init(keys[0], 3, initial_channels, channels)
    blocks = []
    side = initial_side
    for i in range(layers):
        w1, b1 = _conv_init(keys[1 + 2 * i], 5, channels, channels)
        w2, b2 = _conv_init(keys[2 + 2 * i], 5, channels, channels)
        blocks.append((w1, b1, w2, b2))
        side //= 2
    params['blocks'] = blocks
    flat = side * side * channels
    params['out1_w'], params['out1_b'] = _linear_init(keys[-2], flat, feature_size * 2)
    params['out2_w'], params['out2_b'] = _linear_init(keys[-1], feature_size * 2, feature_size)
    return params


def _round_up(v, m):
    return ((v + m - 1) // m) * m


def _conv_weight_mat(w_hwio, cin_pad):
    """(k,k,cin,cout) HWIO -> (cout, k*k*cin) bf16, rows ordered (dy, dx, ci)
    to match the in-kernel im2col build; input channels zero-padded."""
    k, _, cin, cout = w_hwio.shape
    if cin_pad > cin:
        w_hwio = jnp.pad(w_hwio, ((0, 0), (0, 0), (0, cin_pad - cin), (0, 0)))
        cin = cin_pad
    return jnp.transpose(jnp.reshape(w_hwio, (k * k * cin, cout))).astype(jnp.bfloat16)


def _xmask(k, H, W):
    """(k, H*W) f32: row dx is 1.0 where the x+dx-k//2 tap stays inside a row."""
    p = k // 2
    xs = np.tile(np.arange(W), H)
    m = np.zeros((k, H * W), np.float32)
    for dx in range(k):
        sx = dx - p
        m[dx] = ((xs + sx >= 0) & (xs + sx < W)).astype(np.float32)
    return jnp.asarray(m)


def _pool_select(H, W):
    """(H*W, H*W//4) exact 0/1 stride-2 selection matrix for the 2x2 pool."""
    Ho, Wo = H // 2, W // 2
    P = np.zeros((H * W, Ho * Wo), np.float32)
    for oy in range(Ho):
        for ox in range(Wo):
            P[2 * oy * W + 2 * ox, oy * Wo + ox] = 1.0
    return jnp.asarray(P)


def prepare_params(params, initial_side):
    """One-time re-layout: weight-stationary bf16 conv matrices, per-stage
    im2col column masks and pool-selection matrices, bf16 head weights."""
    channels = params['init_w'].shape[-1]
    cin0 = _round_up(params['init_w'].shape[2], 8)
    prep = {
        'w0': _conv_weight_mat(params['init_w'], cin0),
        'b0': params['init_b'].reshape(channels, 1).astype(jnp.float32),
        'mask0': _xmask(3, initial_side, initial_side),
    }
    blocks = []
    side = initial_side
    for (w1, b1, w2, b2) in params['blocks']:
        blocks.append({
            'w1': _conv_weight_mat(w1, channels),
            'b1': b1.reshape(channels, 1).astype(jnp.float32),
            'w2': _conv_weight_mat(w2, channels),
            'b2': b2.reshape(channels, 1).astype(jnp.float32),
            'mask': _xmask(5, side, side),
            'pool': _pool_select(side, side),
        })
        side //= 2
    prep['blocks'] = blocks
    prep['hw1'] = params['out1_w'].astype(jnp.bfloat16)
    prep['hb1'] = params['out1_b'].reshape(1, -1).astype(jnp.float32)
    prep['hw2'] = params['out2_w'].astype(jnp.bfloat16)
    prep['hb2'] = params['out2_b'].reshape(1, -1).astype(jnp.float32)
    return prep


# ----------------------------- pure-JAX reference ----------------------------

def ref_forward(params, x_nchw):
    def conv(z, w, b):
        y = jax.lax.conv_general_dilated(
            z, w, window_strides=(1, 1), padding='SAME',
            dimension_numbers=('NHWC', 'HWIO', 'NHWC'),
            precision=jax.lax.Precision.HIGHEST)
        return y + b

    def sw(z):
        return z * jax.nn.sigmoid(z)

    x = jnp.transpose(x_nchw, (0, 2, 3, 1))
    x = sw(conv(x, params['init_w'], params['init_b']))
    for (w1, b1, w2, b2) in params['blocks']:
        y = sw(conv(x, w1, b1))
        y = sw(conv(y, w2, b2))
        s = x + y
        x = jax.lax.reduce_window(s, -jnp.inf, jax.lax.max,
                                  (1, 2, 2, 1), (1, 2, 2, 1), 'VALID')
    n = x.shape[0]
    flat = jnp.transpose(x, (0, 3, 1, 2)).reshape(n, -1)   # NCHW flatten
    h = sw(flat @ params['out1_w'] + params['out1_b'])
    return sw(h @ params['out2_w'] + params['out2_b'])


# ----------------------------------- main ------------------------------------

if __name__ == "__main__":
    # Small shapes consistent with the module:
    # batch=2, initial_channels=4, initial_side=16, layers=2, channels=8, feature_size=32
    B, C0, S = 2, 4, 16
    LAYERS, CH, FEAT = 2, 8, 32

    params = init_params(0, S, C0, LAYERS, CH, FEAT)
    prep = prepare_params(params, S)
    x = jax.random.normal(jax.random.PRNGKey(0), (B, C0, S, S), jnp.float32)

    fwd = jax.jit(cnn_features_forward)
    out = jax.block_until_ready(fwd(prep, x))
    assert out.shape == (B, FEAT), out.shape

    ref = ref_forward(params, x)
    np.testing.assert_allclose(np.asarray(out), np.asarray(ref), rtol=2e-2, atol=2e-2)

    print("KERNEL_OK")
</pallas_src>

<mosaic_0001>
module attributes {stable_mosaic.version = 11 : i64} {
  func.func @kernel(%arg0: i32, %arg1: memref<1x8x256xf32, #tpu.memory_space<vmem>>, %arg2: memref<8x72xbf16, #tpu.memory_space<vmem>>, %arg3: memref<8x1xf32, #tpu.memory_space<vmem>>, %arg4: memref<3x256xf32, #tpu.memory_space<vmem>>, %arg5: memref<8x200xbf16, #tpu.memory_space<vmem>>, %arg6: memref<8x1xf32, #tpu.memory_space<vmem>>, %arg7: memref<8x200xbf16, #tpu.memory_space<vmem>>, %arg8: memref<8x1xf32, #tpu.memory_space<vmem>>, %arg9: memref<5x256xf32, #tpu.memory_space<vmem>>, %arg10: memref<256x64xf32, #tpu.memory_space<vmem>>, %arg11: memref<8x200xbf16, #tpu.memory_space<vmem>>, %arg12: memref<8x1xf32, #tpu.memory_space<vmem>>, %arg13: memref<8x200xbf16, #tpu.memory_space<vmem>>, %arg14: memref<8x1xf32, #tpu.memory_space<vmem>>, %arg15: memref<5x64xf32, #tpu.memory_space<vmem>>, %arg16: memref<64x16xf32, #tpu.memory_space<vmem>>, %arg17: memref<128x64xbf16, #tpu.memory_space<vmem>>, %arg18: memref<1x64xf32, #tpu.memory_space<vmem>>, %arg19: memref<64x32xbf16, #tpu.memory_space<vmem>>, %arg20: memref<1x32xf32, #tpu.memory_space<vmem>>, %arg21: memref<1x1x32xf32, #tpu.memory_space<vmem>>, %arg22: memref<200x256xbf16, #tpu.memory_space<vmem>>) attributes {dimension_semantics = [#tpu.dimension_semantics<parallel>], iteration_bounds = array<i64: 2>, scalar_prefetch = 0 : i64, scratch_operands = 1 : i64, tpu.core_type = #tpu.core_type<tc>, window_params = [{transform_indices = @transform_0, window_bounds = array<i64: 1, 8, 256>}, {pipeline_mode = #tpu.pipeline_mode<synchronous>, transform_indices = @transform_1, window_bounds = array<i64: 8, 72>}, {pipeline_mode = #tpu.pipeline_mode<synchronous>, transform_indices = @transform_2, window_bounds = array<i64: 8, 1>}, {pipeline_mode = #tpu.pipeline_mode<synchronous>, transform_indices = @transform_3, window_bounds = array<i64: 3, 256>}, {pipeline_mode = #tpu.pipeline_mode<synchronous>, transform_indices = @transform_4, window_bounds = array<i64: 8, 200>}, {pipeline_mode = #tpu.pipeline_mode<synchronous>, transform_indices = @transform_5, window_bounds = array<i64: 8, 1>}, {pipeline_mode = #tpu.pipeline_mode<synchronous>, transform_indices = @transform_6, window_bounds = array<i64: 8, 200>}, {pipeline_mode = #tpu.pipeline_mode<synchronous>, transform_indices = @transform_7, window_bounds = array<i64: 8, 1>}, {pipeline_mode = #tpu.pipeline_mode<synchronous>, transform_indices = @transform_8, window_bounds = array<i64: 5, 256>}, {pipeline_mode = #tpu.pipeline_mode<synchronous>, transform_indices = @transform_9, window_bounds = array<i64: 256, 64>}, {pipeline_mode = #tpu.pipeline_mode<synchronous>, transform_indices = @transform_10, window_bounds = array<i64: 8, 200>}, {pipeline_mode = #tpu.pipeline_mode<synchronous>, transform_indices = @transform_11, window_bounds = array<i64: 8, 1>}, {pipeline_mode = #tpu.pipeline_mode<synchronous>, transform_indices = @transform_12, window_bounds = array<i64: 8, 200>}, {pipeline_mode = #tpu.pipeline_mode<synchronous>, transform_indices = @transform_13, window_bounds = array<i64: 8, 1>}, {pipeline_mode = #tpu.pipeline_mode<synchronous>, transform_indices = @transform_14, window_bounds = array<i64: 5, 64>}, {pipeline_mode = #tpu.pipeline_mode<synchronous>, transform_indices = @transform_15, window_bounds = array<i64: 64, 16>}, {pipeline_mode = #tpu.pipeline_mode<synchronous>, transform_indices = @transform_16, window_bounds = array<i64: 128, 64>}, {pipeline_mode = #tpu.pipeline_mode<synchronous>, transform_indices = @transform_17, window_bounds = array<i64: 1, 64>}, {pipeline_mode = #tpu.pipeline_mode<synchronous>, transform_indices = @transform_18, window_bounds = array<i64: 64, 32>}, {pipeline_mode = #tpu.pipeline_mode<synchronous>, transform_indices = @transform_19, window_bounds = array<i64: 1, 32>}, {transform_indices = @transform_20, window_bounds = array<i64: 1, 1, 32>}]} {
    %c0 = arith.constant 0 : index
    %c0_0 = arith.constant 0 : index
    %c0_1 = arith.constant 0 : index
    %0 = vector.load %arg1[%c0, %c0_0, %c0_1] : memref<1x8x256xf32, #tpu.memory_space<vmem>>, vector<1x8x256xf32>
    %1 = vector.shape_cast %0 : vector<1x8x256xf32> to vector<8x256xf32>
    %cst = arith.constant 0.000000e+00 : f32
    %2 = vector.broadcast %cst : f32 to vector<8x17xf32>
    %3 = tpu.concatenate %2, %1, %2 in 1 : vector<8x17xf32>, vector<8x256xf32>, vector<8x17xf32> -> vector<8x290xf32>
    %c0_2 = arith.constant 0 : index
    %c0_3 = arith.constant 0 : index
    %4 = vector.load %arg4[%c0_2, %c0_3] : memref<3x256xf32, #tpu.memory_space<vmem>>, vector<3x256xf32>
    %5 = vector.extract_strided_slice %3 {offsets = [0, 0], sizes = [8, 256], strides = [1, 1]} : vector<8x290xf32> to vector<8x256xf32>
    %6 = vector.extract_strided_slice %4 {offsets = [0, 0], sizes = [1, 256], strides = [1, 1]} : vector<3x256xf32> to vector<1x256xf32>
    %7 = vector.broadcast %6 : vector<1x256xf32> to vector<8x256xf32>
    %8 = arith.mulf %5, %7 : vector<8x256xf32>
    %9 = arith.truncf %8 : vector<8x256xf32> to vector<8x256xbf16>
    %c0_4 = arith.constant 0 : index
    %c0_5 = arith.constant 0 : index
    %10 = vector.load %arg22[%c0_4, %c0_5] : memref<200x256xbf16, #tpu.memory_space<vmem>>, vector<8x256xbf16>
    tpu.vector_store %arg22[%c0_4, %c0_5], %9 {strides = array<i32>} : memref<200x256xbf16, #tpu.memory_space<vmem>>, vector<8x256xbf16>,
    %11 = vector.extract_strided_slice %3 {offsets = [0, 1], sizes = [8, 256], strides = [1, 1]} : vector<8x290xf32> to vector<8x256xf32>
    %12 = vector.extract_strided_slice %4 {offsets = [1, 0], sizes = [1, 256], strides = [1, 1]} : vector<3x256xf32> to vector<1x256xf32>
    %13 = vector.broadcast %12 : vector<1x256xf32> to vector<8x256xf32>
    %14 = arith.mulf %11, %13 : vector<8x256xf32>
    %15 = arith.truncf %14 : vector<8x256xf32> to vector<8x256xbf16>
    %c8 = arith.constant 8 : index
    %c0_6 = arith.constant 0 : index
    %16 = vector.load %arg22[%c8, %c0_6] : memref<200x256xbf16, #tpu.memory_space<vmem>>, vector<8x256xbf16>
    tpu.vector_store %arg22[%c8, %c0_6], %15 {strides = array<i32>} : memref<200x256xbf16, #tpu.memory_space<vmem>>, vector<8x256xbf16>,
    %17 = vector.extract_strided_slice %3 {offsets = [0, 2], sizes = [8, 256], strides = [1, 1]} : vector<8x290xf32> to vector<8x256xf32>
    %18 = vector.extract_strided_slice %4 {offsets = [2, 0], sizes = [1, 256], strides = [1, 1]} : vector<3x256xf32> to vector<1x256xf32>
    %19 = vector.broadcast %18 : vector<1x256xf32> to vector<8x256xf32>
    %20 = arith.mulf %17, %19 : vector<8x256xf32>
    %21 = arith.truncf %20 : vector<8x256xf32> to vector<8x256xbf16>
    %c16 = arith.constant 16 : index
    %c0_7 = arith.constant 0 : index
    %22 = vector.load %arg22[%c16, %c0_7] : memref<200x256xbf16, #tpu.memory_space<vmem>>, vector<8x256xbf16>
    tpu.vector_store %arg22[%c16, %c0_7], %21 {strides = array<i32>} : memref<200x256xbf16, #tpu.memory_space<vmem>>, vector<8x256xbf16>,
    %23 = vector.extract_strided_slice %3 {offsets = [0, 16], sizes = [8, 256], strides = [1, 1]} : vector<8x290xf32> to vector<8x256xf32>
    %24 = vector.extract_strided_slice %4 {offsets = [0, 0], sizes = [1, 256], strides = [1, 1]} : vector<3x256xf32> to vector<1x256xf32>
    %25 = vector.broadcast %24 : vector<1x256xf32> to vector<8x256xf32>
    %26 = arith.mulf %23, %25 : vector<8x256xf32>
    %27 = arith.truncf %26 : vector<8x256xf32> to vector<8x256xbf16>
    %c24 = arith.constant 24 : index
    %c0_8 = arith.constant 0 : index
    %28 = vector.load %arg22[%c24, %c0_8] : memref<200x256xbf16, #tpu.memory_space<vmem>>, vector<8x256xbf16>
    tpu.vector_store %arg22[%c24, %c0_8], %27 {strides = array<i32>} : memref<200x256xbf16, #tpu.memory_space<vmem>>, vector<8x256xbf16>,
    %29 = vector.extract_strided_slice %3 {offsets = [0, 17], sizes = [8, 256], strides = [1, 1]} : vector<8x290xf32> to vector<8x256xf32>
    %30 = vector.extract_strided_slice %4 {offsets = [1, 0], sizes = [1, 256], strides = [1, 1]} : vector<3x256xf32> to vector<1x256xf32>
    %31 = vector.broadcast %30 : vector<1x256xf32> to vector<8x256xf32>
    %32 = arith.mulf %29, %31 : vector<8x256xf32>
    %33 = arith.truncf %32 : vector<8x256xf32> to vector<8x256xbf16>
    %c32 = arith.constant 32 : index
    %c0_9 = arith.constant 0 : index
    %34 = vector.load %arg22[%c32, %c0_9] : memref<200x256xbf16, #tpu.memory_space<vmem>>, vector<8x256xbf16>
    tpu.vector_store %arg22[%c32, %c0_9], %33 {strides = array<i32>} : memref<200x256xbf16, #tpu.memory_space<vmem>>, vector<8x256xbf16>,
    %35 = vector.extract_strided_slice %3 {offsets = [0, 18], sizes = [8, 256], strides = [1, 1]} : vector<8x290xf32> to vector<8x256xf32>
    %36 = vector.extract_strided_slice %4 {offsets = [2, 0], sizes = [1, 256], strides = [1, 1]} : vector<3x256xf32> to vector<1x256xf32>
    %37 = vector.broadcast %36 : vector<1x256xf32> to vector<8x256xf32>
    %38 = arith.mulf %35, %37 : vector<8x256xf32>
    %39 = arith.truncf %38 : vector<8x256xf32> to vector<8x256xbf16>
    %c40 = arith.constant 40 : index
    %c0_10 = arith.constant 0 : index
    %40 = vector.load %arg22[%c40, %c0_10] : memref<200x256xbf16, #tpu.memory_space<vmem>>, vector<8x256xbf16>
    tpu.vector_store %arg22[%c40, %c0_10], %39 {strides = array<i32>} : memref<200x256xbf16, #tpu.memory_space<vmem>>, vector<8x256xbf16>,
    %41 = vector.extract_strided_slice %3 {offsets = [0, 32], sizes = [8, 256], strides = [1, 1]} : vector<8x290xf32> to vector<8x256xf32>
    %42 = vector.extract_strided_slice %4 {offsets = [0, 0], sizes = [1, 256], strides = [1, 1]} : vector<3x256xf32> to vector<1x256xf32>
    %43 = vector.broadcast %42 : vector<1x256xf32> to vector<8x256xf32>
    %44 = arith.mulf %41, %43 : vector<8x256xf32>
    %45 = arith.truncf %44 : vector<8x256xf32> to vector<8x256xbf16>
    %c48 = arith.constant 48 : index
    %c0_11 = arith.constant 0 : index
    %46 = vector.load %arg22[%c48, %c0_11] : memref<200x256xbf16, #tpu.memory_space<vmem>>, vector<8x256xbf16>
    tpu.vector_store %arg22[%c48, %c0_11], %45 {strides = array<i32>} : memref<200x256xbf16, #tpu.memory_space<vmem>>, vector<8x256xbf16>,
    %47 = vector.extract_strided_slice %3 {offsets = [0, 33], sizes = [8, 256], strides = [1, 1]} : vector<8x290xf32> to vector<8x256xf32>
    %48 = vector.extract_strided_slice %4 {offsets = [1, 0], sizes = [1, 256], strides = [1, 1]} : vector<3x256xf32> to vector<1x256xf32>
    %49 = vector.broadcast %48 : vector<1x256xf32> to vector<8x256xf32>
    %50 = arith.mulf %47, %49 : vector<8x256xf32>
    %51 = arith.truncf %50 : vector<8x256xf32> to vector<8x256xbf16>
    %c56 = arith.constant 56 : index
    %c0_12 = arith.constant 0 : index
    %52 = vector.load %arg22[%c56, %c0_12] : memref<200x256xbf16, #tpu.memory_space<vmem>>, vector<8x256xbf16>
    tpu.vector_store %arg22[%c56, %c0_12], %51 {strides = array<i32>} : memref<200x256xbf16, #tpu.memory_space<vmem>>, vector<8x256xbf16>,
    %53 = vector.extract_strided_slice %3 {offsets = [0, 34], sizes = [8, 256], strides = [1, 1]} : vector<8x290xf32> to vector<8x256xf32>
    %54 = vector.extract_strided_slice %4 {offsets = [2, 0], sizes = [1, 256], strides = [1, 1]} : vector<3x256xf32> to vector<1x256xf32>
    %55 = vector.broadcast %54 : vector<1x256xf32> to vector<8x256xf32>
    %56 = arith.mulf %53, %55 : vector<8x256xf32>
    %57 = arith.truncf %56 : vector<8x256xf32> to vector<8x256xbf16>
    %c64 = arith.constant 64 : index
    %c0_13 = arith.constant 0 : index
    %58 = vector.load %arg22[%c64, %c0_13] : memref<200x256xbf16, #tpu.memory_space<vmem>>, vector<8x256xbf16>
    tpu.vector_store %arg22[%c64, %c0_13], %57 {strides = array<i32>} : memref<200x256xbf16, #tpu.memory_space<vmem>>, vector<8x256xbf16>,
    %c0_14 = arith.constant 0 : index
    %c0_15 = arith.constant 0 : index
    %59 = vector.load %arg2[%c0_14, %c0_15] : memref<8x72xbf16, #tpu.memory_space<vmem>>, vector<8x72xbf16>
    %c0_16 = arith.constant 0 : index
    %c0_17 = arith.constant 0 : index
    %60 = vector.load %arg22[%c0_16, %c0_17] : memref<200x256xbf16, #tpu.memory_space<vmem>>, vector<72x256xbf16>
    %cst_18 = arith.constant dense<0.000000e+00> : vector<8x256xf32>
    %61 = tpu.matmul %59, %60, %cst_18 {dimension_numbers = #tpu.dot_dimension_numbers<[1], [0], [0], [1], [0, 0, 1, 1], [], []>} : vector<8x72xbf16>, vector<72x256xbf16>, vector<8x256xf32> -> vector<8x256xf32>
    %c0_19 = arith.constant 0 : index
    %c0_20 = arith.constant 0 : index
    %62 = vector.load %arg3[%c0_19, %c0_20] : memref<8x1xf32, #tpu.memory_space<vmem>>, vector<8x1xf32>
    %63 = vector.broadcast %62 : vector<8x1xf32> to vector<8x256xf32>
    %64 = arith.addf %61, %63 : vector<8x256xf32>
    %cst_21 = arith.constant 0.000000e+00 : f32
    %65 = vector.broadcast %cst_21 : f32 to vector<8x256xf32>
    %66 = arith.subf %65, %64 : vector<8x256xf32>
    %67 = math.exp %66 : vector<8x256xf32>
    %cst_22 = arith.constant 1.000000e+00 : f32
    %68 = vector.broadcast %cst_22 : f32 to vector<8x256xf32>
    %69 = arith.addf %68, %67 : vector<8x256xf32>
    %cst_23 = arith.constant 1.000000e+00 : f32
    %70 = vector.broadcast %cst_23 : f32 to vector<8x256xf32>
    %71 = arith.divf %70, %69 : vector<8x256xf32>
    %72 = arith.mulf %64, %71 : vector<8x256xf32>
    %cst_24 = arith.constant 0.000000e+00 : f32
    %73 = vector.broadcast %cst_24 : f32 to vector<8x34xf32>
    %74 = tpu.concatenate %73, %72, %73 in 1 : vector<8x34xf32>, vector<8x256xf32>, vector<8x34xf32> -> vector<8x324xf32>
    %c0_25 = arith.constant 0 : index
    %c0_26 = arith.constant 0 : index
    %75 = vector.load %arg9[%c0_25, %c0_26] : memref<5x256xf32, #tpu.memory_space<vmem>>, vector<5x256xf32>
    %76 = vector.extract_strided_slice %74 {offsets = [0, 0], sizes = [8, 256], strides = [1, 1]} : vector<8x324xf32> to vector<8x256xf32>
    %77 = vector.extract_strided_slice %75 {offsets = [0, 0], sizes = [1, 256], strides = [1, 1]} : vector<5x256xf32> to vector<1x256xf32>
    %78 = vector.broadcast %77 : vector<1x256xf32> to vector<8x256xf32>
    %79 = arith.mulf %76, %78 : vector<8x256xf32>
    %80 = arith.truncf %79 : vector<8x256xf32> to vector<8x256xbf16>
    %c0_27 = arith.constant 0 : index
    %c0_28 = arith.constant 0 : index
    %81 = vector.load %arg22[%c0_27, %c0_28] : memref<200x256xbf16, #tpu.memory_space<vmem>>, vector<8x256xbf16>
    tpu.vector_store %arg22[%c0_27, %c0_28], %80 {strides = array<i32>} : memref<200x256xbf16, #tpu.memory_space<vmem>>, vector<8x256xbf16>,
    %82 = vector.extract_strided_slice %74 {offsets = [0, 1], sizes = [8, 256], strides = [1, 1]} : vector<8x324xf32> to vector<8x256xf32>
    %83 = vector.extract_strided_slice %75 {offsets = [1, 0], sizes = [1, 256], strides = [1, 1]} : vector<5x256xf32> to vector<1x256xf32>
    %84 = vector.broadcast %83 : vector<1x256xf32> to vector<8x256xf32>
    %85 = arith.mulf %82, %84 : vector<8x256xf32>
    %86 = arith.truncf %85 : vector<8x256xf32> to vector<8x256xbf16>
    %c8_29 = arith.constant 8 : index
    %c0_30 = arith.constant 0 : index
    %87 = vector.load %arg22[%c8_29, %c0_30] : memref<200x256xbf16, #tpu.memory_space<vmem>>, vector<8x256xbf16>
    tpu.vector_store %arg22[%c8_29, %c0_30], %86 {strides = array<i32>} : memref<200x256xbf16, #tpu.memory_space<vmem>>, vector<8x256xbf16>,
    %88 = vector.extract_strided_slice %74 {offsets = [0, 2], sizes = [8, 256], strides = [1, 1]} : vector<8x324xf32> to vector<8x256xf32>
    %89 = vector.extract_strided_slice %75 {offsets = [2, 0], sizes = [1, 256], strides = [1, 1]} : vector<5x256xf32> to vector<1x256xf32>
    %90 = vector.broadcast %89 : vector<1x256xf32> to vector<8x256xf32>
    %91 = arith.mulf %88, %90 : vector<8x256xf32>
    %92 = arith.truncf %91 : vector<8x256xf32> to vector<8x256xbf16>
    %c16_31 = arith.constant 16 : index
    %c0_32 = arith.constant 0 : index
    %93 = vector.load %arg22[%c16_31, %c0_32] : memref<200x256xbf16, #tpu.memory_space<vmem>>, vector<8x256xbf16>
    tpu.vector_store %arg22[%c16_31, %c0_32], %92 {strides = array<i32>} : memref<200x256xbf16, #tpu.memory_space<vmem>>, vector<8x256xbf16>,
    %94 = vector.extract_strided_slice %74 {offsets = [0, 3], sizes = [8, 256], strides = [1, 1]} : vector<8x324xf32> to vector<8x256xf32>
    %95 = vector.extract_strided_slice %75 {offsets = [3, 0], sizes = [1, 256], strides = [1, 1]} : vector<5x256xf32> to vector<1x256xf32>
    %96 = vector.broadcast %95 : vector<1x256xf32> to vector<8x256xf32>
    %97 = arith.mulf %94, %96 : vector<8x256xf32>
    %98 = arith.truncf %97 : vector<8x256xf32> to vector<8x256xbf16>
    %c24_33 = arith.constant 24 : index
    %c0_34 = arith.constant 0 : index
    %99 = vector.load %arg22[%c24_33, %c0_34] : memref<200x256xbf16, #tpu.memory_space<vmem>>, vector<8x256xbf16>
    tpu.vector_store %arg22[%c24_33, %c0_34], %98 {strides = array<i32>} : memref<200x256xbf16, #tpu.memory_space<vmem>>, vector<8x256xbf16>,
    %100 = vector.extract_strided_slice %74 {offsets = [0, 4], sizes = [8, 256], strides = [1, 1]} : vector<8x324xf32> to vector<8x256xf32>
    %101 = vector.extract_strided_slice %75 {offsets = [4, 0], sizes = [1, 256], strides = [1, 1]} : vector<5x256xf32> to vector<1x256xf32>
    %102 = vector.broadcast %101 : vector<1x256xf32> to vector<8x256xf32>
    %103 = arith.mulf %100, %102 : vector<8x256xf32>
    %104 = arith.truncf %103 : vector<8x256xf32> to vector<8x256xbf16>
    %c32_35 = arith.constant 32 : index
    %c0_36 = arith.constant 0 : index
    %105 = vector.load %arg22[%c32_35, %c0_36] : memref<200x256xbf16, #tpu.memory_space<vmem>>, vector<8x256xbf16>
    tpu.vector_store %arg22[%c32_35, %c0_36], %104 {strides = array<i32>} : memref<200x256xbf16, #tpu.memory_space<vmem>>, vector<8x256xbf16>,
    %106 = vector.extract_strided_slice %74 {offsets = [0, 16], sizes = [8, 256], strides = [1, 1]} : vector<8x324xf32> to vector<8x256xf32>
    %107 = vector.extract_strided_slice %75 {offsets = [0, 0], sizes = [1, 256], strides = [1, 1]} : vector<5x256xf32> to vector<1x256xf32>
    %108 = vector.broadcast %107 : vector<1x256xf32> to vector<8x256xf32>
    %109 = arith.mulf %106, %108 : vector<8x256xf32>
    %110 = arith.truncf %109 : vector<8x256xf32> to vector<8x256xbf16>
    %c40_37 = arith.constant 40 : index
    %c0_38 = arith.constant 0 : index
    %111 = vector.load %arg22[%c40_37, %c0_38] : memref<200x256xbf16, #tpu.memory_space<vmem>>, vector<8x256xbf16>
    tpu.vector_store %arg22[%c40_37, %c0_38], %110 {strides = array<i32>} : memref<200x256xbf16, #tpu.memory_space<vmem>>, vector<8x256xbf16>,
    %112 = vector.extract_strided_slice %74 {offsets = [0, 17], sizes = [8, 256], strides = [1, 1]} : vector<8x324xf32> to vector<8x256xf32>
    %113 = vector.extract_strided_slice %75 {offsets = [1, 0], sizes = [1, 256], strides = [1, 1]} : vector<5x256xf32> to vector<1x256xf32>
    %114 = vector.broadcast %113 : vector<1x256xf32> to vector<8x256xf32>
    %115 = arith.mulf %112, %114 : vector<8x256xf32>
    %116 = arith.truncf %115 : vector<8x256xf32> to vector<8x256xbf16>
    %c48_39 = arith.constant 48 : index
    %c0_40 = arith.constant 0 : index
    %117 = vector.load %arg22[%c48_39, %c0_40] : memref<200x256xbf16, #tpu.memory_space<vmem>>, vector<8x256xbf16>
    tpu.vector_store %arg22[%c48_39, %c0_40], %116 {strides = array<i32>} : memref<200x256xbf16, #tpu.memory_space<vmem>>, vector<8x256xbf16>,
    %118 = vector.extract_strided_slice %74 {offsets = [0, 18], sizes = [8, 256], strides = [1, 1]} : vector<8x324xf32> to vector<8x256xf32>
    %119 = vector.extract_strided_slice %75 {offsets = [2, 0], sizes = [1, 256], strides = [1, 1]} : vector<5x256xf32> to vector<1x256xf32>
    %120 = vector.broadcast %119 : vector<1x256xf32> to vector<8x256xf32>
    %121 = arith.mulf %118, %120 : vector<8x256xf32>
    %122 = arith.truncf %121 : vector<8x256xf32> to vector<8x256xbf16>
    %c56_41 = arith.constant 56 : index
    %c0_42 = arith.constant 0 : index
    %123 = vector.load %arg22[%c56_41, %c0_42] : memref<200x256xbf16, #tpu.memory_space<vmem>>, vector<8x256xbf16>
    tpu.vector_store %arg22[%c56_41, %c0_42], %122 {strides = array<i32>} : memref<200x256xbf16, #tpu.memory_space<vmem>>, vector<8x256xbf16>,
    %124 = vector.extract_strided_slice %74 {offsets = [0, 19], sizes = [8, 256], strides = [1, 1]} : vector<8x324xf32> to vector<8x256xf32>
    %125 = vector.extract_strided_slice %75 {offsets = [3, 0], sizes = [1, 256], strides = [1, 1]} : vector<5x256xf32> to vector<1x256xf32>
    %126 = vector.broadcast %125 : vector<1x256xf32> to vector<8x256xf32>
    %127 = arith.mulf %124, %126 : vector<8x256xf32>
    %128 = arith.truncf %127 : vector<8x256xf32> to vector<8x256xbf16>
    %c64_43 = arith.constant 64 : index
    %c0_44 = arith.constant 0 : index
    %129 = vector.load %arg22[%c64_43, %c0_44] : memref<200x256xbf16, #tpu.memory_space<vmem>>, vector<8x256xbf16>
    tpu.vector_store %arg22[%c64_43, %c0_44], %128 {strides = array<i32>} : memref<200x256xbf16, #tpu.memory_space<vmem>>, vector<8x256xbf16>,
    %130 = vector.extract_strided_slice %74 {offsets = [0, 20], sizes = [8, 256], strides = [1, 1]} : vector<8x324xf32> to vector<8x256xf32>
    %131 = vector.extract_strided_slice %75 {offsets = [4, 0], sizes = [1, 256], strides = [1, 1]} : vector<5x256xf32> to vector<1x256xf32>
    %132 = vector.broadcast %131 : vector<1x256xf32> to vector<8x256xf32>
    %133 = arith.mulf %130, %132 : vector<8x256xf32>
    %134 = arith.truncf %133 : vector<8x256xf32> to vector<8x256xbf16>
    %c72 = arith.constant 72 : index
    %c0_45 = arith.constant 0 : index
    %135 = vector.load %arg22[%c72, %c0_45] : memref<200x256xbf16, #tpu.memory_space<vmem>>, vector<8x256xbf16>
    tpu.vector_store %arg22[%c72, %c0_45], %134 {strides = array<i32>} : memref<200x256xbf16, #tpu.memory_space<vmem>>, vector<8x256xbf16>,
    %136 = vector.extract_strided_slice %74 {offsets = [0, 32], sizes = [8, 256], strides = [1, 1]} : vector<8x324xf32> to vector<8x256xf32>
    %137 = vector.extract_strided_slice %75 {offsets = [0, 0], sizes = [1, 256], strides = [1, 1]} : vector<5x256xf32> to vector<1x256xf32>
    %138 = vector.broadcast %137 : vector<1x256xf32> to vector<8x256xf32>
    %139 = arith.mulf %136, %138 : vector<8x256xf32>
    %140 = arith.truncf %139 : vector<8x256xf32> to vector<8x256xbf16>
    %c80 = arith.constant 80 : index
    %c0_46 = arith.constant 0 : index
    %141 = vector.load %arg22[%c80, %c0_46] : memref<200x256xbf16, #tpu.memory_space<vmem>>, vector<8x256xbf16>
    tpu.vector_store %arg22[%c80, %c0_46], %140 {strides = array<i32>} : memref<200x256xbf16, #tpu.memory_space<vmem>>, vector<8x256xbf16>,
    %142 = vector.extract_strided_slice %74 {offsets = [0, 33], sizes = [8, 256], strides = [1, 1]} : vector<8x324xf32> to vector<8x256xf32>
    %143 = vector.extract_strided_slice %75 {offsets = [1, 0], sizes = [1, 256], strides = [1, 1]} : vector<5x256xf32> to vector<1x256xf32>
    %144 = vector.broadcast %143 : vector<1x256xf32> to vector<8x256xf32>
    %145 = arith.mulf %142, %144 : vector<8x256xf32>
    %146 = arith.truncf %145 : vector<8x256xf32> to vector<8x256xbf16>
    %c88 = arith.constant 88 : index
    %c0_47 = arith.constant 0 : index
    %147 = vector.load %arg22[%c88, %c0_47] : memref<200x256xbf16, #tpu.memory_space<vmem>>, vector<8x256xbf16>
    tpu.vector_store %arg22[%c88, %c0_47], %146 {strides = array<i32>} : memref<200x256xbf16, #tpu.memory_space<vmem>>, vector<8x256xbf16>,
    %148 = vector.extract_strided_slice %74 {offsets = [0, 34], sizes = [8, 256], strides = [1, 1]} : vector<8x324xf32> to vector<8x256xf32>
    %149 = vector.extract_strided_slice %75 {offsets = [2, 0], sizes = [1, 256], strides = [1, 1]} : vector<5x256xf32> to vector<1x256xf32>
    %150 = vector.broadcast %149 : vector<1x256xf32> to vector<8x256xf32>
    %151 = arith.mulf %148, %150 : vector<8x256xf32>
    %152 = arith.truncf %151 : vector<8x256xf32> to vector<8x256xbf16>
    %c96 = arith.constant 96 : index
    %c0_48 = arith.constant 0 : index
    %153 = vector.load %arg22[%c96, %c0_48] : memref<200x256xbf16, #tpu.memory_space<vmem>>, vector<8x256xbf16>
    tpu.vector_store %arg22[%c96, %c0_48], %152 {strides = array<i32>} : memref<200x256xbf16, #tpu.memory_space<vmem>>, vector<8x256xbf16>,
    %154 = vector.extract_strided_slice %74 {offsets = [0, 35], sizes = [8, 256], strides = [1, 1]} : vector<8x324xf32> to vector<8x256xf32>
    %155 = vector.extract_strided_slice %75 {offsets = [3, 0], sizes = [1, 256], strides = [1, 1]} : vector<5x256xf32> to vector<1x256xf32>
    %156 = vector.broadcast %155 : vector<1x256xf32> to vector<8x256xf32>
    %157 = arith.mulf %154, %156 : vector<8x256xf32>
    %158 = arith.truncf %157 : vector<8x256xf32> to vector<8x256xbf16>
    %c104 = arith.constant 104 : index
    %c0_49 = arith.constant 0 : index
    %159 = vector.load %arg22[%c104, %c0_49] : memref<200x256xbf16, #tpu.memory_space<vmem>>, vector<8x256xbf16>
    tpu.vector_store %arg22[%c104, %c0_49], %158 {strides = array<i32>} : memref<200x256xbf16, #tpu.memory_space<vmem>>, vector<8x256xbf16>,
    %160 = vector.extract_strided_slice %74 {offsets = [0, 36], sizes = [8, 256], strides = [1, 1]} : vector<8x324xf32> to vector<8x256xf32>
    %161 = vector.extract_strided_slice %75 {offsets = [4, 0], sizes = [1, 256], strides = [1, 1]} : vector<5x256xf32> to vector<1x256xf32>
    %162 = vector.broadcast %161 : vector<1x256xf32> to vector<8x256xf32>
    %163 = arith.mulf %160, %162 : vector<8x256xf32>
    %164 = arith.truncf %163 : vector<8x256xf32> to vector<8x256xbf16>
    %c112 = arith.constant 112 : index
    %c0_50 = arith.constant 0 : index
    %165 = vector.load %arg22[%c112, %c0_50] : memref<200x256xbf16, #tpu.memory_space<vmem>>, vector<8x256xbf16>
    tpu.vector_store %arg22[%c112, %c0_50], %164 {strides = array<i32>} : memref<200x256xbf16, #tpu.memory_space<vmem>>, vector<8x256xbf16>,
    %166 = vector.extract_strided_slice %74 {offsets = [0, 48], sizes = [8, 256], strides = [1, 1]} : vector<8x324xf32> to vector<8x256xf32>
    %167 = vector.extract_strided_slice %75 {offsets = [0, 0], sizes = [1, 256], strides = [1, 1]} : vector<5x256xf32> to vector<1x256xf32>
    %168 = vector.broadcast %167 : vector<1x256xf32> to vector<8x256xf32>
    %169 = arith.mulf %166, %168 : vector<8x256xf32>
    %170 = arith.truncf %169 : vector<8x256xf32> to vector<8x256xbf16>
    %c120 = arith.constant 120 : index
    %c0_51 = arith.constant 0 : index
    %171 = vector.load %arg22[%c120, %c0_51] : memref<200x256xbf16, #tpu.memory_space<vmem>>, vector<8x256xbf16>
    tpu.vector_store %arg22[%c120, %c0_51], %170 {strides = array<i32>} : memref<200x256xbf16, #tpu.memory_space<vmem>>, vector<8x256xbf16>,
    %172 = vector.extract_strided_slice %74 {offsets = [0, 49], sizes = [8, 256], strides = [1, 1]} : vector<8x324xf32> to vector<8x256xf32>
    %173 = vector.extract_strided_slice %75 {offsets = [1, 0], sizes = [1, 256], strides = [1, 1]} : vector<5x256xf32> to vector<1x256xf32>
    %174 = vector.broadcast %173 : vector<1x256xf32> to vector<8x256xf32>
    %175 = arith.mulf %172, %174 : vector<8x256xf32>
    %176 = arith.truncf %175 : vector<8x256xf32> to vector<8x256xbf16>
    %c128 = arith.constant 128 : index
    %c0_52 = arith.constant 0 : index
    %177 = vector.load %arg22[%c128, %c0_52] : memref<200x256xbf16, #tpu.memory_space<vmem>>, vector<8x256xbf16>
    tpu.vector_store %arg22[%c128, %c0_52], %176 {strides = array<i32>} : memref<200x256xbf16, #tpu.memory_space<vmem>>, vector<8x256xbf16>,
    %178 = vector.extract_strided_slice %74 {offsets = [0, 50], sizes = [8, 256], strides = [1, 1]} : vector<8x324xf32> to vector<8x256xf32>
    %179 = vector.extract_strided_slice %75 {offsets = [2, 0], sizes = [1, 256], strides = [1, 1]} : vector<5x256xf32> to vector<1x256xf32>
    %180 = vector.broadcast %179 : vector<1x256xf32> to vector<8x256xf32>
    %181 = arith.mulf %178, %180 : vector<8x256xf32>
    %182 = arith.truncf %181 : vector<8x256xf32> to vector<8x256xbf16>
    %c136 = arith.constant 136 : index
    %c0_53 = arith.constant 0 : index
    %183 = vector.load %arg22[%c136, %c0_53] : memref<200x256xbf16, #tpu.memory_space<vmem>>, vector<8x256xbf16>
    tpu.vector_store %arg22[%c136, %c0_53], %182 {strides = array<i32>} : memref<200x256xbf16, #tpu.memory_space<vmem>>, vector<8x256xbf16>,
    %184 = vector.extract_strided_slice %74 {offsets = [0, 51], sizes = [8, 256], strides = [1, 1]} : vector<8x324xf32> to vector<8x256xf32>
    %185 = vector.extract_strided_slice %75 {offsets = [3, 0], sizes = [1, 256], strides = [1, 1]} : vector<5x256xf32> to vector<1x256xf32>
    %186 = vector.broadcast %185 : vector<1x256xf32> to vector<8x256xf32>
    %187 = arith.mulf %184, %186 : vector<8x256xf32>
    %188 = arith.truncf %187 : vector<8x256xf32> to vector<8x256xbf16>
    %c144 = arith.constant 144 : index
    %c0_54 = arith.constant 0 : index
    %189 = vector.load %arg22[%c144, %c0_54] : memref<200x256xbf16, #tpu.memory_space<vmem>>, vector<8x256xbf16>
    tpu.vector_store %arg22[%c144, %c0_54], %188 {strides = array<i32>} : memref<200x256xbf16, #tpu.memory_space<vmem>>, vector<8x256xbf16>,
    %190 = vector.extract_strided_slice %74 {offsets = [0, 52], sizes = [8, 256], strides = [1, 1]} : vector<8x324xf32> to vector<8x256xf32>
    %191 = vector.extract_strided_slice %75 {offsets = [4, 0], sizes = [1, 256], strides = [1, 1]} : vector<5x256xf32> to vector<1x256xf32>
    %192 = vector.broadcast %191 : vector<1x256xf32> to vector<8x256xf32>
    %193 = arith.mulf %190, %192 : vector<8x256xf32>
    %194 = arith.truncf %193 : vector<8x256xf32> to vector<8x256xbf16>
    %c152 = arith.constant 152 : index
    %c0_55 = arith.constant 0 : index
    %195 = vector.load %arg22[%c152, %c0_55] : memref<200x256xbf16, #tpu.memory_space<vmem>>, vector<8x256xbf16>
    tpu.vector_store %arg22[%c152, %c0_55], %194 {strides = array<i32>} : memref<200x256xbf16, #tpu.memory_space<vmem>>, vector<8x256xbf16>,
    %196 = vector.extract_strided_slice %74 {offsets = [0, 64], sizes = [8, 256], strides = [1, 1]} : vector<8x324xf32> to vector<8x256xf32>
    %197 = vector.extract_strided_slice %75 {offsets = [0, 0], sizes = [1, 256], strides = [1, 1]} : vector<5x256xf32> to vector<1x256xf32>
    %198 = vector.broadcast %197 : vector<1x256xf32> to vector<8x256xf32>
    %199 = arith.mulf %196, %198 : vector<8x256xf32>
    %200 = arith.truncf %199 : vector<8x256xf32> to vector<8x256xbf16>
    %c160 = arith.constant 160 : index
    %c0_56 = arith.constant 0 : index
    %201 = vector.load %arg22[%c160, %c0_56] : memref<200x256xbf16, #tpu.memory_space<vmem>>, vector<8x256xbf16>
    tpu.vector_store %arg22[%c160, %c0_56], %200 {strides = array<i32>} : memref<200x256xbf16, #tpu.memory_space<vmem>>, vector<8x256xbf16>,
    %202 = vector.extract_strided_slice %74 {offsets = [0, 65], sizes = [8, 256], strides = [1, 1]} : vector<8x324xf32> to vector<8x256xf32>
    %203 = vector.extract_strided_slice %75 {offsets = [1, 0], sizes = [1, 256], strides = [1, 1]} : vector<5x256xf32> to vector<1x256xf32>
    %204 = vector.broadcast %203 : vector<1x256xf32> to vector<8x256xf32>
    %205 = arith.mulf %202, %204 : vector<8x256xf32>
    %206 = arith.truncf %205 : vector<8x256xf32> to vector<8x256xbf16>
    %c168 = arith.constant 168 : index
    %c0_57 = arith.constant 0 : index
    %207 = vector.load %arg22[%c168, %c0_57] : memref<200x256xbf16, #tpu.memory_space<vmem>>, vector<8x256xbf16>
    tpu.vector_store %arg22[%c168, %c0_57], %206 {strides = array<i32>} : memref<200x256xbf16, #tpu.memory_space<vmem>>, vector<8x256xbf16>,
    %208 = vector.extract_strided_slice %74 {offsets = [0, 66], sizes = [8, 256], strides = [1, 1]} : vector<8x324xf32> to vector<8x256xf32>
    %209 = vector.extract_strided_slice %75 {offsets = [2, 0], sizes = [1, 256], strides = [1, 1]} : vector<5x256xf32> to vector<1x256xf32>
    %210 = vector.broadcast %209 : vector<1x256xf32> to vector<8x256xf32>
    %211 = arith.mulf %208, %210 : vector<8x256xf32>
    %212 = arith.truncf %211 : vector<8x256xf32> to vector<8x256xbf16>
    %c176 = arith.constant 176 : index
    %c0_58 = arith.constant 0 : index
    %213 = vector.load %arg22[%c176, %c0_58] : memref<200x256xbf16, #tpu.memory_space<vmem>>, vector<8x256xbf16>
    tpu.vector_store %arg22[%c176, %c0_58], %212 {strides = array<i32>} : memref<200x256xbf16, #tpu.memory_space<vmem>>, vector<8x256xbf16>,
    %214 = vector.extract_strided_slice %74 {offsets = [0, 67], sizes = [8, 256], strides = [1, 1]} : vector<8x324xf32> to vector<8x256xf32>
    %215 = vector.extract_strided_slice %75 {offsets = [3, 0], sizes = [1, 256], strides = [1, 1]} : vector<5x256xf32> to vector<1x256xf32>
    %216 = vector.broadcast %215 : vector<1x256xf32> to vector<8x256xf32>
    %217 = arith.mulf %214, %216 : vector<8x256xf32>
    %218 = arith.truncf %217 : vector<8x256xf32> to vector<8x256xbf16>
    %c184 = arith.constant 184 : index
    %c0_59 = arith.constant 0 : index
    %219 = vector.load %arg22[%c184, %c0_59] : memref<200x256xbf16, #tpu.memory_space<vmem>>, vector<8x256xbf16>
    tpu.vector_store %arg22[%c184, %c0_59], %218 {strides = array<i32>} : memref<200x256xbf16, #tpu.memory_space<vmem>>, vector<8x256xbf16>,
    %220 = vector.extract_strided_slice %74 {offsets = [0, 68], sizes = [8, 256], strides = [1, 1]} : vector<8x324xf32> to vector<8x256xf32>
    %221 = vector.extract_strided_slice %75 {offsets = [4, 0], sizes = [1, 256], strides = [1, 1]} : vector<5x256xf32> to vector<1x256xf32>
    %222 = vector.broadcast %221 : vector<1x256xf32> to vector<8x256xf32>
    %223 = arith.mulf %220, %222 : vector<8x256xf32>
    %224 = arith.truncf %223 : vector<8x256xf32> to vector<8x256xbf16>
    %c192 = arith.constant 192 : index
    %c0_60 = arith.constant 0 : index
    %225 = vector.load %arg22[%c192, %c0_60] : memref<200x256xbf16, #tpu.memory_space<vmem>>, vector<8x256xbf16>
    tpu.vector_store %arg22[%c192, %c0_60], %224 {strides = array<i32>} : memref<200x256xbf16, #tpu.memory_space<vmem>>, vector<8x256xbf16>,
    %c0_61 = arith.constant 0 : index
    %c0_62 = arith.constant 0 : index
    %226 = vector.load %arg5[%c0_61, %c0_62] : memref<8x200xbf16, #tpu.memory_space<vmem>>, vector<8x200xbf16>
    %c0_63 = arith.constant 0 : index
    %c0_64 = arith.constant 0 : index
    %227 = vector.load %arg22[%c0_63, %c0_64] : memref<200x256xbf16, #tpu.memory_space<vmem>>, vector<200x256xbf16>
    %cst_65 = arith.constant dense<0.000000e+00> : vector<8x256xf32>
    %228 = tpu.matmul %226, %227, %cst_65 {dimension_numbers = #tpu.dot_dimension_numbers<[1], [0], [0], [1], [0, 0, 1, 1], [], []>} : vector<8x200xbf16>, vector<200x256xbf16>, vector<8x256xf32> -> vector<8x256xf32>
    %c0_66 = arith.constant 0 : index
    %c0_67 = arith.constant 0 : index
    %229 = vector.load %arg6[%c0_66, %c0_67] : memref<8x1xf32, #tpu.memory_space<vmem>>, vector<8x1xf32>
    %230 = vector.broadcast %229 : vector<8x1xf32> to vector<8x256xf32>
    %231 = arith.addf %228, %230 : vector<8x256xf32>
    %cst_68 = arith.constant 0.000000e+00 : f32
    %232 = vector.broadcast %cst_68 : f32 to vector<8x256xf32>
    %233 = arith.subf %232, %231 : vector<8x256xf32>
    %234 = math.exp %233 : vector<8x256xf32>
    %cst_69 = arith.constant 1.000000e+00 : f32
    %235 = vector.broadcast %cst_69 : f32 to vector<8x256xf32>
    %236 = arith.addf %235, %234 : vector<8x256xf32>
    %cst_70 = arith.constant 1.000000e+00 : f32
    %237 = vector.broadcast %cst_70 : f32 to vector<8x256xf32>
    %238 = arith.divf %237, %236 : vector<8x256xf32>
    %239 = arith.mulf %231, %238 : vector<8x256xf32>
    %cst_71 = arith.constant 0.000000e+00 : f32
    %240 = vector.broadcast %cst_71 : f32 to vector<8x34xf32>
    %241 = tpu.concatenate %240, %239, %240 in 1 : vector<8x34xf32>, vector<8x256xf32>, vector<8x34xf32> -> vector<8x324xf32>
    %c0_72 = arith.constant 0 : index
    %c0_73 = arith.constant 0 : index
    %242 = vector.load %arg9[%c0_72, %c0_73] : memref<5x256xf32, #tpu.memory_space<vmem>>, vector<5x256xf32>
    %243 = vector.extract_strided_slice %241 {offsets = [0, 0], sizes = [8, 256], strides = [1, 1]} : vector<8x324xf32> to vector<8x256xf32>
    %244 = vector.extract_strided_slice %242 {offsets = [0, 0], sizes = [1, 256], strides = [1, 1]} : vector<5x256xf32> to vector<1x256xf32>
    %245 = vector.broadcast %244 : vector<1x256xf32> to vector<8x256xf32>
    %246 = arith.mulf %243, %245 : vector<8x256xf32>
    %247 = arith.truncf %246 : vector<8x256xf32> to vector<8x256xbf16>
    %c0_74 = arith.constant 0 : index
    %c0_75 = arith.constant 0 : index
    %248 = vector.load %arg22[%c0_74, %c0_75] : memref<200x256xbf16, #tpu.memory_space<vmem>>, vector<8x256xbf16>
    tpu.vector_store %arg22[%c0_74, %c0_75], %247 {strides = array<i32>} : memref<200x256xbf16, #tpu.memory_space<vmem>>, vector<8x256xbf16>,
    %249 = vector.extract_strided_slice %241 {offsets = [0, 1], sizes = [8, 256], strides = [1, 1]} : vector<8x324xf32> to vector<8x256xf32>
    %250 = vector.extract_strided_slice %242 {offsets = [1, 0], sizes = [1, 256], strides = [1, 1]} : vector<5x256xf32> to vector<1x256xf32>
    %251 = vector.broadcast %250 : vector<1x256xf32> to vector<8x256xf32>
    %252 = arith.mulf %249, %251 : vector<8x256xf32>
    %253 = arith.truncf %252 : vector<8x256xf32> to vector<8x256xbf16>
    %c8_76 = arith.constant 8 : index
    %c0_77 = arith.constant 0 : index
    %254 = vector.load %arg22[%c8_76, %c0_77] : memref<200x256xbf16, #tpu.memory_space<vmem>>, vector<8x256xbf16>
    tpu.vector_store %arg22[%c8_76, %c0_77], %253 {strides = array<i32>} : memref<200x256xbf16, #tpu.memory_space<vmem>>, vector<8x256xbf16>,
    %255 = vector.extract_strided_slice %241 {offsets = [0, 2], sizes = [8, 256], strides = [1, 1]} : vector<8x324xf32> to vector<8x256xf32>
    %256 = vector.extract_strided_slice %242 {offsets = [2, 0], sizes = [1, 256], strides = [1, 1]} : vector<5x256xf32> to vector<1x256xf32>
    %257 = vector.broadcast %256 : vector<1x256xf32> to vector<8x256xf32>
    %258 = arith.mulf %255, %257 : vector<8x256xf32>
    %259 = arith.truncf %258 : vector<8x256xf32> to vector<8x256xbf16>
    %c16_78 = arith.constant 16 : index
    %c0_79 = arith.constant 0 : index
    %260 = vector.load %arg22[%c16_78, %c0_79] : memref<200x256xbf16, #tpu.memory_space<vmem>>, vector<8x256xbf16>
    tpu.vector_store %arg22[%c16_78, %c0_79], %259 {strides = array<i32>} : memref<200x256xbf16, #tpu.memory_space<vmem>>, vector<8x256xbf16>,
    %261 = vector.extract_strided_slice %241 {offsets = [0, 3], sizes = [8, 256], strides = [1, 1]} : vector<8x324xf32> to vector<8x256xf32>
    %262 = vector.extract_strided_slice %242 {offsets = [3, 0], sizes = [1, 256], strides = [1, 1]} : vector<5x256xf32> to vector<1x256xf32>
    %263 = vector.broadcast %262 : vector<1x256xf32> to vector<8x256xf32>
    %264 = arith.mulf %261, %263 : vector<8x256xf32>
    %265 = arith.truncf %264 : vector<8x256xf32> to vector<8x256xbf16>
    %c24_80 = arith.constant 24 : index
    %c0_81 = arith.constant 0 : index
    %266 = vector.load %arg22[%c24_80, %c0_81] : memref<200x256xbf16, #tpu.memory_space<vmem>>, vector<8x256xbf16>
    tpu.vector_store %arg22[%c24_80, %c0_81], %265 {strides = array<i32>} : memref<200x256xbf16, #tpu.memory_space<vmem>>, vector<8x256xbf16>,
    %267 = vector.extract_strided_slice %241 {offsets = [0, 4], sizes = [8, 256], strides = [1, 1]} : vector<8x324xf32> to vector<8x256xf32>
    %268 = vector.extract_strided_slice %242 {offsets = [4, 0], sizes = [1, 256], strides = [1, 1]} : vector<5x256xf32> to vector<1x256xf32>
    %269 = vector.broadcast %268 : vector<1x256xf32> to vector<8x256xf32>
    %270 = arith.mulf %267, %269 : vector<8x256xf32>
    %271 = arith.truncf %270 : vector<8x256xf32> to vector<8x256xbf16>
    %c32_82 = arith.constant 32 : index
    %c0_83 = arith.constant 0 : index
    %272 = vector.load %arg22[%c32_82, %c0_83] : memref<200x256xbf16, #tpu.memory_space<vmem>>, vector<8x256xbf16>
    tpu.vector_store %arg22[%c32_82, %c0_83], %271 {strides = array<i32>} : memref<200x256xbf16, #tpu.memory_space<vmem>>, vector<8x256xbf16>,
    %273 = vector.extract_strided_slice %241 {offsets = [0, 16], sizes = [8, 256], strides = [1, 1]} : vector<8x324xf32> to vector<8x256xf32>
    %274 = vector.extract_strided_slice %242 {offsets = [0, 0], sizes = [1, 256], strides = [1, 1]} : vector<5x256xf32> to vector<1x256xf32>
    %275 = vector.broadcast %274 : vector<1x256xf32> to vector<8x256xf32>
    %276 = arith.mulf %273, %275 : vector<8x256xf32>
    %277 = arith.truncf %276 : vector<8x256xf32> to vector<8x256xbf16>
    %c40_84 = arith.constant 40 : index
    %c0_85 = arith.constant 0 : index
    %278 = vector.load %arg22[%c40_84, %c0_85] : memref<200x256xbf16, #tpu.memory_space<vmem>>, vector<8x256xbf16>
    tpu.vector_store %arg22[%c40_84, %c0_85], %277 {strides = array<i32>} : memref<200x256xbf16, #tpu.memory_space<vmem>>, vector<8x256xbf16>,
    %279 = vector.extract_strided_slice %241 {offsets = [0, 17], sizes = [8, 256], strides = [1, 1]} : vector<8x324xf32> to vector<8x256xf32>
    %280 = vector.extract_strided_slice %242 {offsets = [1, 0], sizes = [1, 256], strides = [1, 1]} : vector<5x256xf32> to vector<1x256xf32>
    %281 = vector.broadcast %280 : vector<1x256xf32> to vector<8x256xf32>
    %282 = arith.mulf %279, %281 : vector<8x256xf32>
    %283 = arith.truncf %282 : vector<8x256xf32> to vector<8x256xbf16>
    %c48_86 = arith.constant 48 : index
    %c0_87 = arith.constant 0 : index
    %284 = vector.load %arg22[%c48_86, %c0_87] : memref<200x256xbf16, #tpu.memory_space<vmem>>, vector<8x256xbf16>
    tpu.vector_store %arg22[%c48_86, %c0_87], %283 {strides = array<i32>} : memref<200x256xbf16, #tpu.memory_space<vmem>>, vector<8x256xbf16>,
    %285 = vector.extract_strided_slice %241 {offsets = [0, 18], sizes = [8, 256], strides = [1, 1]} : vector<8x324xf32> to vector<8x256xf32>
    %286 = vector.extract_strided_slice %242 {offsets = [2, 0], sizes = [1, 256], strides = [1, 1]} : vector<5x256xf32> to vector<1x256xf32>
    %287 = vector.broadcast %286 : vector<1x256xf32> to vector<8x256xf32>
    %288 = arith.mulf %285, %287 : vector<8x256xf32>
    %289 = arith.truncf %288 : vector<8x256xf32> to vector<8x256xbf16>
    %c56_88 = arith.constant 56 : index
    %c0_89 = arith.constant 0 : index
    %290 = vector.load %arg22[%c56_88, %c0_89] : memref<200x256xbf16, #tpu.memory_space<vmem>>, vector<8x256xbf16>
    tpu.vector_store %arg22[%c56_88, %c0_89], %289 {strides = array<i32>} : memref<200x256xbf16, #tpu.memory_space<vmem>>, vector<8x256xbf16>,
    %291 = vector.extract_strided_slice %241 {offsets = [0, 19], sizes = [8, 256], strides = [1, 1]} : vector<8x324xf32> to vector<8x256xf32>
    %292 = vector.extract_strided_slice %242 {offsets = [3, 0], sizes = [1, 256], strides = [1, 1]} : vector<5x256xf32> to vector<1x256xf32>
    %293 = vector.broadcast %292 : vector<1x256xf32> to vector<8x256xf32>
    %294 = arith.mulf %291, %293 : vector<8x256xf32>
    %295 = arith.truncf %294 : vector<8x256xf32> to vector<8x256xbf16>
    %c64_90 = arith.constant 64 : index
    %c0_91 = arith.constant 0 : index
    %296 = vector.load %arg22[%c64_90, %c0_91] : memref<200x256xbf16, #tpu.memory_space<vmem>>, vector<8x256xbf16>
    tpu.vector_store %arg22[%c64_90, %c0_91], %295 {strides = array<i32>} : memref<200x256xbf16, #tpu.memory_space<vmem>>, vector<8x256xbf16>,
    %297 = vector.extract_strided_slice %241 {offsets = [0, 20], sizes = [8, 256], strides = [1, 1]} : vector<8x324xf32> to vector<8x256xf32>
    %298 = vector.extract_strided_slice %242 {offsets = [4, 0], sizes = [1, 256], strides = [1, 1]} : vector<5x256xf32> to vector<1x256xf32>
    %299 = vector.broadcast %298 : vector<1x256xf32> to vector<8x256xf32>
    %300 = arith.mulf %297, %299 : vector<8x256xf32>
    %301 = arith.truncf %300 : vector<8x256xf32> to vector<8x256xbf16>
    %c72_92 = arith.constant 72 : index
    %c0_93 = arith.constant 0 : index
    %302 = vector.load %arg22[%c72_92, %c0_93] : memref<200x256xbf16, #tpu.memory_space<vmem>>, vector<8x256xbf16>
    tpu.vector_store %arg22[%c72_92, %c0_93], %301 {strides = array<i32>} : memref<200x256xbf16, #tpu.memory_space<vmem>>, vector<8x256xbf16>,
    %303 = vector.extract_strided_slice %241 {offsets = [0, 32], sizes = [8, 256], strides = [1, 1]} : vector<8x324xf32> to vector<8x256xf32>
    %304 = vector.extract_strided_slice %242 {offsets = [0, 0], sizes = [1, 256], strides = [1, 1]} : vector<5x256xf32> to vector<1x256xf32>
    %305 = vector.broadcast %304 : vector<1x256xf32> to vector<8x256xf32>
    %306 = arith.mulf %303, %305 : vector<8x256xf32>
    %307 = arith.truncf %306 : vector<8x256xf32> to vector<8x256xbf16>
    %c80_94 = arith.constant 80 : index
    %c0_95 = arith.constant 0 : index
    %308 = vector.load %arg22[%c80_94, %c0_95] : memref<200x256xbf16, #tpu.memory_space<vmem>>, vector<8x256xbf16>
    tpu.vector_store %arg22[%c80_94, %c0_95], %307 {strides = array<i32>} : memref<200x256xbf16, #tpu.memory_space<vmem>>, vector<8x256xbf16>,
    %309 = vector.extract_strided_slice %241 {offsets = [0, 33], sizes = [8, 256], strides = [1, 1]} : vector<8x324xf32> to vector<8x256xf32>
    %310 = vector.extract_strided_slice %242 {offsets = [1, 0], sizes = [1, 256], strides = [1, 1]} : vector<5x256xf32> to vector<1x256xf32>
    %311 = vector.broadcast %310 : vector<1x256xf32> to vector<8x256xf32>
    %312 = arith.mulf %309, %311 : vector<8x256xf32>
    %313 = arith.truncf %312 : vector<8x256xf32> to vector<8x256xbf16>
    %c88_96 = arith.constant 88 : index
    %c0_97 = arith.constant 0 : index
    %314 = vector.load %arg22[%c88_96, %c0_97] : memref<200x256xbf16, #tpu.memory_space<vmem>>, vector<8x256xbf16>
    tpu.vector_store %arg22[%c88_96, %c0_97], %313 {strides = array<i32>} : memref<200x256xbf16, #tpu.memory_space<vmem>>, vector<8x256xbf16>,
    %315 = vector.extract_strided_slice %241 {offsets = [0, 34], sizes = [8, 256], strides = [1, 1]} : vector<8x324xf32> to vector<8x256xf32>
    %316 = vector.extract_strided_slice %242 {offsets = [2, 0], sizes = [1, 256], strides = [1, 1]} : vector<5x256xf32> to vector<1x256xf32>
    %317 = vector.broadcast %316 : vector<1x256xf32> to vector<8x256xf32>
    %318 = arith.mulf %315, %317 : vector<8x256xf32>
    %319 = arith.truncf %318 : vector<8x256xf32> to vector<8x256xbf16>
    %c96_98 = arith.constant 96 : index
    %c0_99 = arith.constant 0 : index
    %320 = vector.load %arg22[%c96_98, %c0_99] : memref<200x256xbf16, #tpu.memory_space<vmem>>, vector<8x256xbf16>
    tpu.vector_store %arg22[%c96_98, %c0_99], %319 {strides = array<i32>} : memref<200x256xbf16, #tpu.memory_space<vmem>>, vector<8x256xbf16>,
    %321 = vector.extract_strided_slice %241 {offsets = [0, 35], sizes = [8, 256], strides = [1, 1]} : vector<8x324xf32> to vector<8x256xf32>
    %322 = vector.extract_strided_slice %242 {offsets = [3, 0], sizes = [1, 256], strides = [1, 1]} : vector<5x256xf32> to vector<1x256xf32>
    %323 = vector.broadcast %322 : vector<1x256xf32> to vector<8x256xf32>
    %324 = arith.mulf %321, %323 : vector<8x256xf32>
    %325 = arith.truncf %324 : vector<8x256xf32> to vector<8x256xbf16>
    %c104_100 = arith.constant 104 : index
    %c0_101 = arith.constant 0 : index
    %326 = vector.load %arg22[%c104_100, %c0_101] : memref<200x256xbf16, #tpu.memory_space<vmem>>, vector<8x256xbf16>
    tpu.vector_store %arg22[%c104_100, %c0_101], %325 {strides = array<i32>} : memref<200x256xbf16, #tpu.memory_space<vmem>>, vector<8x256xbf16>,
    %327 = vector.extract_strided_slice %241 {offsets = [0, 36], sizes = [8, 256], strides = [1, 1]} : vector<8x324xf32> to vector<8x256xf32>
    %328 = vector.extract_strided_slice %242 {offsets = [4, 0], sizes = [1, 256], strides = [1, 1]} : vector<5x256xf32> to vector<1x256xf32>
    %329 = vector.broadcast %328 : vector<1x256xf32> to vector<8x256xf32>
    %330 = arith.mulf %327, %329 : vector<8x256xf32>
    %331 = arith.truncf %330 : vector<8x256xf32> to vector<8x256xbf16>
    %c112_102 = arith.constant 112 : index
    %c0_103 = arith.constant 0 : index
    %332 = vector.load %arg22[%c112_102, %c0_103] : memref<200x256xbf16, #tpu.memory_space<vmem>>, vector<8x256xbf16>
    tpu.vector_store %arg22[%c112_102, %c0_103], %331 {strides = array<i32>} : memref<200x256xbf16, #tpu.memory_space<vmem>>, vector<8x256xbf16>,
    %333 = vector.extract_strided_slice %241 {offsets = [0, 48], sizes = [8, 256], strides = [1, 1]} : vector<8x324xf32> to vector<8x256xf32>
    %334 = vector.extract_strided_slice %242 {offsets = [0, 0], sizes = [1, 256], strides = [1, 1]} : vector<5x256xf32> to vector<1x256xf32>
    %335 = vector.broadcast %334 : vector<1x256xf32> to vector<8x256xf32>
    %336 = arith.mulf %333, %335 : vector<8x256xf32>
    %337 = arith.truncf %336 : vector<8x256xf32> to vector<8x256xbf16>
    %c120_104 = arith.constant 120 : index
    %c0_105 = arith.constant 0 : index
    %338 = vector.load %arg22[%c120_104, %c0_105] : memref<200x256xbf16, #tpu.memory_space<vmem>>, vector<8x256xbf16>
    tpu.vector_store %arg22[%c120_104, %c0_105], %337 {strides = array<i32>} : memref<200x256xbf16, #tpu.memory_space<vmem>>, vector<8x256xbf16>,
    %339 = vector.extract_strided_slice %241 {offsets = [0, 49], sizes = [8, 256], strides = [1, 1]} : vector<8x324xf32> to vector<8x256xf32>
    %340 = vector.extract_strided_slice %242 {offsets = [1, 0], sizes = [1, 256], strides = [1, 1]} : vector<5x256xf32> to vector<1x256xf32>
    %341 = vector.broadcast %340 : vector<1x256xf32> to vector<8x256xf32>
    %342 = arith.mulf %339, %341 : vector<8x256xf32>
    %343 = arith.truncf %342 : vector<8x256xf32> to vector<8x256xbf16>
    %c128_106 = arith.constant 128 : index
    %c0_107 = arith.constant 0 : index
    %344 = vector.load %arg22[%c128_106, %c0_107] : memref<200x256xbf16, #tpu.memory_space<vmem>>, vector<8x256xbf16>
    tpu.vector_store %arg22[%c128_106, %c0_107], %343 {strides = array<i32>} : memref<200x256xbf16, #tpu.memory_space<vmem>>, vector<8x256xbf16>,
    %345 = vector.extract_strided_slice %241 {offsets = [0, 50], sizes = [8, 256], strides = [1, 1]} : vector<8x324xf32> to vector<8x256xf32>
    %346 = vector.extract_strided_slice %242 {offsets = [2, 0], sizes = [1, 256], strides = [1, 1]} : vector<5x256xf32> to vector<1x256xf32>
    %347 = vector.broadcast %346 : vector<1x256xf32> to vector<8x256xf32>
    %348 = arith.mulf %345, %347 : vector<8x256xf32>
    %349 = arith.truncf %348 : vector<8x256xf32> to vector<8x256xbf16>
    %c136_108 = arith.constant 136 : index
    %c0_109 = arith.constant 0 : index
    %350 = vector.load %arg22[%c136_108, %c0_109] : memref<200x256xbf16, #tpu.memory_space<vmem>>, vector<8x256xbf16>
    tpu.vector_store %arg22[%c136_108, %c0_109], %349 {strides = array<i32>} : memref<200x256xbf16, #tpu.memory_space<vmem>>, vector<8x256xbf16>,
    %351 = vector.extract_strided_slice %241 {offsets = [0, 51], sizes = [8, 256], strides = [1, 1]} : vector<8x324xf32> to vector<8x256xf32>
    %352 = vector.extract_strided_slice %242 {offsets = [3, 0], sizes = [1, 256], strides = [1, 1]} : vector<5x256xf32> to vector<1x256xf32>
    %353 = vector.broadcast %352 : vector<1x256xf32> to vector<8x256xf32>
    %354 = arith.mulf %351, %353 : vector<8x256xf32>
    %355 = arith.truncf %354 : vector<8x256xf32> to vector<8x256xbf16>
    %c144_110 = arith.constant 144 : index
    %c0_111 = arith.constant 0 : index
    %356 = vector.load %arg22[%c144_110, %c0_111] : memref<200x256xbf16, #tpu.memory_space<vmem>>, vector<8x256xbf16>
    tpu.vector_store %arg22[%c144_110, %c0_111], %355 {strides = array<i32>} : memref<200x256xbf16, #tpu.memory_space<vmem>>, vector<8x256xbf16>,
    %357 = vector.extract_strided_slice %241 {offsets = [0, 52], sizes = [8, 256], strides = [1, 1]} : vector<8x324xf32> to vector<8x256xf32>
    %358 = vector.extract_strided_slice %242 {offsets = [4, 0], sizes = [1, 256], strides = [1, 1]} : vector<5x256xf32> to vector<1x256xf32>
    %359 = vector.broadcast %358 : vector<1x256xf32> to vector<8x256xf32>
    %360 = arith.mulf %357, %359 : vector<8x256xf32>
    %361 = arith.truncf %360 : vector<8x256xf32> to vector<8x256xbf16>
    %c152_112 = arith.constant 152 : index
    %c0_113 = arith.constant 0 : index
    %362 = vector.load %arg22[%c152_112, %c0_113] : memref<200x256xbf16, #tpu.memory_space<vmem>>, vector<8x256xbf16>
    tpu.vector_store %arg22[%c152_112, %c0_113], %361 {strides = array<i32>} : memref<200x256xbf16, #tpu.memory_space<vmem>>, vector<8x256xbf16>,
    %363 = vector.extract_strided_slice %241 {offsets = [0, 64], sizes = [8, 256], strides = [1, 1]} : vector<8x324xf32> to vector<8x256xf32>
    %364 = vector.extract_strided_slice %242 {offsets = [0, 0], sizes = [1, 256], strides = [1, 1]} : vector<5x256xf32> to vector<1x256xf32>
    %365 = vector.broadcast %364 : vector<1x256xf32> to vector<8x256xf32>
    %366 = arith.mulf %363, %365 : vector<8x256xf32>
    %367 = arith.truncf %366 : vector<8x256xf32> to vector<8x256xbf16>
    %c160_114 = arith.constant 160 : index
    %c0_115 = arith.constant 0 : index
    %368 = vector.load %arg22[%c160_114, %c0_115] : memref<200x256xbf16, #tpu.memory_space<vmem>>, vector<8x256xbf16>
    tpu.vector_store %arg22[%c160_114, %c0_115], %367 {strides = array<i32>} : memref<200x256xbf16, #tpu.memory_space<vmem>>, vector<8x256xbf16>,
    %369 = vector.extract_strided_slice %241 {offsets = [0, 65], sizes = [8, 256], strides = [1, 1]} : vector<8x324xf32> to vector<8x256xf32>
    %370 = vector.extract_strided_slice %242 {offsets = [1, 0], sizes = [1, 256], strides = [1, 1]} : vector<5x256xf32> to vector<1x256xf32>
    %371 = vector.broadcast %370 : vector<1x256xf32> to vector<8x256xf32>
    %372 = arith.mulf %369, %371 : vector<8x256xf32>
    %373 = arith.truncf %372 : vector<8x256xf32> to vector<8x256xbf16>
    %c168_116 = arith.constant 168 : index
    %c0_117 = arith.constant 0 : index
    %374 = vector.load %arg22[%c168_116, %c0_117] : memref<200x256xbf16, #tpu.memory_space<vmem>>, vector<8x256xbf16>
    tpu.vector_store %arg22[%c168_116, %c0_117], %373 {strides = array<i32>} : memref<200x256xbf16, #tpu.memory_space<vmem>>, vector<8x256xbf16>,
    %375 = vector.extract_strided_slice %241 {offsets = [0, 66], sizes = [8, 256], strides = [1, 1]} : vector<8x324xf32> to vector<8x256xf32>
    %376 = vector.extract_strided_slice %242 {offsets = [2, 0], sizes = [1, 256], strides = [1, 1]} : vector<5x256xf32> to vector<1x256xf32>
    %377 = vector.broadcast %376 : vector<1x256xf32> to vector<8x256xf32>
    %378 = arith.mulf %375, %377 : vector<8x256xf32>
    %379 = arith.truncf %378 : vector<8x256xf32> to vector<8x256xbf16>
    %c176_118 = arith.constant 176 : index
    %c0_119 = arith.constant 0 : index
    %380 = vector.load %arg22[%c176_118, %c0_119] : memref<200x256xbf16, #tpu.memory_space<vmem>>, vector<8x256xbf16>
    tpu.vector_store %arg22[%c176_118, %c0_119], %379 {strides = array<i32>} : memref<200x256xbf16, #tpu.memory_space<vmem>>, vector<8x256xbf16>,
    %381 = vector.extract_strided_slice %241 {offsets = [0, 67], sizes = [8, 256], strides = [1, 1]} : vector<8x324xf32> to vector<8x256xf32>
    %382 = vector.extract_strided_slice %242 {offsets = [3, 0], sizes = [1, 256], strides = [1, 1]} : vector<5x256xf32> to vector<1x256xf32>
    %383 = vector.broadcast %382 : vector<1x256xf32> to vector<8x256xf32>
    %384 = arith.mulf %381, %383 : vector<8x256xf32>
    %385 = arith.truncf %384 : vector<8x256xf32> to vector<8x256xbf16>
    %c184_120 = arith.constant 184 : index
    %c0_121 = arith.constant 0 : index
    %386 = vector.load %arg22[%c184_120, %c0_121] : memref<200x256xbf16, #tpu.memory_space<vmem>>, vector<8x256xbf16>
    tpu.vector_store %arg22[%c184_120, %c0_121], %385 {strides = array<i32>} : memref<200x256xbf16, #tpu.memory_space<vmem>>, vector<8x256xbf16>,
    %387 = vector.extract_strided_slice %241 {offsets = [0, 68], sizes = [8, 256], strides = [1, 1]} : vector<8x324xf32> to vector<8x256xf32>
    %388 = vector.extract_strided_slice %242 {offsets = [4, 0], sizes = [1, 256], strides = [1, 1]} : vector<5x256xf32> to vector<1x256xf32>
    %389 = vector.broadcast %388 : vector<1x256xf32> to vector<8x256xf32>
    %390 = arith.mulf %387, %389 : vector<8x256xf32>
    %391 = arith.truncf %390 : vector<8x256xf32> to vector<8x256xbf16>
    %c192_122 = arith.constant 192 : index
    %c0_123 = arith.constant 0 : index
    %392 = vector.load %arg22[%c192_122, %c0_123] : memref<200x256xbf16, #tpu.memory_space<vmem>>, vector<8x256xbf16>
    tpu.vector_store %arg22[%c192_122, %c0_123], %391 {strides = array<i32>} : memref<200x256xbf16, #tpu.memory_space<vmem>>, vector<8x256xbf16>,
    %c0_124 = arith.constant 0 : index
    %c0_125 = arith.constant 0 : index
    %393 = vector.load %arg7[%c0_124, %c0_125] : memref<8x200xbf16, #tpu.memory_space<vmem>>, vector<8x200xbf16>
    %c0_126 = arith.constant 0 : index
    %c0_127 = arith.constant 0 : index
    %394 = vector.load %arg22[%c0_126, %c0_127] : memref<200x256xbf16, #tpu.memory_space<vmem>>, vector<200x256xbf16>
    %cst_128 = arith.constant dense<0.000000e+00> : vector<8x256xf32>
    %395 = tpu.matmul %393, %394, %cst_128 {dimension_numbers = #tpu.dot_dimension_numbers<[1], [0], [0], [1], [0, 0, 1, 1], [], []>} : vector<8x200xbf16>, vector<200x256xbf16>, vector<8x256xf32> -> vector<8x256xf32>
    %c0_129 = arith.constant 0 : index
    %c0_130 = arith.constant 0 : index
    %396 = vector.load %arg8[%c0_129, %c0_130] : memref<8x1xf32, #tpu.memory_space<vmem>>, vector<8x1xf32>
    %397 = vector.broadcast %396 : vector<8x1xf32> to vector<8x256xf32>
    %398 = arith.addf %395, %397 : vector<8x256xf32>
    %cst_131 = arith.constant 0.000000e+00 : f32
    %399 = vector.broadcast %cst_131 : f32 to vector<8x256xf32>
    %400 = arith.subf %399, %398 : vector<8x256xf32>
    %401 = math.exp %400 : vector<8x256xf32>
    %cst_132 = arith.constant 1.000000e+00 : f32
    %402 = vector.broadcast %cst_132 : f32 to vector<8x256xf32>
    %403 = arith.addf %402, %401 : vector<8x256xf32>
    %cst_133 = arith.constant 1.000000e+00 : f32
    %404 = vector.broadcast %cst_133 : f32 to vector<8x256xf32>
    %405 = arith.divf %404, %403 : vector<8x256xf32>
    %406 = arith.mulf %398, %405 : vector<8x256xf32>
    %407 = arith.addf %72, %406 : vector<8x256xf32>
    %cst_134 = arith.constant 0.000000e+00 : f32
    %408 = vector.broadcast %cst_134 : f32 to vector<8x17xf32>
    %409 = tpu.concatenate %407, %408 in 1 : vector<8x256xf32>, vector<8x17xf32> -> vector<8x273xf32>
    %410 = vector.extract_strided_slice %409 {offsets = [0, 0], sizes = [8, 256], strides = [1, 1]} : vector<8x273xf32> to vector<8x256xf32>
    %411 = vector.extract_strided_slice %409 {offsets = [0, 1], sizes = [8, 256], strides = [1, 1]} : vector<8x273xf32> to vector<8x256xf32>
    %412 = arith.maximumf %410, %411 : vector<8x256xf32>
    %413 = vector.extract_strided_slice %409 {offsets = [0, 16], sizes = [8, 256], strides = [1, 1]} : vector<8x273xf32> to vector<8x256xf32>
    %414 = vector.extract_strided_slice %409 {offsets = [0, 17], sizes = [8, 256], strides = [1, 1]} : vector<8x273xf32> to vector<8x256xf32>
    %415 = arith.maximumf %413, %414 : vector<8x256xf32>
    %416 = arith.maximumf %412, %415 : vector<8x256xf32>
    %c0_135 = arith.constant 0 : index
    %c0_136 = arith.constant 0 : index
    %417 = vector.load %arg10[%c0_135, %c0_136] : memref<256x64xf32, #tpu.memory_space<vmem>>, vector<256x64xf32>
    %cst_137 = arith.constant dense<0.000000e+00> : vector<8x64xf32>
    %418 = tpu.matmul %416, %417, %cst_137 {dimension_numbers = #tpu.dot_dimension_numbers<[1], [0], [0], [1], [0, 0, 1, 1], [], []>} : vector<8x256xf32>, vector<256x64xf32>, vector<8x64xf32> -> vector<8x64xf32>
    %cst_138 = arith.constant 0.000000e+00 : f32
    %419 = vector.broadcast %cst_138 : f32 to vector<8x18xf32>
    %420 = tpu.concatenate %419, %418, %419 in 1 : vector<8x18xf32>, vector<8x64xf32>, vector<8x18xf32> -> vector<8x100xf32>
    %c0_139 = arith.constant 0 : index
    %c0_140 = arith.constant 0 : index
    %421 = vector.load %arg15[%c0_139, %c0_140] : memref<5x64xf32, #tpu.memory_space<vmem>>, vector<5x64xf32>
    %422 = vector.extract_strided_slice %420 {offsets = [0, 0], sizes = [8, 64], strides = [1, 1]} : vector<8x100xf32> to vector<8x64xf32>
    %423 = vector.extract_strided_slice %421 {offsets = [0, 0], sizes = [1, 64], strides = [1, 1]} : vector<5x64xf32> to vector<1x64xf32>
    %424 = vector.broadcast %423 : vector<1x64xf32> to vector<8x64xf32>
    %425 = arith.mulf %422, %424 : vector<8x64xf32>
    %426 = arith.truncf %425 : vector<8x64xf32> to vector<8x64xbf16>
    %c0_141 = arith.constant 0 : index
    %c0_142 = arith.constant 0 : index
    %427 = vector.load %arg22[%c0_141, %c0_142] : memref<200x256xbf16, #tpu.memory_space<vmem>>, vector<8x64xbf16>
    tpu.vector_store %arg22[%c0_141, %c0_142], %426 {strides = array<i32>} : memref<200x256xbf16, #tpu.memory_space<vmem>>, vector<8x64xbf16>,
    %428 = vector.extract_strided_slice %420 {offsets = [0, 1], sizes = [8, 64], strides = [1, 1]} : vector<8x100xf32> to vector<8x64xf32>
    %429 = vector.extract_strided_slice %421 {offsets = [1, 0], sizes = [1, 64], strides = [1, 1]} : vector<5x64xf32> to vector<1x64xf32>
    %430 = vector.broadcast %429 : vector<1x64xf32> to vector<8x64xf32>
    %431 = arith.mulf %428, %430 : vector<8x64xf32>
    %432 = arith.truncf %431 : vector<8x64xf32> to vector<8x64xbf16>
    %c8_143 = arith.constant 8 : index
    %c0_144 = arith.constant 0 : index
    %433 = vector.load %arg22[%c8_143, %c0_144] : memref<200x256xbf16, #tpu.memory_space<vmem>>, vector<8x64xbf16>
    tpu.vector_store %arg22[%c8_143, %c0_144], %432 {strides = array<i32>} : memref<200x256xbf16, #tpu.memory_space<vmem>>, vector<8x64xbf16>,
    %434 = vector.extract_strided_slice %420 {offsets = [0, 2], sizes = [8, 64], strides = [1, 1]} : vector<8x100xf32> to vector<8x64xf32>
    %435 = vector.extract_strided_slice %421 {offsets = [2, 0], sizes = [1, 64], strides = [1, 1]} : vector<5x64xf32> to vector<1x64xf32>
    %436 = vector.broadcast %435 : vector<1x64xf32> to vector<8x64xf32>
    %437 = arith.mulf %434, %436 : vector<8x64xf32>
    %438 = arith.truncf %437 : vector<8x64xf32> to vector<8x64xbf16>
    %c16_145 = arith.constant 16 : index
    %c0_146 = arith.constant 0 : index
    %439 = vector.load %arg22[%c16_145, %c0_146] : memref<200x256xbf16, #tpu.memory_space<vmem>>, vector<8x64xbf16>
    tpu.vector_store %arg22[%c16_145, %c0_146], %438 {strides = array<i32>} : memref<200x256xbf16, #tpu.memory_space<vmem>>, vector<8x64xbf16>,
    %440 = vector.extract_strided_slice %420 {offsets = [0, 3], sizes = [8, 64], strides = [1, 1]} : vector<8x100xf32> to vector<8x64xf32>
    %441 = vector.extract_strided_slice %421 {offsets = [3, 0], sizes = [1, 64], strides = [1, 1]} : vector<5x64xf32> to vector<1x64xf32>
    %442 = vector.broadcast %441 : vector<1x64xf32> to vector<8x64xf32>
    %443 = arith.mulf %440, %442 : vector<8x64xf32>
    %444 = arith.truncf %443 : vector<8x64xf32> to vector<8x64xbf16>
    %c24_147 = arith.constant 24 : index
    %c0_148 = arith.constant 0 : index
    %445 = vector.load %arg22[%c24_147, %c0_148] : memref<200x256xbf16, #tpu.memory_space<vmem>>, vector<8x64xbf16>
    tpu.vector_store %arg22[%c24_147, %c0_148], %444 {strides = array<i32>} : memref<200x256xbf16, #tpu.memory_space<vmem>>, vector<8x64xbf16>,
    %446 = vector.extract_strided_slice %420 {offsets = [0, 4], sizes = [8, 64], strides = [1, 1]} : vector<8x100xf32> to vector<8x64xf32>
    %447 = vector.extract_strided_slice %421 {offsets = [4, 0], sizes = [1, 64], strides = [1, 1]} : vector<5x64xf32> to vector<1x64xf32>
    %448 = vector.broadcast %447 : vector<1x64xf32> to vector<8x64xf32>
    %449 = arith.mulf %446, %448 : vector<8x64xf32>
    %450 = arith.truncf %449 : vector<8x64xf32> to vector<8x64xbf16>
    %c32_149 = arith.constant 32 : index
    %c0_150 = arith.constant 0 : index
    %451 = vector.load %arg22[%c32_149, %c0_150] : memref<200x256xbf16, #tpu.memory_space<vmem>>, vector<8x64xbf16>
    tpu.vector_store %arg22[%c32_149, %c0_150], %450 {strides = array<i32>} : memref<200x256xbf16, #tpu.memory_space<vmem>>, vector<8x64xbf16>,
    %452 = vector.extract_strided_slice %420 {offsets = [0, 8], sizes = [8, 64], strides = [1, 1]} : vector<8x100xf32> to vector<8x64xf32>
    %453 = vector.extract_strided_slice %421 {offsets = [0, 0], sizes = [1, 64], strides = [1, 1]} : vector<5x64xf32> to vector<1x64xf32>
    %454 = vector.broadcast %453 : vector<1x64xf32> to vector<8x64xf32>
    %455 = arith.mulf %452, %454 : vector<8x64xf32>
    %456 = arith.truncf %455 : vector<8x64xf32> to vector<8x64xbf16>
    %c40_151 = arith.constant 40 : index
    %c0_152 = arith.constant 0 : index
    %457 = vector.load %arg22[%c40_151, %c0_152] : memref<200x256xbf16, #tpu.memory_space<vmem>>, vector<8x64xbf16>
    tpu.vector_store %arg22[%c40_151, %c0_152], %456 {strides = array<i32>} : memref<200x256xbf16, #tpu.memory_space<vmem>>, vector<8x64xbf16>,
    %458 = vector.extract_strided_slice %420 {offsets = [0, 9], sizes = [8, 64], strides = [1, 1]} : vector<8x100xf32> to vector<8x64xf32>
    %459 = vector.extract_strided_slice %421 {offsets = [1, 0], sizes = [1, 64], strides = [1, 1]} : vector<5x64xf32> to vector<1x64xf32>
    %460 = vector.broadcast %459 : vector<1x64xf32> to vector<8x64xf32>
    %461 = arith.mulf %458, %460 : vector<8x64xf32>
    %462 = arith.truncf %461 : vector<8x64xf32> to vector<8x64xbf16>
    %c48_153 = arith.constant 48 : index
    %c0_154 = arith.constant 0 : index
    %463 = vector.load %arg22[%c48_153, %c0_154] : memref<200x256xbf16, #tpu.memory_space<vmem>>, vector<8x64xbf16>
    tpu.vector_store %arg22[%c48_153, %c0_154], %462 {strides = array<i32>} : memref<200x256xbf16, #tpu.memory_space<vmem>>, vector<8x64xbf16>,
    %464 = vector.extract_strided_slice %420 {offsets = [0, 10], sizes = [8, 64], strides = [1, 1]} : vector<8x100xf32> to vector<8x64xf32>
    %465 = vector.extract_strided_slice %421 {offsets = [2, 0], sizes = [1, 64], strides = [1, 1]} : vector<5x64xf32> to vector<1x64xf32>
    %466 = vector.broadcast %465 : vector<1x64xf32> to vector<8x64xf32>
    %467 = arith.mulf %464, %466 : vector<8x64xf32>
    %468 = arith.truncf %467 : vector<8x64xf32> to vector<8x64xbf16>
    %c56_155 = arith.constant 56 : index
    %c0_156 = arith.constant 0 : index
    %469 = vector.load %arg22[%c56_155, %c0_156] : memref<200x256xbf16, #tpu.memory_space<vmem>>, vector<8x64xbf16>
    tpu.vector_store %arg22[%c56_155, %c0_156], %468 {strides = array<i32>} : memref<200x256xbf16, #tpu.memory_space<vmem>>, vector<8x64xbf16>,
    %470 = vector.extract_strided_slice %420 {offsets = [0, 11], sizes = [8, 64], strides = [1, 1]} : vector<8x100xf32> to vector<8x64xf32>
    %471 = vector.extract_strided_slice %421 {offsets = [3, 0], sizes = [1, 64], strides = [1, 1]} : vector<5x64xf32> to vector<1x64xf32>
    %472 = vector.broadcast %471 : vector<1x64xf32> to vector<8x64xf32>
    %473 = arith.mulf %470, %472 : vector<8x64xf32>
    %474 = arith.truncf %473 : vector<8x64xf32> to vector<8x64xbf16>
    %c64_157 = arith.constant 64 : index
    %c0_158 = arith.constant 0 : index
    %475 = vector.load %arg22[%c64_157, %c0_158] : memref<200x256xbf16, #tpu.memory_space<vmem>>, vector<8x64xbf16>
    tpu.vector_store %arg22[%c64_157, %c0_158], %474 {strides = array<i32>} : memref<200x256xbf16, #tpu.memory_space<vmem>>, vector<8x64xbf16>,
    %476 = vector.extract_strided_slice %420 {offsets = [0, 12], sizes = [8, 64], strides = [1, 1]} : vector<8x100xf32> to vector<8x64xf32>
    %477 = vector.extract_strided_slice %421 {offsets = [4, 0], sizes = [1, 64], strides = [1, 1]} : vector<5x64xf32> to vector<1x64xf32>
    %478 = vector.broadcast %477 : vector<1x64xf32> to vector<8x64xf32>
    %479 = arith.mulf %476, %478 : vector<8x64xf32>
    %480 = arith.truncf %479 : vector<8x64xf32> to vector<8x64xbf16>
    %c72_159 = arith.constant 72 : index
    %c0_160 = arith.constant 0 : index
    %481 = vector.load %arg22[%c72_159, %c0_160] : memref<200x256xbf16, #tpu.memory_space<vmem>>, vector<8x64xbf16>
    tpu.vector_store %arg22[%c72_159, %c0_160], %480 {strides = array<i32>} : memref<200x256xbf16, #tpu.memory_space<vmem>>, vector<8x64xbf16>,
    %482 = vector.extract_strided_slice %420 {offsets = [0, 16], sizes = [8, 64], strides = [1, 1]} : vector<8x100xf32> to vector<8x64xf32>
    %483 = vector.extract_strided_slice %421 {offsets = [0, 0], sizes = [1, 64], strides = [1, 1]} : vector<5x64xf32> to vector<1x64xf32>
    %484 = vector.broadcast %483 : vector<1x64xf32> to vector<8x64xf32>
    %485 = arith.mulf %482, %484 : vector<8x64xf32>
    %486 = arith.truncf %485 : vector<8x64xf32> to vector<8x64xbf16>
    %c80_161 = arith.constant 80 : index
    %c0_162 = arith.constant 0 : index
    %487 = vector.load %arg22[%c80_161, %c0_162] : memref<200x256xbf16, #tpu.memory_space<vmem>>, vector<8x64xbf16>
    tpu.vector_store %arg22[%c80_161, %c0_162], %486 {strides = array<i32>} : memref<200x256xbf16, #tpu.memory_space<vmem>>, vector<8x64xbf16>,
    %488 = vector.extract_strided_slice %420 {offsets = [0, 17], sizes = [8, 64], strides = [1, 1]} : vector<8x100xf32> to vector<8x64xf32>
    %489 = vector.extract_strided_slice %421 {offsets = [1, 0], sizes = [1, 64], strides = [1, 1]} : vector<5x64xf32> to vector<1x64xf32>
    %490 = vector.broadcast %489 : vector<1x64xf32> to vector<8x64xf32>
    %491 = arith.mulf %488, %490 : vector<8x64xf32>
    %492 = arith.truncf %491 : vector<8x64xf32> to vector<8x64xbf16>
    %c88_163 = arith.constant 88 : index
    %c0_164 = arith.constant 0 : index
    %493 = vector.load %arg22[%c88_163, %c0_164] : memref<200x256xbf16, #tpu.memory_space<vmem>>, vector<8x64xbf16>
    tpu.vector_store %arg22[%c88_163, %c0_164], %492 {strides = array<i32>} : memref<200x256xbf16, #tpu.memory_space<vmem>>, vector<8x64xbf16>,
    %494 = vector.extract_strided_slice %420 {offsets = [0, 18], sizes = [8, 64], strides = [1, 1]} : vector<8x100xf32> to vector<8x64xf32>
    %495 = vector.extract_strided_slice %421 {offsets = [2, 0], sizes = [1, 64], strides = [1, 1]} : vector<5x64xf32> to vector<1x64xf32>
    %496 = vector.broadcast %495 : vector<1x64xf32> to vector<8x64xf32>
    %497 = arith.mulf %494, %496 : vector<8x64xf32>
    %498 = arith.truncf %497 : vector<8x64xf32> to vector<8x64xbf16>
    %c96_165 = arith.constant 96 : index
    %c0_166 = arith.constant 0 : index
    %499 = vector.load %arg22[%c96_165, %c0_166] : memref<200x256xbf16, #tpu.memory_space<vmem>>, vector<8x64xbf16>
    tpu.vector_store %arg22[%c96_165, %c0_166], %498 {strides = array<i32>} : memref<200x256xbf16, #tpu.memory_space<vmem>>, vector<8x64xbf16>,
    %500 = vector.extract_strided_slice %420 {offsets = [0, 19], sizes = [8, 64], strides = [1, 1]} : vector<8x100xf32> to vector<8x64xf32>
    %501 = vector.extract_strided_slice %421 {offsets = [3, 0], sizes = [1, 64], strides = [1, 1]} : vector<5x64xf32> to vector<1x64xf32>
    %502 = vector.broadcast %501 : vector<1x64xf32> to vector<8x64xf32>
    %503 = arith.mulf %500, %502 : vector<8x64xf32>
    %504 = arith.truncf %503 : vector<8x64xf32> to vector<8x64xbf16>
    %c104_167 = arith.constant 104 : index
    %c0_168 = arith.constant 0 : index
    %505 = vector.load %arg22[%c104_167, %c0_168] : memref<200x256xbf16, #tpu.memory_space<vmem>>, vector<8x64xbf16>
    tpu.vector_store %arg22[%c104_167, %c0_168], %504 {strides = array<i32>} : memref<200x256xbf16, #tpu.memory_space<vmem>>, vector<8x64xbf16>,
    %506 = vector.extract_strided_slice %420 {offsets = [0, 20], sizes = [8, 64], strides = [1, 1]} : vector<8x100xf32> to vector<8x64xf32>
    %507 = vector.extract_strided_slice %421 {offsets = [4, 0], sizes = [1, 64], strides = [1, 1]} : vector<5x64xf32> to vector<1x64xf32>
    %508 = vector.broadcast %507 : vector<1x64xf32> to vector<8x64xf32>
    %509 = arith.mulf %506, %508 : vector<8x64xf32>
    %510 = arith.truncf %509 : vector<8x64xf32> to vector<8x64xbf16>
    %c112_169 = arith.constant 112 : index
    %c0_170 = arith.constant 0 : index
    %511 = vector.load %arg22[%c112_169, %c0_170] : memref<200x256xbf16, #tpu.memory_space<vmem>>, vector<8x64xbf16>
    tpu.vector_store %arg22[%c112_169, %c0_170], %510 {strides = array<i32>} : memref<200x256xbf16, #tpu.memory_space<vmem>>, vector<8x64xbf16>,
    %512 = vector.extract_strided_slice %420 {offsets = [0, 24], sizes = [8, 64], strides = [1, 1]} : vector<8x100xf32> to vector<8x64xf32>
    %513 = vector.extract_strided_slice %421 {offsets = [0, 0], sizes = [1, 64], strides = [1, 1]} : vector<5x64xf32> to vector<1x64xf32>
    %514 = vector.broadcast %513 : vector<1x64xf32> to vector<8x64xf32>
    %515 = arith.mulf %512, %514 : vector<8x64xf32>
    %516 = arith.truncf %515 : vector<8x64xf32> to vector<8x64xbf16>
    %c120_171 = arith.constant 120 : index
    %c0_172 = arith.constant 0 : index
    %517 = vector.load %arg22[%c120_171, %c0_172] : memref<200x256xbf16, #tpu.memory_space<vmem>>, vector<8x64xbf16>
    tpu.vector_store %arg22[%c120_171, %c0_172], %516 {strides = array<i32>} : memref<200x256xbf16, #tpu.memory_space<vmem>>, vector<8x64xbf16>,
    %518 = vector.extract_strided_slice %420 {offsets = [0, 25], sizes = [8, 64], strides = [1, 1]} : vector<8x100xf32> to vector<8x64xf32>
    %519 = vector.extract_strided_slice %421 {offsets = [1, 0], sizes = [1, 64], strides = [1, 1]} : vector<5x64xf32> to vector<1x64xf32>
    %520 = vector.broadcast %519 : vector<1x64xf32> to vector<8x64xf32>
    %521 = arith.mulf %518, %520 : vector<8x64xf32>
    %522 = arith.truncf %521 : vector<8x64xf32> to vector<8x64xbf16>
    %c128_173 = arith.constant 128 : index
    %c0_174 = arith.constant 0 : index
    %523 = vector.load %arg22[%c128_173, %c0_174] : memref<200x256xbf16, #tpu.memory_space<vmem>>, vector<8x64xbf16>
    tpu.vector_store %arg22[%c128_173, %c0_174], %522 {strides = array<i32>} : memref<200x256xbf16, #tpu.memory_space<vmem>>, vector<8x64xbf16>,
    %524 = vector.extract_strided_slice %420 {offsets = [0, 26], sizes = [8, 64], strides = [1, 1]} : vector<8x100xf32> to vector<8x64xf32>
    %525 = vector.extract_strided_slice %421 {offsets = [2, 0], sizes = [1, 64], strides = [1, 1]} : vector<5x64xf32> to vector<1x64xf32>
    %526 = vector.broadcast %525 : vector<1x64xf32> to vector<8x64xf32>
    %527 = arith.mulf %524, %526 : vector<8x64xf32>
    %528 = arith.truncf %527 : vector<8x64xf32> to vector<8x64xbf16>
    %c136_175 = arith.constant 136 : index
    %c0_176 = arith.constant 0 : index
    %529 = vector.load %arg22[%c136_175, %c0_176] : memref<200x256xbf16, #tpu.memory_space<vmem>>, vector<8x64xbf16>
    tpu.vector_store %arg22[%c136_175, %c0_176], %528 {strides = array<i32>} : memref<200x256xbf16, #tpu.memory_space<vmem>>, vector<8x64xbf16>,
    %530 = vector.extract_strided_slice %420 {offsets = [0, 27], sizes = [8, 64], strides = [1, 1]} : vector<8x100xf32> to vector<8x64xf32>
    %531 = vector.extract_strided_slice %421 {offsets = [3, 0], sizes = [1, 64], strides = [1, 1]} : vector<5x64xf32> to vector<1x64xf32>
    %532 = vector.broadcast %531 : vector<1x64xf32> to vector<8x64xf32>
    %533 = arith.mulf %530, %532 : vector<8x64xf32>
    %534 = arith.truncf %533 : vector<8x64xf32> to vector<8x64xbf16>
    %c144_177 = arith.constant 144 : index
    %c0_178 = arith.constant 0 : index
    %535 = vector.load %arg22[%c144_177, %c0_178] : memref<200x256xbf16, #tpu.memory_space<vmem>>, vector<8x64xbf16>
    tpu.vector_store %arg22[%c144_177, %c0_178], %534 {strides = array<i32>} : memref<200x256xbf16, #tpu.memory_space<vmem>>, vector<8x64xbf16>,
    %536 = vector.extract_strided_slice %420 {offsets = [0, 28], sizes = [8, 64], strides = [1, 1]} : vector<8x100xf32> to vector<8x64xf32>
    %537 = vector.extract_strided_slice %421 {offsets = [4, 0], sizes = [1, 64], strides = [1, 1]} : vector<5x64xf32> to vector<1x64xf32>
    %538 = vector.broadcast %537 : vector<1x64xf32> to vector<8x64xf32>
    %539 = arith.mulf %536, %538 : vector<8x64xf32>
    %540 = arith.truncf %539 : vector<8x64xf32> to vector<8x64xbf16>
    %c152_179 = arith.constant 152 : index
    %c0_180 = arith.constant 0 : index
    %541 = vector.load %arg22[%c152_179, %c0_180] : memref<200x256xbf16, #tpu.memory_space<vmem>>, vector<8x64xbf16>
    tpu.vector_store %arg22[%c152_179, %c0_180], %540 {strides = array<i32>} : memref<200x256xbf16, #tpu.memory_space<vmem>>, vector<8x64xbf16>,
    %542 = vector.extract_strided_slice %420 {offsets = [0, 32], sizes = [8, 64], strides = [1, 1]} : vector<8x100xf32> to vector<8x64xf32>
    %543 = vector.extract_strided_slice %421 {offsets = [0, 0], sizes = [1, 64], strides = [1, 1]} : vector<5x64xf32> to vector<1x64xf32>
    %544 = vector.broadcast %543 : vector<1x64xf32> to vector<8x64xf32>
    %545 = arith.mulf %542, %544 : vector<8x64xf32>
    %546 = arith.truncf %545 : vector<8x64xf32> to vector<8x64xbf16>
    %c160_181 = arith.constant 160 : index
    %c0_182 = arith.constant 0 : index
    %547 = vector.load %arg22[%c160_181, %c0_182] : memref<200x256xbf16, #tpu.memory_space<vmem>>, vector<8x64xbf16>
    tpu.vector_store %arg22[%c160_181, %c0_182], %546 {strides = array<i32>} : memref<200x256xbf16, #tpu.memory_space<vmem>>, vector<8x64xbf16>,
    %548 = vector.extract_strided_slice %420 {offsets = [0, 33], sizes = [8, 64], strides = [1, 1]} : vector<8x100xf32> to vector<8x64xf32>
    %549 = vector.extract_strided_slice %421 {offsets = [1, 0], sizes = [1, 64], strides = [1, 1]} : vector<5x64xf32> to vector<1x64xf32>
    %550 = vector.broadcast %549 : vector<1x64xf32> to vector<8x64xf32>
    %551 = arith.mulf %548, %550 : vector<8x64xf32>
    %552 = arith.truncf %551 : vector<8x64xf32> to vector<8x64xbf16>
    %c168_183 = arith.constant 168 : index
    %c0_184 = arith.constant 0 : index
    %553 = vector.load %arg22[%c168_183, %c0_184] : memref<200x256xbf16, #tpu.memory_space<vmem>>, vector<8x64xbf16>
    tpu.vector_store %arg22[%c168_183, %c0_184], %552 {strides = array<i32>} : memref<200x256xbf16, #tpu.memory_space<vmem>>, vector<8x64xbf16>,
    %554 = vector.extract_strided_slice %420 {offsets = [0, 34], sizes = [8, 64], strides = [1, 1]} : vector<8x100xf32> to vector<8x64xf32>
    %555 = vector.extract_strided_slice %421 {offsets = [2, 0], sizes = [1, 64], strides = [1, 1]} : vector<5x64xf32> to vector<1x64xf32>
    %556 = vector.broadcast %555 : vector<1x64xf32> to vector<8x64xf32>
    %557 = arith.mulf %554, %556 : vector<8x64xf32>
    %558 = arith.truncf %557 : vector<8x64xf32> to vector<8x64xbf16>
    %c176_185 = arith.constant 176 : index
    %c0_186 = arith.constant 0 : index
    %559 = vector.load %arg22[%c176_185, %c0_186] : memref<200x256xbf16, #tpu.memory_space<vmem>>, vector<8x64xbf16>
    tpu.vector_store %arg22[%c176_185, %c0_186], %558 {strides = array<i32>} : memref<200x256xbf16, #tpu.memory_space<vmem>>, vector<8x64xbf16>,
    %560 = vector.extract_strided_slice %420 {offsets = [0, 35], sizes = [8, 64], strides = [1, 1]} : vector<8x100xf32> to vector<8x64xf32>
    %561 = vector.extract_strided_slice %421 {offsets = [3, 0], sizes = [1, 64], strides = [1, 1]} : vector<5x64xf32> to vector<1x64xf32>
    %562 = vector.broadcast %561 : vector<1x64xf32> to vector<8x64xf32>
    %563 = arith.mulf %560, %562 : vector<8x64xf32>
    %564 = arith.truncf %563 : vector<8x64xf32> to vector<8x64xbf16>
    %c184_187 = arith.constant 184 : index
    %c0_188 = arith.constant 0 : index
    %565 = vector.load %arg22[%c184_187, %c0_188] : memref<200x256xbf16, #tpu.memory_space<vmem>>, vector<8x64xbf16>
    tpu.vector_store %arg22[%c184_187, %c0_188], %564 {strides = array<i32>} : memref<200x256xbf16, #tpu.memory_space<vmem>>, vector<8x64xbf16>,
    %566 = vector.extract_strided_slice %420 {offsets = [0, 36], sizes = [8, 64], strides = [1, 1]} : vector<8x100xf32> to vector<8x64xf32>
    %567 = vector.extract_strided_slice %421 {offsets = [4, 0], sizes = [1, 64], strides = [1, 1]} : vector<5x64xf32> to vector<1x64xf32>
    %568 = vector.broadcast %567 : vector<1x64xf32> to vector<8x64xf32>
    %569 = arith.mulf %566, %568 : vector<8x64xf32>
    %570 = arith.truncf %569 : vector<8x64xf32> to vector<8x64xbf16>
    %c192_189 = arith.constant 192 : index
    %c0_190 = arith.constant 0 : index
    %571 = vector.load %arg22[%c192_189, %c0_190] : memref<200x256xbf16, #tpu.memory_space<vmem>>, vector<8x64xbf16>
    tpu.vector_store %arg22[%c192_189, %c0_190], %570 {strides = array<i32>} : memref<200x256xbf16, #tpu.memory_space<vmem>>, vector<8x64xbf16>,
    %c0_191 = arith.constant 0 : index
    %c0_192 = arith.constant 0 : index
    %572 = vector.load %arg11[%c0_191, %c0_192] : memref<8x200xbf16, #tpu.memory_space<vmem>>, vector<8x200xbf16>
    %c0_193 = arith.constant 0 : index
    %c0_194 = arith.constant 0 : index
    %573 = vector.load %arg22[%c0_193, %c0_194] : memref<200x256xbf16, #tpu.memory_space<vmem>>, vector<200x64xbf16>
    %cst_195 = arith.constant dense<0.000000e+00> : vector<8x64xf32>
    %574 = tpu.matmul %572, %573, %cst_195 {dimension_numbers = #tpu.dot_dimension_numbers<[1], [0], [0], [1], [0, 0, 1, 1], [], []>} : vector<8x200xbf16>, vector<200x64xbf16>, vector<8x64xf32> -> vector<8x64xf32>
    %c0_196 = arith.constant 0 : index
    %c0_197 = arith.constant 0 : index
    %575 = vector.load %arg12[%c0_196, %c0_197] : memref<8x1xf32, #tpu.memory_space<vmem>>, vector<8x1xf32>
    %576 = vector.broadcast %575 : vector<8x1xf32> to vector<8x64xf32>
    %577 = arith.addf %574, %576 : vector<8x64xf32>
    %cst_198 = arith.constant 0.000000e+00 : f32
    %578 = vector.broadcast %cst_198 : f32 to vector<8x64xf32>
    %579 = arith.subf %578, %577 : vector<8x64xf32>
    %580 = math.exp %579 : vector<8x64xf32>
    %cst_199 = arith.constant 1.000000e+00 : f32
    %581 = vector.broadcast %cst_199 : f32 to vector<8x64xf32>
    %582 = arith.addf %581, %580 : vector<8x64xf32>
    %cst_200 = arith.constant 1.000000e+00 : f32
    %583 = vector.broadcast %cst_200 : f32 to vector<8x64xf32>
    %584 = arith.divf %583, %582 : vector<8x64xf32>
    %585 = arith.mulf %577, %584 : vector<8x64xf32>
    %cst_201 = arith.constant 0.000000e+00 : f32
    %586 = vector.broadcast %cst_201 : f32 to vector<8x18xf32>
    %587 = tpu.concatenate %586, %585, %586 in 1 : vector<8x18xf32>, vector<8x64xf32>, vector<8x18xf32> -> vector<8x100xf32>
    %c0_202 = arith.constant 0 : index
    %c0_203 = arith.constant 0 : index
    %588 = vector.load %arg15[%c0_202, %c0_203] : memref<5x64xf32, #tpu.memory_space<vmem>>, vector<5x64xf32>
    %589 = vector.extract_strided_slice %587 {offsets = [0, 0], sizes = [8, 64], strides = [1, 1]} : vector<8x100xf32> to vector<8x64xf32>
    %590 = vector.extract_strided_slice %588 {offsets = [0, 0], sizes = [1, 64], strides = [1, 1]} : vector<5x64xf32> to vector<1x64xf32>
    %591 = vector.broadcast %590 : vector<1x64xf32> to vector<8x64xf32>
    %592 = arith.mulf %589, %591 : vector<8x64xf32>
    %593 = arith.truncf %592 : vector<8x64xf32> to vector<8x64xbf16>
    %c0_204 = arith.constant 0 : index
    %c0_205 = arith.constant 0 : index
    %594 = vector.load %arg22[%c0_204, %c0_205] : memref<200x256xbf16, #tpu.memory_space<vmem>>, vector<8x64xbf16>
    tpu.vector_store %arg22[%c0_204, %c0_205], %593 {strides = array<i32>} : memref<200x256xbf16, #tpu.memory_space<vmem>>, vector<8x64xbf16>,
    %595 = vector.extract_strided_slice %587 {offsets = [0, 1], sizes = [8, 64], strides = [1, 1]} : vector<8x100xf32> to vector<8x64xf32>
    %596 = vector.extract_strided_slice %588 {offsets = [1, 0], sizes = [1, 64], strides = [1, 1]} : vector<5x64xf32> to vector<1x64xf32>
    %597 = vector.broadcast %596 : vector<1x64xf32> to vector<8x64xf32>
    %598 = arith.mulf %595, %597 : vector<8x64xf32>
    %599 = arith.truncf %598 : vector<8x64xf32> to vector<8x64xbf16>
    %c8_206 = arith.constant 8 : index
    %c0_207 = arith.constant 0 : index
    %600 = vector.load %arg22[%c8_206, %c0_207] : memref<200x256xbf16, #tpu.memory_space<vmem>>, vector<8x64xbf16>
    tpu.vector_store %arg22[%c8_206, %c0_207], %599 {strides = array<i32>} : memref<200x256xbf16, #tpu.memory_space<vmem>>, vector<8x64xbf16>,
    %601 = vector.extract_strided_slice %587 {offsets = [0, 2], sizes = [8, 64], strides = [1, 1]} : vector<8x100xf32> to vector<8x64xf32>
    %602 = vector.extract_strided_slice %588 {offsets = [2, 0], sizes = [1, 64], strides = [1, 1]} : vector<5x64xf32> to vector<1x64xf32>
    %603 = vector.broadcast %602 : vector<1x64xf32> to vector<8x64xf32>
    %604 = arith.mulf %601, %603 : vector<8x64xf32>
    %605 = arith.truncf %604 : vector<8x64xf32> to vector<8x64xbf16>
    %c16_208 = arith.constant 16 : index
    %c0_209 = arith.constant 0 : index
    %606 = vector.load %arg22[%c16_208, %c0_209] : memref<200x256xbf16, #tpu.memory_space<vmem>>, vector<8x64xbf16>
    tpu.vector_store %arg22[%c16_208, %c0_209], %605 {strides = array<i32>} : memref<200x256xbf16, #tpu.memory_space<vmem>>, vector<8x64xbf16>,
    %607 = vector.extract_strided_slice %587 {offsets = [0, 3], sizes = [8, 64], strides = [1, 1]} : vector<8x100xf32> to vector<8x64xf32>
    %608 = vector.extract_strided_slice %588 {offsets = [3, 0], sizes = [1, 64], strides = [1, 1]} : vector<5x64xf32> to vector<1x64xf32>
    %609 = vector.broadcast %608 : vector<1x64xf32> to vector<8x64xf32>
    %610 = arith.mulf %607, %609 : vector<8x64xf32>
    %611 = arith.truncf %610 : vector<8x64xf32> to vector<8x64xbf16>
    %c24_210 = arith.constant 24 : index
    %c0_211 = arith.constant 0 : index
    %612 = vector.load %arg22[%c24_210, %c0_211] : memref<200x256xbf16, #tpu.memory_space<vmem>>, vector<8x64xbf16>
    tpu.vector_store %arg22[%c24_210, %c0_211], %611 {strides = array<i32>} : memref<200x256xbf16, #tpu.memory_space<vmem>>, vector<8x64xbf16>,
    %613 = vector.extract_strided_slice %587 {offsets = [0, 4], sizes = [8, 64], strides = [1, 1]} : vector<8x100xf32> to vector<8x64xf32>
    %614 = vector.extract_strided_slice %588 {offsets = [4, 0], sizes = [1, 64], strides = [1, 1]} : vector<5x64xf32> to vector<1x64xf32>
    %615 = vector.broadcast %614 : vector<1x64xf32> to vector<8x64xf32>
    %616 = arith.mulf %613, %615 : vector<8x64xf32>
    %617 = arith.truncf %616 : vector<8x64xf32> to vector<8x64xbf16>
    %c32_212 = arith.constant 32 : index
    %c0_213 = arith.constant 0 : index
    %618 = vector.load %arg22[%c32_212, %c0_213] : memref<200x256xbf16, #tpu.memory_space<vmem>>, vector<8x64xbf16>
    tpu.vector_store %arg22[%c32_212, %c0_213], %617 {strides = array<i32>} : memref<200x256xbf16, #tpu.memory_space<vmem>>, vector<8x64xbf16>,
    %619 = vector.extract_strided_slice %587 {offsets = [0, 8], sizes = [8, 64], strides = [1, 1]} : vector<8x100xf32> to vector<8x64xf32>
    %620 = vector.extract_strided_slice %588 {offsets = [0, 0], sizes = [1, 64], strides = [1, 1]} : vector<5x64xf32> to vector<1x64xf32>
    %621 = vector.broadcast %620 : vector<1x64xf32> to vector<8x64xf32>
    %622 = arith.mulf %619, %621 : vector<8x64xf32>
    %623 = arith.truncf %622 : vector<8x64xf32> to vector<8x64xbf16>
    %c40_214 = arith.constant 40 : index
    %c0_215 = arith.constant 0 : index
    %624 = vector.load %arg22[%c40_214, %c0_215] : memref<200x256xbf16, #tpu.memory_space<vmem>>, vector<8x64xbf16>
    tpu.vector_store %arg22[%c40_214, %c0_215], %623 {strides = array<i32>} : memref<200x256xbf16, #tpu.memory_space<vmem>>, vector<8x64xbf16>,
    %625 = vector.extract_strided_slice %587 {offsets = [0, 9], sizes = [8, 64], strides = [1, 1]} : vector<8x100xf32> to vector<8x64xf32>
    %626 = vector.extract_strided_slice %588 {offsets = [1, 0], sizes = [1, 64], strides = [1, 1]} : vector<5x64xf32> to vector<1x64xf32>
    %627 = vector.broadcast %626 : vector<1x64xf32> to vector<8x64xf32>
    %628 = arith.mulf %625, %627 : vector<8x64xf32>
    %629 = arith.truncf %628 : vector<8x64xf32> to vector<8x64xbf16>
    %c48_216 = arith.constant 48 : index
    %c0_217 = arith.constant 0 : index
    %630 = vector.load %arg22[%c48_216, %c0_217] : memref<200x256xbf16, #tpu.memory_space<vmem>>, vector<8x64xbf16>
    tpu.vector_store %arg22[%c48_216, %c0_217], %629 {strides = array<i32>} : memref<200x256xbf16, #tpu.memory_space<vmem>>, vector<8x64xbf16>,
    %631 = vector.extract_strided_slice %587 {offsets = [0, 10], sizes = [8, 64], strides = [1, 1]} : vector<8x100xf32> to vector<8x64xf32>
    %632 = vector.extract_strided_slice %588 {offsets = [2, 0], sizes = [1, 64], strides = [1, 1]} : vector<5x64xf32> to vector<1x64xf32>
    %633 = vector.broadcast %632 : vector<1x64xf32> to vector<8x64xf32>
    %634 = arith.mulf %631, %633 : vector<8x64xf32>
    %635 = arith.truncf %634 : vector<8x64xf32> to vector<8x64xbf16>
    %c56_218 = arith.constant 56 : index
    %c0_219 = arith.constant 0 : index
    %636 = vector.load %arg22[%c56_218, %c0_219] : memref<200x256xbf16, #tpu.memory_space<vmem>>, vector<8x64xbf16>
    tpu.vector_store %arg22[%c56_218, %c0_219], %635 {strides = array<i32>} : memref<200x256xbf16, #tpu.memory_space<vmem>>, vector<8x64xbf16>,
    %637 = vector.extract_strided_slice %587 {offsets = [0, 11], sizes = [8, 64], strides = [1, 1]} : vector<8x100xf32> to vector<8x64xf32>
    %638 = vector.extract_strided_slice %588 {offsets = [3, 0], sizes = [1, 64], strides = [1, 1]} : vector<5x64xf32> to vector<1x64xf32>
    %639 = vector.broadcast %638 : vector<1x64xf32> to vector<8x64xf32>
    %640 = arith.mulf %637, %639 : vector<8x64xf32>
    %641 = arith.truncf %640 : vector<8x64xf32> to vector<8x64xbf16>
    %c64_220 = arith.constant 64 : index
    %c0_221 = arith.constant 0 : index
    %642 = vector.load %arg22[%c64_220, %c0_221] : memref<200x256xbf16, #tpu.memory_space<vmem>>, vector<8x64xbf16>
    tpu.vector_store %arg22[%c64_220, %c0_221], %641 {strides = array<i32>} : memref<200x256xbf16, #tpu.memory_space<vmem>>, vector<8x64xbf16>,
    %643 = vector.extract_strided_slice %587 {offsets = [0, 12], sizes = [8, 64], strides = [1, 1]} : vector<8x100xf32> to vector<8x64xf32>
    %644 = vector.extract_strided_slice %588 {offsets = [4, 0], sizes = [1, 64], strides = [1, 1]} : vector<5x64xf32> to vector<1x64xf32>
    %645 = vector.broadcast %644 : vector<1x64xf32> to vector<8x64xf32>
    %646 = arith.mulf %643, %645 : vector<8x64xf32>
    %647 = arith.truncf %646 : vector<8x64xf32> to vector<8x64xbf16>
    %c72_222 = arith.constant 72 : index
    %c0_223 = arith.constant 0 : index
    %648 = vector.load %arg22[%c72_222, %c0_223] : memref<200x256xbf16, #tpu.memory_space<vmem>>, vector<8x64xbf16>
    tpu.vector_store %arg22[%c72_222, %c0_223], %647 {strides = array<i32>} : memref<200x256xbf16, #tpu.memory_space<vmem>>, vector<8x64xbf16>,
    %649 = vector.extract_strided_slice %587 {offsets = [0, 16], sizes = [8, 64], strides = [1, 1]} : vector<8x100xf32> to vector<8x64xf32>
    %650 = vector.extract_strided_slice %588 {offsets = [0, 0], sizes = [1, 64], strides = [1, 1]} : vector<5x64xf32> to vector<1x64xf32>
    %651 = vector.broadcast %650 : vector<1x64xf32> to vector<8x64xf32>
    %652 = arith.mulf %649, %651 : vector<8x64xf32>
    %653 = arith.truncf %652 : vector<8x64xf32> to vector<8x64xbf16>
    %c80_224 = arith.constant 80 : index
    %c0_225 = arith.constant 0 : index
    %654 = vector.load %arg22[%c80_224, %c0_225] : memref<200x256xbf16, #tpu.memory_space<vmem>>, vector<8x64xbf16>
    tpu.vector_store %arg22[%c80_224, %c0_225], %653 {strides = array<i32>} : memref<200x256xbf16, #tpu.memory_space<vmem>>, vector<8x64xbf16>,
    %655 = vector.extract_strided_slice %587 {offsets = [0, 17], sizes = [8, 64], strides = [1, 1]} : vector<8x100xf32> to vector<8x64xf32>
    %656 = vector.extract_strided_slice %588 {offsets = [1, 0], sizes = [1, 64], strides = [1, 1]} : vector<5x64xf32> to vector<1x64xf32>
    %657 = vector.broadcast %656 : vector<1x64xf32> to vector<8x64xf32>
    %658 = arith.mulf %655, %657 : vector<8x64xf32>
    %659 = arith.truncf %658 : vector<8x64xf32> to vector<8x64xbf16>
    %c88_226 = arith.constant 88 : index
    %c0_227 = arith.constant 0 : index
    %660 = vector.load %arg22[%c88_226, %c0_227] : memref<200x256xbf16, #tpu.memory_space<vmem>>, vector<8x64xbf16>
    tpu.vector_store %arg22[%c88_226, %c0_227], %659 {strides = array<i32>} : memref<200x256xbf16, #tpu.memory_space<vmem>>, vector<8x64xbf16>,
    %661 = vector.extract_strided_slice %587 {offsets = [0, 18], sizes = [8, 64], strides = [1, 1]} : vector<8x100xf32> to vector<8x64xf32>
    %662 = vector.extract_strided_slice %588 {offsets = [2, 0], sizes = [1, 64], strides = [1, 1]} : vector<5x64xf32> to vector<1x64xf32>
    %663 = vector.broadcast %662 : vector<1x64xf32> to vector<8x64xf32>
    %664 = arith.mulf %661, %663 : vector<8x64xf32>
    %665 = arith.truncf %664 : vector<8x64xf32> to vector<8x64xbf16>
    %c96_228 = arith.constant 96 : index
    %c0_229 = arith.constant 0 : index
    %666 = vector.load %arg22[%c96_228, %c0_229] : memref<200x256xbf16, #tpu.memory_space<vmem>>, vector<8x64xbf16>
    tpu.vector_store %arg22[%c96_228, %c0_229], %665 {strides = array<i32>} : memref<200x256xbf16, #tpu.memory_space<vmem>>, vector<8x64xbf16>,
    %667 = vector.extract_strided_slice %587 {offsets = [0, 19], sizes = [8, 64], strides = [1, 1]} : vector<8x100xf32> to vector<8x64xf32>
    %668 = vector.extract_strided_slice %588 {offsets = [3, 0], sizes = [1, 64], strides = [1, 1]} : vector<5x64xf32> to vector<1x64xf32>
    %669 = vector.broadcast %668 : vector<1x64xf32> to vector<8x64xf32>
    %670 = arith.mulf %667, %669 : vector<8x64xf32>
    %671 = arith.truncf %670 : vector<8x64xf32> to vector<8x64xbf16>
    %c104_230 = arith.constant 104 : index
    %c0_231 = arith.constant 0 : index
    %672 = vector.load %arg22[%c104_230, %c0_231] : memref<200x256xbf16, #tpu.memory_space<vmem>>, vector<8x64xbf16>
    tpu.vector_store %arg22[%c104_230, %c0_231], %671 {strides = array<i32>} : memref<200x256xbf16, #tpu.memory_space<vmem>>, vector<8x64xbf16>,
    %673 = vector.extract_strided_slice %587 {offsets = [0, 20], sizes = [8, 64], strides = [1, 1]} : vector<8x100xf32> to vector<8x64xf32>
    %674 = vector.extract_strided_slice %588 {offsets = [4, 0], sizes = [1, 64], strides = [1, 1]} : vector<5x64xf32> to vector<1x64xf32>
    %675 = vector.broadcast %674 : vector<1x64xf32> to vector<8x64xf32>
    %676 = arith.mulf %673, %675 : vector<8x64xf32>
    %677 = arith.truncf %676 : vector<8x64xf32> to vector<8x64xbf16>
    %c112_232 = arith.constant 112 : index
    %c0_233 = arith.constant 0 : index
    %678 = vector.load %arg22[%c112_232, %c0_233] : memref<200x256xbf16, #tpu.memory_space<vmem>>, vector<8x64xbf16>
    tpu.vector_store %arg22[%c112_232, %c0_233], %677 {strides = array<i32>} : memref<200x256xbf16, #tpu.memory_space<vmem>>, vector<8x64xbf16>,
    %679 = vector.extract_strided_slice %587 {offsets = [0, 24], sizes = [8, 64], strides = [1, 1]} : vector<8x100xf32> to vector<8x64xf32>
    %680 = vector.extract_strided_slice %588 {offsets = [0, 0], sizes = [1, 64], strides = [1, 1]} : vector<5x64xf32> to vector<1x64xf32>
    %681 = vector.broadcast %680 : vector<1x64xf32> to vector<8x64xf32>
    %682 = arith.mulf %679, %681 : vector<8x64xf32>
    %683 = arith.truncf %682 : vector<8x64xf32> to vector<8x64xbf16>
    %c120_234 = arith.constant 120 : index
    %c0_235 = arith.constant 0 : index
    %684 = vector.load %arg22[%c120_234, %c0_235] : memref<200x256xbf16, #tpu.memory_space<vmem>>, vector<8x64xbf16>
    tpu.vector_store %arg22[%c120_234, %c0_235], %683 {strides = array<i32>} : memref<200x256xbf16, #tpu.memory_space<vmem>>, vector<8x64xbf16>,
    %685 = vector.extract_strided_slice %587 {offsets = [0, 25], sizes = [8, 64], strides = [1, 1]} : vector<8x100xf32> to vector<8x64xf32>
    %686 = vector.extract_strided_slice %588 {offsets = [1, 0], sizes = [1, 64], strides = [1, 1]} : vector<5x64xf32> to vector<1x64xf32>
    %687 = vector.broadcast %686 : vector<1x64xf32> to vector<8x64xf32>
    %688 = arith.mulf %685, %687 : vector<8x64xf32>
    %689 = arith.truncf %688 : vector<8x64xf32> to vector<8x64xbf16>
    %c128_236 = arith.constant 128 : index
    %c0_237 = arith.constant 0 : index
    %690 = vector.load %arg22[%c128_236, %c0_237] : memref<200x256xbf16, #tpu.memory_space<vmem>>, vector<8x64xbf16>
    tpu.vector_store %arg22[%c128_236, %c0_237], %689 {strides = array<i32>} : memref<200x256xbf16, #tpu.memory_space<vmem>>, vector<8x64xbf16>,
    %691 = vector.extract_strided_slice %587 {offsets = [0, 26], sizes = [8, 64], strides = [1, 1]} : vector<8x100xf32> to vector<8x64xf32>
    %692 = vector.extract_strided_slice %588 {offsets = [2, 0], sizes = [1, 64], strides = [1, 1]} : vector<5x64xf32> to vector<1x64xf32>
    %693 = vector.broadcast %692 : vector<1x64xf32> to vector<8x64xf32>
    %694 = arith.mulf %691, %693 : vector<8x64xf32>
    %695 = arith.truncf %694 : vector<8x64xf32> to vector<8x64xbf16>
    %c136_238 = arith.constant 136 : index
    %c0_239 = arith.constant 0 : index
    %696 = vector.load %arg22[%c136_238, %c0_239] : memref<200x256xbf16, #tpu.memory_space<vmem>>, vector<8x64xbf16>
    tpu.vector_store %arg22[%c136_238, %c0_239], %695 {strides = array<i32>} : memref<200x256xbf16, #tpu.memory_space<vmem>>, vector<8x64xbf16>,
    %697 = vector.extract_strided_slice %587 {offsets = [0, 27], sizes = [8, 64], strides = [1, 1]} : vector<8x100xf32> to vector<8x64xf32>
    %698 = vector.extract_strided_slice %588 {offsets = [3, 0], sizes = [1, 64], strides = [1, 1]} : vector<5x64xf32> to vector<1x64xf32>
    %699 = vector.broadcast %698 : vector<1x64xf32> to vector<8x64xf32>
    %700 = arith.mulf %697, %699 : vector<8x64xf32>
    %701 = arith.truncf %700 : vector<8x64xf32> to vector<8x64xbf16>
    %c144_240 = arith.constant 144 : index
    %c0_241 = arith.constant 0 : index
    %702 = vector.load %arg22[%c144_240, %c0_241] : memref<200x256xbf16, #tpu.memory_space<vmem>>, vector<8x64xbf16>
    tpu.vector_store %arg22[%c144_240, %c0_241], %701 {strides = array<i32>} : memref<200x256xbf16, #tpu.memory_space<vmem>>, vector<8x64xbf16>,
    %703 = vector.extract_strided_slice %587 {offsets = [0, 28], sizes = [8, 64], strides = [1, 1]} : vector<8x100xf32> to vector<8x64xf32>
    %704 = vector.extract_strided_slice %588 {offsets = [4, 0], sizes = [1, 64], strides = [1, 1]} : vector<5x64xf32> to vector<1x64xf32>
    %705 = vector.broadcast %704 : vector<1x64xf32> to vector<8x64xf32>
    %706 = arith.mulf %703, %705 : vector<8x64xf32>
    %707 = arith.truncf %706 : vector<8x64xf32> to vector<8x64xbf16>
    %c152_242 = arith.constant 152 : index
    %c0_243 = arith.constant 0 : index
    %708 = vector.load %arg22[%c152_242, %c0_243] : memref<200x256xbf16, #tpu.memory_space<vmem>>, vector<8x64xbf16>
    tpu.vector_store %arg22[%c152_242, %c0_243], %707 {strides = array<i32>} : memref<200x256xbf16, #tpu.memory_space<vmem>>, vector<8x64xbf16>,
    %709 = vector.extract_strided_slice %587 {offsets = [0, 32], sizes = [8, 64], strides = [1, 1]} : vector<8x100xf32> to vector<8x64xf32>
    %710 = vector.extract_strided_slice %588 {offsets = [0, 0], sizes = [1, 64], strides = [1, 1]} : vector<5x64xf32> to vector<1x64xf32>
    %711 = vector.broadcast %710 : vector<1x64xf32> to vector<8x64xf32>
    %712 = arith.mulf %709, %711 : vector<8x64xf32>
    %713 = arith.truncf %712 : vector<8x64xf32> to vector<8x64xbf16>
    %c160_244 = arith.constant 160 : index
    %c0_245 = arith.constant 0 : index
    %714 = vector.load %arg22[%c160_244, %c0_245] : memref<200x256xbf16, #tpu.memory_space<vmem>>, vector<8x64xbf16>
    tpu.vector_store %arg22[%c160_244, %c0_245], %713 {strides = array<i32>} : memref<200x256xbf16, #tpu.memory_space<vmem>>, vector<8x64xbf16>,
    %715 = vector.extract_strided_slice %587 {offsets = [0, 33], sizes = [8, 64], strides = [1, 1]} : vector<8x100xf32> to vector<8x64xf32>
    %716 = vector.extract_strided_slice %588 {offsets = [1, 0], sizes = [1, 64], strides = [1, 1]} : vector<5x64xf32> to vector<1x64xf32>
    %717 = vector.broadcast %716 : vector<1x64xf32> to vector<8x64xf32>
    %718 = arith.mulf %715, %717 : vector<8x64xf32>
    %719 = arith.truncf %718 : vector<8x64xf32> to vector<8x64xbf16>
    %c168_246 = arith.constant 168 : index
    %c0_247 = arith.constant 0 : index
    %720 = vector.load %arg22[%c168_246, %c0_247] : memref<200x256xbf16, #tpu.memory_space<vmem>>, vector<8x64xbf16>
    tpu.vector_store %arg22[%c168_246, %c0_247], %719 {strides = array<i32>} : memref<200x256xbf16, #tpu.memory_space<vmem>>, vector<8x64xbf16>,
    %721 = vector.extract_strided_slice %587 {offsets = [0, 34], sizes = [8, 64], strides = [1, 1]} : vector<8x100xf32> to vector<8x64xf32>
    %722 = vector.extract_strided_slice %588 {offsets = [2, 0], sizes = [1, 64], strides = [1, 1]} : vector<5x64xf32> to vector<1x64xf32>
    %723 = vector.broadcast %722 : vector<1x64xf32> to vector<8x64xf32>
    %724 = arith.mulf %721, %723 : vector<8x64xf32>
    %725 = arith.truncf %724 : vector<8x64xf32> to vector<8x64xbf16>
    %c176_248 = arith.constant 176 : index
    %c0_249 = arith.constant 0 : index
    %726 = vector.load %arg22[%c176_248, %c0_249] : memref<200x256xbf16, #tpu.memory_space<vmem>>, vector<8x64xbf16>
    tpu.vector_store %arg22[%c176_248, %c0_249], %725 {strides = array<i32>} : memref<200x256xbf16, #tpu.memory_space<vmem>>, vector<8x64xbf16>,
    %727 = vector.extract_strided_slice %587 {offsets = [0, 35], sizes = [8, 64], strides = [1, 1]} : vector<8x100xf32> to vector<8x64xf32>
    %728 = vector.extract_strided_slice %588 {offsets = [3, 0], sizes = [1, 64], strides = [1, 1]} : vector<5x64xf32> to vector<1x64xf32>
    %729 = vector.broadcast %728 : vector<1x64xf32> to vector<8x64xf32>
    %730 = arith.mulf %727, %729 : vector<8x64xf32>
    %731 = arith.truncf %730 : vector<8x64xf32> to vector<8x64xbf16>
    %c184_250 = arith.constant 184 : index
    %c0_251 = arith.constant 0 : index
    %732 = vector.load %arg22[%c184_250, %c0_251] : memref<200x256xbf16, #tpu.memory_space<vmem>>, vector<8x64xbf16>
    tpu.vector_store %arg22[%c184_250, %c0_251], %731 {strides = array<i32>} : memref<200x256xbf16, #tpu.memory_space<vmem>>, vector<8x64xbf16>,
    %733 = vector.extract_strided_slice %587 {offsets = [0, 36], sizes = [8, 64], strides = [1, 1]} : vector<8x100xf32> to vector<8x64xf32>
    %734 = vector.extract_strided_slice %588 {offsets = [4, 0], sizes = [1, 64], strides = [1, 1]} : vector<5x64xf32> to vector<1x64xf32>
    %735 = vector.broadcast %734 : vector<1x64xf32> to vector<8x64xf32>
    %736 = arith.mulf %733, %735 : vector<8x64xf32>
    %737 = arith.truncf %736 : vector<8x64xf32> to vector<8x64xbf16>
    %c192_252 = arith.constant 192 : index
    %c0_253 = arith.constant 0 : index
    %738 = vector.load %arg22[%c192_252, %c0_253] : memref<200x256xbf16, #tpu.memory_space<vmem>>, vector<8x64xbf16>
    tpu.vector_store %arg22[%c192_252, %c0_253], %737 {strides = array<i32>} : memref<200x256xbf16, #tpu.memory_space<vmem>>, vector<8x64xbf16>,
    %c0_254 = arith.constant 0 : index
    %c0_255 = arith.constant 0 : index
    %739 = vector.load %arg13[%c0_254, %c0_255] : memref<8x200xbf16, #tpu.memory_space<vmem>>, vector<8x200xbf16>
    %c0_256 = arith.constant 0 : index
    %c0_257 = arith.constant 0 : index
    %740 = vector.load %arg22[%c0_256, %c0_257] : memref<200x256xbf16, #tpu.memory_space<vmem>>, vector<200x64xbf16>
    %cst_258 = arith.constant dense<0.000000e+00> : vector<8x64xf32>
    %741 = tpu.matmul %739, %740, %cst_258 {dimension_numbers = #tpu.dot_dimension_numbers<[1], [0], [0], [1], [0, 0, 1, 1], [], []>} : vector<8x200xbf16>, vector<200x64xbf16>, vector<8x64xf32> -> vector<8x64xf32>
    %c0_259 = arith.constant 0 : index
    %c0_260 = arith.constant 0 : index
    %742 = vector.load %arg14[%c0_259, %c0_260] : memref<8x1xf32, #tpu.memory_space<vmem>>, vector<8x1xf32>
    %743 = vector.broadcast %742 : vector<8x1xf32> to vector<8x64xf32>
    %744 = arith.addf %741, %743 : vector<8x64xf32>
    %cst_261 = arith.constant 0.000000e+00 : f32
    %745 = vector.broadcast %cst_261 : f32 to vector<8x64xf32>
    %746 = arith.subf %745, %744 : vector<8x64xf32>
    %747 = math.exp %746 : vector<8x64xf32>
    %cst_262 = arith.constant 1.000000e+00 : f32
    %748 = vector.broadcast %cst_262 : f32 to vector<8x64xf32>
    %749 = arith.addf %748, %747 : vector<8x64xf32>
    %cst_263 = arith.constant 1.000000e+00 : f32
    %750 = vector.broadcast %cst_263 : f32 to vector<8x64xf32>
    %751 = arith.divf %750, %749 : vector<8x64xf32>
    %752 = arith.mulf %744, %751 : vector<8x64xf32>
    %753 = arith.addf %418, %752 : vector<8x64xf32>
    %cst_264 = arith.constant 0.000000e+00 : f32
    %754 = vector.broadcast %cst_264 : f32 to vector<8x9xf32>
    %755 = tpu.concatenate %753, %754 in 1 : vector<8x64xf32>, vector<8x9xf32> -> vector<8x73xf32>
    %756 = vector.extract_strided_slice %755 {offsets = [0, 0], sizes = [8, 64], strides = [1, 1]} : vector<8x73xf32> to vector<8x64xf32>
    %757 = vector.extract_strided_slice %755 {offsets = [0, 1], sizes = [8, 64], strides = [1, 1]} : vector<8x73xf32> to vector<8x64xf32>
    %758 = arith.maximumf %756, %757 : vector<8x64xf32>
    %759 = vector.extract_strided_slice %755 {offsets = [0, 8], sizes = [8, 64], strides = [1, 1]} : vector<8x73xf32> to vector<8x64xf32>
    %760 = vector.extract_strided_slice %755 {offsets = [0, 9], sizes = [8, 64], strides = [1, 1]} : vector<8x73xf32> to vector<8x64xf32>
    %761 = arith.maximumf %759, %760 : vector<8x64xf32>
    %762 = arith.maximumf %758, %761 : vector<8x64xf32>
    %c0_265 = arith.constant 0 : index
    %c0_266 = arith.constant 0 : index
    %763 = vector.load %arg16[%c0_265, %c0_266] : memref<64x16xf32, #tpu.memory_space<vmem>>, vector<64x16xf32>
    %cst_267 = arith.constant dense<0.000000e+00> : vector<8x16xf32>
    %764 = tpu.matmul %762, %763, %cst_267 {dimension_numbers = #tpu.dot_dimension_numbers<[1], [0], [0], [1], [0, 0, 1, 1], [], []>} : vector<8x64xf32>, vector<64x16xf32>, vector<8x16xf32> -> vector<8x16xf32>
    %765 = vector.extract_strided_slice %764 {offsets = [0, 0], sizes = [1, 16], strides = [1, 1]} : vector<8x16xf32> to vector<1x16xf32>
    %766 = vector.extract_strided_slice %764 {offsets = [1, 0], sizes = [1, 16], strides = [1, 1]} : vector<8x16xf32> to vector<1x16xf32>
    %767 = vector.extract_strided_slice %764 {offsets = [2, 0], sizes = [1, 16], strides = [1, 1]} : vector<8x16xf32> to vector<1x16xf32>
    %768 = vector.extract_strided_slice %764 {offsets = [3, 0], sizes = [1, 16], strides = [1, 1]} : vector<8x16xf32> to vector<1x16xf32>
    %769 = vector.extract_strided_slice %764 {offsets = [4, 0], sizes = [1, 16], strides = [1, 1]} : vector<8x16xf32> to vector<1x16xf32>
    %770 = vector.extract_strided_slice %764 {offsets = [5, 0], sizes = [1, 16], strides = [1, 1]} : vector<8x16xf32> to vector<1x16xf32>
    %771 = vector.extract_strided_slice %764 {offsets = [6, 0], sizes = [1, 16], strides = [1, 1]} : vector<8x16xf32> to vector<1x16xf32>
    %772 = vector.extract_strided_slice %764 {offsets = [7, 0], sizes = [1, 16], strides = [1, 1]} : vector<8x16xf32> to vector<1x16xf32>
    %773 = tpu.concatenate %765, %766, %767, %768, %769, %770, %771, %772 in 1 : vector<1x16xf32>, vector<1x16xf32>, vector<1x16xf32>, vector<1x16xf32>, vector<1x16xf32>, vector<1x16xf32>, vector<1x16xf32>, vector<1x16xf32> -> vector<1x128xf32>
    %774 = arith.truncf %773 : vector<1x128xf32> to vector<1x128xbf16>
    %c0_268 = arith.constant 0 : index
    %c0_269 = arith.constant 0 : index
    %775 = vector.load %arg17[%c0_268, %c0_269] : memref<128x64xbf16, #tpu.memory_space<vmem>>, vector<128x64xbf16>
    %cst_270 = arith.constant dense<0.000000e+00> : vector<1x64xf32>
    %776 = tpu.matmul %774, %775, %cst_270 {dimension_numbers = #tpu.dot_dimension_numbers<[1], [0], [0], [1], [0, 0, 1, 1], [], []>} : vector<1x128xbf16>, vector<128x64xbf16>, vector<1x64xf32> -> vector<1x64xf32>
    %c0_271 = arith.constant 0 : index
    %c0_272 = arith.constant 0 : index
    %777 = vector.load %arg18[%c0_271, %c0_272] : memref<1x64xf32, #tpu.memory_space<vmem>>, vector<1x64xf32>
    %778 = arith.addf %776, %777 : vector<1x64xf32>
    %cst_273 = arith.constant 0.000000e+00 : f32
    %779 = vector.broadcast %cst_273 : f32 to vector<1x64xf32>
    %780 = arith.subf %779, %778 : vector<1x64xf32>
    %781 = math.exp %780 : vector<1x64xf32>
    %cst_274 = arith.constant 1.000000e+00 : f32
    %782 = vector.broadcast %cst_274 : f32 to vector<1x64xf32>
    %783 = arith.addf %782, %781 : vector<1x64xf32>
    %cst_275 = arith.constant 1.000000e+00 : f32
    %784 = vector.broadcast %cst_275 : f32 to vector<1x64xf32>
    %785 = arith.divf %784, %783 : vector<1x64xf32>
    %786 = arith.mulf %778, %785 : vector<1x64xf32>
    %787 = arith.truncf %786 : vector<1x64xf32> to vector<1x64xbf16>
    %c0_276 = arith.constant 0 : index
    %c0_277 = arith.constant 0 : index
    %788 = vector.load %arg19[%c0_276, %c0_277] : memref<64x32xbf16, #tpu.memory_space<vmem>>, vector<64x32xbf16>
    %cst_278 = arith.constant dense<0.000000e+00> : vector<1x32xf32>
    %789 = tpu.matmul %787, %788, %cst_278 {dimension_numbers = #tpu.dot_dimension_numbers<[1], [0], [0], [1], [0, 0, 1, 1], [], []>} : vector<1x64xbf16>, vector<64x32xbf16>, vector<1x32xf32> -> vector<1x32xf32>
    %c0_279 = arith.constant 0 : index
    %c0_280 = arith.constant 0 : index
    %790 = vector.load %arg20[%c0_279, %c0_280] : memref<1x32xf32, #tpu.memory_space<vmem>>, vector<1x32xf32>
    %791 = arith.addf %789, %790 : vector<1x32xf32>
    %cst_281 = arith.constant 0.000000e+00 : f32
    %792 = vector.broadcast %cst_281 : f32 to vector<1x32xf32>
    %793 = arith.subf %792, %791 : vector<1x32xf32>
    %794 = math.exp %793 : vector<1x32xf32>
    %cst_282 = arith.constant 1.000000e+00 : f32
    %795 = vector.broadcast %cst_282 : f32 to vector<1x32xf32>
    %796 = arith.addf %795, %794 : vector<1x32xf32>
    %cst_283 = arith.constant 1.000000e+00 : f32
    %797 = vector.broadcast %cst_283 : f32 to vector<1x32xf32>
    %798 = arith.divf %797, %796 : vector<1x32xf32>
    %799 = arith.mulf %791, %798 : vector<1x32xf32>
    %800 = vector.shape_cast %799 : vector<1x32xf32> to vector<1x1x32xf32>
    %c0_284 = arith.constant 0 : index
    %c0_285 = arith.constant 0 : index
    %c0_286 = arith.constant 0 : index
    %801 = vector.load %arg21[%c0_284, %c0_285, %c0_286] : memref<1x1x32xf32, #tpu.memory_space<vmem>>, vector<1x1x32xf32>
    tpu.vector_store %arg21[%c0_284, %c0_285, %c0_286], %800 {strides = array<i32>} : memref<1x1x32xf32, #tpu.memory_space<vmem>>, vector<1x1x32xf32>,
    return
  }
  func.func @transform_0(%arg0: i32) -> (i32, i32, i32) {
    %c0_i32 = arith.constant 0 : i32
    %c0_i32_0 = arith.constant 0 : i32
    %c0_i32_1 = arith.constant 0 : i32
    return %arg0, %c0_i32, %c0_i32_0 : i32, i32, i32
  }
  func.func @transform_1(%arg0: i32) -> (i32, i32) {
    %c0_i32 = arith.constant 0 : i32
    %c0_i32_0 = arith.constant 0 : i32
    %c0_i32_1 = arith.constant 0 : i32
    return %c0_i32, %c0_i32_0 : i32, i32
  }
  func.func @transform_2(%arg0: i32) -> (i32, i32) {
    %c0_i32 = arith.constant 0 : i32
    %c0_i32_0 = arith.constant 0 : i32
    %c0_i32_1 = arith.constant 0 : i32
    return %c0_i32, %c0_i32_0 : i32, i32
  }
  func.func @transform_3(%arg0: i32) -> (i32, i32) {
    %c0_i32 = arith.constant 0 : i32
    %c0_i32_0 = arith.constant 0 : i32
    %c0_i32_1 = arith.constant 0 : i32
    return %c0_i32, %c0_i32_0 : i32, i32
  }
  func.func @transform_4(%arg0: i32) -> (i32, i32) {
    %c0_i32 = arith.constant 0 : i32
    %c0_i32_0 = arith.constant 0 : i32
    %c0_i32_1 = arith.constant 0 : i32
    return %c0_i32, %c0_i32_0 : i32, i32
  }
  func.func @transform_5(%arg0: i32) -> (i32, i32) {
    %c0_i32 = arith.constant 0 : i32
    %c0_i32_0 = arith.constant 0 : i32
    %c0_i32_1 = arith.constant 0 : i32
    return %c0_i32, %c0_i32_0 : i32, i32
  }
  func.func @transform_6(%arg0: i32) -> (i32, i32) {
    %c0_i32 = arith.constant 0 : i32
    %c0_i32_0 = arith.constant 0 : i32
    %c0_i32_1 = arith.constant 0 : i32
    return %c0_i32, %c0_i32_0 : i32, i32
  }
  func.func @transform_7(%arg0: i32) -> (i32, i32) {
    %c0_i32 = arith.constant 0 : i32
    %c0_i32_0 = arith.constant 0 : i32
    %c0_i32_1 = arith.constant 0 : i32
    return %c0_i32, %c0_i32_0 : i32, i32
  }
  func.func @transform_8(%arg0: i32) -> (i32, i32) {
    %c0_i32 = arith.constant 0 : i32
    %c0_i32_0 = arith.constant 0 : i32
    %c0_i32_1 = arith.constant 0 : i32
    return %c0_i32, %c0_i32_0 : i32, i32
  }
  func.func @transform_9(%arg0: i32) -> (i32, i32) {
    %c0_i32 = arith.constant 0 : i32
    %c0_i32_0 = arith.constant 0 : i32
    %c0_i32_1 = arith.constant 0 : i32
    return %c0_i32, %c0_i32_0 : i32, i32
  }
  func.func @transform_10(%arg0: i32) -> (i32, i32) {
    %c0_i32 = arith.constant 0 : i32
    %c0_i32_0 = arith.constant 0 : i32
    %c0_i32_1 = arith.constant 0 : i32
    return %c0_i32, %c0_i32_0 : i32, i32
  }
  func.func @transform_11(%arg0: i32) -> (i32, i32) {
    %c0_i32 = arith.constant 0 : i32
    %c0_i32_0 = arith.constant 0 : i32
    %c0_i32_1 = arith.constant 0 : i32
    return %c0_i32, %c0_i32_0 : i32, i32
  }
  func.func @transform_12(%arg0: i32) -> (i32, i32) {
    %c0_i32 = arith.constant 0 : i32
    %c0_i32_0 = arith.constant 0 : i32
    %c0_i32_1 = arith.constant 0 : i32
    return %c0_i32, %c0_i32_0 : i32, i32
  }
  func.func @transform_13(%arg0: i32) -> (i32, i32) {
    %c0_i32 = arith.constant 0 : i32
    %c0_i32_0 = arith.constant 0 : i32
    %c0_i32_1 = arith.constant 0 : i32
    return %c0_i32, %c0_i32_0 : i32, i32
  }
  func.func @transform_14(%arg0: i32) -> (i32, i32) {
    %c0_i32 = arith.constant 0 : i32
    %c0_i32_0 = arith.constant 0 : i32
    %c0_i32_1 = arith.constant 0 : i32
    return %c0_i32, %c0_i32_0 : i32, i32
  }
  func.func @transform_15(%arg0: i32) -> (i32, i32) {
    %c0_i32 = arith.constant 0 : i32
    %c0_i32_0 = arith.constant 0 : i32
    %c0_i32_1 = arith.constant 0 : i32
    return %c0_i32, %c0_i32_0 : i32, i32
  }
  func.func @transform_16(%arg0: i32) -> (i32, i32) {
    %c0_i32 = arith.constant 0 : i32
    %c0_i32_0 = arith.constant 0 : i32
    %c0_i32_1 = arith.constant 0 : i32
    return %c0_i32, %c0_i32_0 : i32, i32
  }
  func.func @transform_17(%arg0: i32) -> (i32, i32) {
    %c0_i32 = arith.constant 0 : i32
    %c0_i32_0 = arith.constant 0 : i32
    %c0_i32_1 = arith.constant 0 : i32
    return %c0_i32, %c0_i32_0 : i32, i32
  }
  func.func @transform_18(%arg0: i32) -> (i32, i32) {
    %c0_i32 = arith.constant 0 : i32
    %c0_i32_0 = arith.constant 0 : i32
    %c0_i32_1 = arith.constant 0 : i32
    return %c0_i32, %c0_i32_0 : i32, i32
  }
  func.func @transform_19(%arg0: i32) -> (i32, i32) {
    %c0_i32 = arith.constant 0 : i32
    %c0_i32_0 = arith.constant 0 : i32
    %c0_i32_1 = arith.constant 0 : i32
    return %c0_i32, %c0_i32_0 : i32, i32
  }
  func.func @transform_20(%arg0: i32) -> (i32, i32, i32) {
    %c0_i32 = arith.constant 0 : i32
    %c0_i32_0 = arith.constant 0 : i32
    %c0_i32_1 = arith.constant 0 : i32
    return %arg0, %c0_i32, %c0_i32_0 : i32, i32, i32
  }
}

</mosaic_0001>

<llo_original>
// kernel: cnn_features_forward.1
$region0: #{cnn_features_forward.1}
  #allocation0 [shape = 'u32[]', space=smem, size = 0x4, offset = 0x4, fixed_abs, tag = 'smem constant byte address 0x4 - core index']
  #allocation1 [shape = 'u32[144,128]{1,0:T(1,128)}', space=vmem, size = 0x12000, scoped, tag = 'internal scratch']
  #allocation2 [shape = 'bf16[200,256]{1,0:T(8,128)(2,1)}', space=vmem, size = 0x19000, scoped, tag = 'scratch operand']
  %s0 = inlined_call_operand.vmem [shape: f32[2,8,256], index: 0, kind: input, shape index: {}]
  %s1 = inlined_call_operand.vmem [shape: bf16[8,72], index: 1, kind: input, shape index: {}]
  %s2 = inlined_call_operand.vmem [shape: f32[8,1], index: 2, kind: input, shape index: {}]
  %s3 = inlined_call_operand.vmem [shape: f32[3,256], index: 3, kind: input, shape index: {}]
  %s4 = inlined_call_operand.vmem [shape: bf16[8,200], index: 4, kind: input, shape index: {}]
  %s5 = inlined_call_operand.vmem [shape: f32[8,1], index: 5, kind: input, shape index: {}]
  %s6 = inlined_call_operand.vmem [shape: bf16[8,200], index: 6, kind: input, shape index: {}]
  %s7 = inlined_call_operand.vmem [shape: f32[8,1], index: 7, kind: input, shape index: {}]
  %s8 = inlined_call_operand.vmem [shape: f32[5,256], index: 8, kind: input, shape index: {}]
  %s9 = inlined_call_operand.vmem [shape: f32[256,64], index: 9, kind: input, shape index: {}]
  %s10 = inlined_call_operand.vmem [shape: bf16[8,200], index: 10, kind: input, shape index: {}]
  %s11 = inlined_call_operand.vmem [shape: f32[8,1], index: 11, kind: input, shape index: {}]
  %s12 = inlined_call_operand.vmem [shape: bf16[8,200], index: 12, kind: input, shape index: {}]
  %s13 = inlined_call_operand.vmem [shape: f32[8,1], index: 13, kind: input, shape index: {}]
  %s14 = inlined_call_operand.vmem [shape: f32[5,64], index: 14, kind: input, shape index: {}]
  %s15 = inlined_call_operand.vmem [shape: f32[64,16], index: 15, kind: input, shape index: {}]
  %s16 = inlined_call_operand.vmem [shape: bf16[128,64], index: 16, kind: input, shape index: {}]
  %s17 = inlined_call_operand.vmem [shape: f32[1,64], index: 17, kind: input, shape index: {}]
  %s18 = inlined_call_operand.vmem [shape: bf16[64,32], index: 18, kind: input, shape index: {}]
  %s19 = inlined_call_operand.vmem [shape: f32[1,32], index: 19, kind: input, shape index: {}]
  %s20 = inlined_call_operand.hbm [shape: f32[2,1,32], index: 20, kind: output, shape index: {}]
  %s21 = sld [smem:[#allocation0]]
  $region113: #{cnn_features_forward.1} parent=0
    _
  %s23 = ssub.s32 1, %s21
  %s24 = scalar_select 0, %s23, %s21
  $region1: #{cnn_features_forward.1} parent=0
    #allocation3 [shape = 'u8[1024]{0}', space=vmem, size = 0x400, scoped, tag = 'output window, operand 0']
    #allocation4 [shape = 's32[2]{0}', space=sflag, size = 0x8, scoped, tag = 'scoped memory for cnn_features_forward.1']
    %25 = vsyncpa [#allocation4], 0
    %s26 = scalar_lea.sflag [#allocation4], 1
    %27 = vsyncpa %s26, 0
    loop: start=0, step=1, limit=4
    $region2: #{cnn_features_forward.1} parent=1 // loop_pre_header
      _
    $region3: #{cnn_features_forward.1} parent=1 // loop_header
      %s29 = sphi 0, %s33
      %p30 = scmp.ge.s32.totalorder %s29, 4
      %s39 = sphi 0, %s41
      %s42 = sphi 0, %s39
      %s43 = sphi 0, %s42
      %s59 = sphi 0, %s43
      %s63 = sphi 0, %s63
      %s65 = sphi 0, %s63
      %s66 = sphi 0, %s65
      %s80 = sphi 0, %s66
      %s84 = sphi 0, %s84
      %s86 = sphi 0, %s84
      %s87 = sphi 0, %s86
      %s101 = sphi 0, %s87
      %s105 = sphi 0, %s105
      %s107 = sphi 0, %s105
      %s108 = sphi 0, %s107
      %s122 = sphi 0, %s108
      %s126 = sphi 0, %s126
      %s128 = sphi 0, %s126
      %s129 = sphi 0, %s128
      %s143 = sphi 0, %s129
      %s147 = sphi 0, %s147
      %s149 = sphi 0, %s147
      %s150 = sphi 0, %s149
      %s164 = sphi 0, %s150
      %s168 = sphi 0, %s168
      %s170 = sphi 0, %s168
      %s171 = sphi 0, %s170
      %s185 = sphi 0, %s171
      %s189 = sphi 0, %s189
      %s191 = sphi 0, %s189
      %s192 = sphi 0, %s191
      %s206 = sphi 0, %s192
      %s210 = sphi 0, %s210
      %s212 = sphi 0, %s210
      %s213 = sphi 0, %s212
      %s227 = sphi 0, %s213
      %s231 = sphi 0, %s231
      %s233 = sphi 0, %s231
      %s234 = sphi 0, %s233
      %s248 = sphi 0, %s234
      %s252 = sphi 0, %s252
      %s254 = sphi 0, %s252
      %s255 = sphi 0, %s254
      %s269 = sphi 0, %s255
      %s273 = sphi 0, %s273
      %s275 = sphi 0, %s273
      %s276 = sphi 0, %s275
      %s290 = sphi 0, %s276
      %s294 = sphi 0, %s294
      %s296 = sphi 0, %s294
      %s297 = sphi 0, %s296
      %s311 = sphi 0, %s297
      %s315 = sphi 0, %s315
      %s317 = sphi 0, %s315
      %s318 = sphi 0, %s317
      %s332 = sphi 0, %s318
      %s336 = sphi 0, %s336
      %s338 = sphi 0, %s336
      %s339 = sphi 0, %s338
      %s353 = sphi 0, %s339
      %s357 = sphi 0, %s357
      %s359 = sphi 0, %s357
      %s360 = sphi 0, %s359
      %s374 = sphi 0, %s360
      %s378 = sphi 0, %s378
      %s380 = sphi 0, %s378
      %s381 = sphi 0, %s380
      %s395 = sphi 0, %s381
      %s399 = sphi 0, %s399
      %s401 = sphi 0, %s399
      %s402 = sphi 0, %s401
      %s416 = sphi 0, %s402
      %s420 = sphi 0, %s420
      %s422 = sphi 0, %s420
      %s423 = sphi 0, %s422
      %s437 = sphi 0, %s423
      %s441 = sphi 0, %s441
      %s443 = sphi 0, %s441
      %s444 = sphi 0, %s443
      %s458 = sphi 0, %s444
      %s464 = sphi 0, %s466
      %s467 = sphi 0, %s464
      %s468 = sphi 0, %s467
      %s484 = sphi 0, %s468
    $region4: #{cnn_features_forward.1} parent=1 // loop_header_branch
      %32 = sbr.rel (%p30) target = $region8
    $region5: #{cnn_features_forward.1} parent=1 // loop_body
      %s34 = ssub.s32 %s29, 1
      %s35 = ssub.s32 %s29, 2
      %s36 = sadd.s32 %s29, 1
      %s37 = ssub.s32 %s29, %s36
      %p38 = scmp.eq.s32.totalorder %s37, 0
      %s40 = sadd.s32 %s39, 1
      %s41 = scalar_select %p38, %s39, %s40
      %p44 = pneg %p38
      %p45 = scmp.eq.s32.totalorder %s29, 1
      %p46 = por %p44, %p45
      %p47 = scmp.ne.s32.totalorder %s39, %s42
      %p48 = scmp.eq.s32.totalorder %s29, 0
      %p49 = por %p47, %p48
      %p50 = scmp.ne.s32.totalorder %s39, %s42
      %p51 = scmp.eq.s32.totalorder %s34, 1
      %p52 = por %p50, %p51
      %p53 = scmp.ne.s32.totalorder %s42, %s43
      %p54 = scmp.eq.s32.totalorder %s34, 0
      %p55 = por %p53, %p54
      %p56 = scmp.ne.s32.totalorder %s42, %s43
      %p57 = scmp.eq.s32.totalorder %s35, 1
      %p58 = por %p56, %p57
      %p60 = scmp.ne.s32.totalorder %s43, %s59
      %p61 = scmp.eq.s32.totalorder %s35, 0
      %p62 = por %p60, %p61
      %s64 = sadd.s32 %s63, 1
      %p67 = scmp.eq.s32.totalorder %s29, 1
      %p68 = scmp.ne.s32.totalorder %s63, %s65
      %p69 = scmp.eq.s32.totalorder %s29, 0
      %p70 = por %p68, %p69
      %p71 = scmp.ne.s32.totalorder %s63, %s65
      %p72 = scmp.eq.s32.totalorder %s34, 1
      %p73 = por %p71, %p72
      %p74 = scmp.ne.s32.totalorder %s65, %s66
      %p75 = scmp.eq.s32.totalorder %s34, 0
      %p76 = por %p74, %p75
      %p77 = scmp.ne.s32.totalorder %s65, %s66
      %p78 = scmp.eq.s32.totalorder %s35, 1
      %p79 = por %p77, %p78
      %p81 = scmp.ne.s32.totalorder %s66, %s80
      %p82 = scmp.eq.s32.totalorder %s35, 0
      %p83 = por %p81, %p82
      %s85 = sadd.s32 %s84, 1
      %p88 = scmp.eq.s32.totalorder %s29, 1
      %p89 = scmp.ne.s32.totalorder %s84, %s86
      %p90 = scmp.eq.s32.totalorder %s29, 0
      %p91 = por %p89, %p90
      %p92 = scmp.ne.s32.totalorder %s84, %s86
      %p93 = scmp.eq.s32.totalorder %s34, 1
      %p94 = por %p92, %p93
      %p95 = scmp.ne.s32.totalorder %s86, %s87
      %p96 = scmp.eq.s32.totalorder %s34, 0
      %p97 = por %p95, %p96
      %p98 = scmp.ne.s32.totalorder %s86, %s87
      %p99 = scmp.eq.s32.totalorder %s35, 1
      %p100 = por %p98, %p99
      %p102 = scmp.ne.s32.totalorder %s87, %s101
      %p103 = scmp.eq.s32.totalorder %s35, 0
      %p104 = por %p102, %p103
      %s106 = sadd.s32 %s105, 1
      %p109 = scmp.eq.s32.totalorder %s29, 1
      %p110 = scmp.ne.s32.totalorder %s105, %s107
      %p111 = scmp.eq.s32.totalorder %s29, 0
      %p112 = por %p110, %p111
      %p113 = scmp.ne.s32.totalorder %s105, %s107
      %p114 = scmp.eq.s32.totalorder %s34, 1
      %p115 = por %p113, %p114
      %p116 = scmp.ne.s32.totalorder %s107, %s108
      %p117 = scmp.eq.s32.totalorder %s34, 0
      %p118 = por %p116, %p117
      %p119 = scmp.ne.s32.totalorder %s107, %s108
      %p120 = scmp.eq.s32.totalorder %s35, 1
      %p121 = por %p119, %p120
      %p123 = scmp.ne.s32.totalorder %s108, %s122
      %p124 = scmp.eq.s32.totalorder %s35, 0
      %p125 = por %p123, %p124
      %s127 = sadd.s32 %s126, 1
      %p130 = scmp.eq.s32.totalorder %s29, 1
      %p131 = scmp.ne.s32.totalorder %s126, %s128
      %p132 = scmp.eq.s32.totalorder %s29, 0
      %p133 = por %p131, %p132
      %p134 = scmp.ne.s32.totalorder %s126, %s128
      %p135 = scmp.eq.s32.totalorder %s34, 1
      %p136 = por %p134, %p135
      %p137 = scmp.ne.s32.totalorder %s128, %s129
      %p138 = scmp.eq.s32.totalorder %s34, 0
      %p139 = por %p137, %p138
      %p140 = scmp.ne.s32.totalorder %s128, %s129
      %p141 = scmp.eq.s32.totalorder %s35, 1
      %p142 = por %p140, %p141
      %p144 = scmp.ne.s32.totalorder %s129, %s143
      %p145 = scmp.eq.s32.totalorder %s35, 0
      %p146 = por %p144, %p145
      %s148 = sadd.s32 %s147, 1
      %p151 = scmp.eq.s32.totalorder %s29, 1
      %p152 = scmp.ne.s32.totalorder %s147, %s149
      %p153 = scmp.eq.s32.totalorder %s29, 0
      %p154 = por %p152, %p153
      %p155 = scmp.ne.s32.totalorder %s147, %s149
      %p156 = scmp.eq.s32.totalorder %s34, 1
      %p157 = por %p155, %p156
      %p158 = scmp.ne.s32.totalorder %s149, %s150
      %p159 = scmp.eq.s32.totalorder %s34, 0
      %p160 = por %p158, %p159
      %p161 = scmp.ne.s32.totalorder %s149, %s150
      %p162 = scmp.eq.s32.totalorder %s35, 1
      %p163 = por %p161, %p162
      %p165 = scmp.ne.s32.totalorder %s150, %s164
      %p166 = scmp.eq.s32.totalorder %s35, 0
      %p167 = por %p165, %p166
      %s169 = sadd.s32 %s168, 1
      %p172 = scmp.eq.s32.totalorder %s29, 1
      %p173 = scmp.ne.s32.totalorder %s168, %s170
      %p174 = scmp.eq.s32.totalorder %s29, 0
      %p175 = por %p173, %p174
      %p176 = scmp.ne.s32.totalorder %s168, %s170
      %p177 = scmp.eq.s32.totalorder %s34, 1
      %p178 = por %p176, %p177
      %p179 = scmp.ne.s32.totalorder %s170, %s171
      %p180 = scmp.eq.s32.totalorder %s34, 0
      %p181 = por %p179, %p180
      %p182 = scmp.ne.s32.totalorder %s170, %s171
      %p183 = scmp.eq.s32.totalorder %s35, 1
      %p184 = por %p182, %p183
      %p186 = scmp.ne.s32.totalorder %s171, %s185
      %p187 = scmp.eq.s32.totalorder %s35, 0
      %p188 = por %p186, %p187
      %s190 = sadd.s32 %s189, 1
      %p193 = scmp.eq.s32.totalorder %s29, 1
      %p194 = scmp.ne.s32.totalorder %s189, %s191
      %p195 = scmp.eq.s32.totalorder %s29, 0
      %p196 = por %p194, %p195
      %p197 = scmp.ne.s32.totalorder %s189, %s191
      %p198 = scmp.eq.s32.totalorder %s34, 1
      %p199 = por %p197, %p198
      %p200 = scmp.ne.s32.totalorder %s191, %s192
      %p201 = scmp.eq.s32.totalorder %s34, 0
      %p202 = por %p200, %p201
      %p203 = scmp.ne.s32.totalorder %s191, %s192
      %p204 = scmp.eq.s32.totalorder %s35, 1
      %p205 = por %p203, %p204
      %p207 = scmp.ne.s32.totalorder %s192, %s206
      %p208 = scmp.eq.s32.totalorder %s35, 0
      %p209 = por %p207, %p208
      %s211 = sadd.s32 %s210, 1
      %p214 = scmp.eq.s32.totalorder %s29, 1
      %p215 = scmp.ne.s32.totalorder %s210, %s212
      %p216 = scmp.eq.s32.totalorder %s29, 0
      %p217 = por %p215, %p216
      %p218 = scmp.ne.s32.totalorder %s210, %s212
      %p219 = scmp.eq.s32.totalorder %s34, 1
      %p220 = por %p218, %p219
      %p221 = scmp.ne.s32.totalorder %s212, %s213
      %p222 = scmp.eq.s32.totalorder %s34, 0
      %p223 = por %p221, %p222
      %p224 = scmp.ne.s32.totalorder %s212, %s213
      %p225 = scmp.eq.s32.totalorder %s35, 1
      %p226 = por %p224, %p225
      %p228 = scmp.ne.s32.totalorder %s213, %s227
      %p229 = scmp.eq.s32.totalorder %s35, 0
      %p230 = por %p228, %p229
      %s232 = sadd.s32 %s231, 1
      %p235 = scmp.eq.s32.totalorder %s29, 1
      %p236 = scmp.ne.s32.totalorder %s231, %s233
      %p237 = scmp.eq.s32.totalorder %s29, 0
      %p238 = por %p236, %p237
      %p239 = scmp.ne.s32.totalorder %s231, %s233
      %p240 = scmp.eq.s32.totalorder %s34, 1
      %p241 = por %p239, %p240
      %p242 = scmp.ne.s32.totalorder %s233, %s234
      %p243 = scmp.eq.s32.totalorder %s34, 0
      %p244 = por %p242, %p243
      %p245 = scmp.ne.s32.totalorder %s233, %s234
      %p246 = scmp.eq.s32.totalorder %s35, 1
      %p247 = por %p245, %p246
      %p249 = scmp.ne.s32.totalorder %s234, %s248
      %p250 = scmp.eq.s32.totalorder %s35, 0
      %p251 = por %p249, %p250
      %s253 = sadd.s32 %s252, 1
      %p256 = scmp.eq.s32.totalorder %s29, 1
      %p257 = scmp.ne.s32.totalorder %s252, %s254
      %p258 = scmp.eq.s32.totalorder %s29, 0
      %p259 = por %p257, %p258
      %p260 = scmp.ne.s32.totalorder %s252, %s254
      %p261 = scmp.eq.s32.totalorder %s34, 1
      %p262 = por %p260, %p261
      %p263 = scmp.ne.s32.totalorder %s254, %s255
      %p264 = scmp.eq.s32.totalorder %s34, 0
      %p265 = por %p263, %p264
      %p266 = scmp.ne.s32.totalorder %s254, %s255
      %p267 = scmp.eq.s32.totalorder %s35, 1
      %p268 = por %p266, %p267
      %p270 = scmp.ne.s32.totalorder %s255, %s269
      %p271 = scmp.eq.s32.totalorder %s35, 0
      %p272 = por %p270, %p271
      %s274 = sadd.s32 %s273, 1
      %p277 = scmp.eq.s32.totalorder %s29, 1
      %p278 = scmp.ne.s32.totalorder %s273, %s275
      %p279 = scmp.eq.s32.totalorder %s29, 0
      %p280 = por %p278, %p279
      %p281 = scmp.ne.s32.totalorder %s273, %s275
      %p282 = scmp.eq.s32.totalorder %s34, 1
      %p283 = por %p281, %p282
      %p284 = scmp.ne.s32.totalorder %s275, %s276
      %p285 = scmp.eq.s32.totalorder %s34, 0
      %p286 = por %p284, %p285
      %p287 = scmp.ne.s32.totalorder %s275, %s276
      %p288 = scmp.eq.s32.totalorder %s35, 1
      %p289 = por %p287, %p288
      %p291 = scmp.ne.s32.totalorder %s276, %s290
      %p292 = scmp.eq.s32.totalorder %s35, 0
      %p293 = por %p291, %p292
      %s295 = sadd.s32 %s294, 1
      %p298 = scmp.eq.s32.totalorder %s29, 1
      %p299 = scmp.ne.s32.totalorder %s294, %s296
      %p300 = scmp.eq.s32.totalorder %s29, 0
      %p301 = por %p299, %p300
      %p302 = scmp.ne.s32.totalorder %s294, %s296
      %p303 = scmp.eq.s32.totalorder %s34, 1
      %p304 = por %p302, %p303
      %p305 = scmp.ne.s32.totalorder %s296, %s297
      %p306 = scmp.eq.s32.totalorder %s34, 0
      %p307 = por %p305, %p306
      %p308 = scmp.ne.s32.totalorder %s296, %s297
      %p309 = scmp.eq.s32.totalorder %s35, 1
      %p310 = por %p308, %p309
      %p312 = scmp.ne.s32.totalorder %s297, %s311
      %p313 = scmp.eq.s32.totalorder %s35, 0
      %p314 = por %p312, %p313
      %s316 = sadd.s32 %s315, 1
      %p319 = scmp.eq.s32.totalorder %s29, 1
      %p320 = scmp.ne.s32.totalorder %s315, %s317
      %p321 = scmp.eq.s32.totalorder %s29, 0
      %p322 = por %p320, %p321
      %p323 = scmp.ne.s32.totalorder %s315, %s317
      %p324 = scmp.eq.s32.totalorder %s34, 1
      %p325 = por %p323, %p324
      %p326 = scmp.ne.s32.totalorder %s317, %s318
      %p327 = scmp.eq.s32.totalorder %s34, 0
      %p328 = por %p326, %p327
      %p329 = scmp.ne.s32.totalorder %s317, %s318
      %p330 = scmp.eq.s32.totalorder %s35, 1
      %p331 = por %p329, %p330
      %p333 = scmp.ne.s32.totalorder %s318, %s332
      %p334 = scmp.eq.s32.totalorder %s35, 0
      %p335 = por %p333, %p334
      %s337 = sadd.s32 %s336, 1
      %p340 = scmp.eq.s32.totalorder %s29, 1
      %p341 = scmp.ne.s32.totalorder %s336, %s338
      %p342 = scmp.eq.s32.totalorder %s29, 0
      %p343 = por %p341, %p342
      %p344 = scmp.ne.s32.totalorder %s336, %s338
      %p345 = scmp.eq.s32.totalorder %s34, 1
      %p346 = por %p344, %p345
      %p347 = scmp.ne.s32.totalorder %s338, %s339
      %p348 = scmp.eq.s32.totalorder %s34, 0
      %p349 = por %p347, %p348
      %p350 = scmp.ne.s32.totalorder %s338, %s339
      %p351 = scmp.eq.s32.totalorder %s35, 1
      %p352 = por %p350, %p351
      %p354 = scmp.ne.s32.totalorder %s339, %s353
      %p355 = scmp.eq.s32.totalorder %s35, 0
      %p356 = por %p354, %p355
      %s358 = sadd.s32 %s357, 1
      %p361 = scmp.eq.s32.totalorder %s29, 1
      %p362 = scmp.ne.s32.totalorder %s357, %s359
      %p363 = scmp.eq.s32.totalorder %s29, 0
      %p364 = por %p362, %p363
      %p365 = scmp.ne.s32.totalorder %s357, %s359
      %p366 = scmp.eq.s32.totalorder %s34, 1
      %p367 = por %p365, %p366
      %p368 = scmp.ne.s32.totalorder %s359, %s360
      %p369 = scmp.eq.s32.totalorder %s34, 0
      %p370 = por %p368, %p369
      %p371 = scmp.ne.s32.totalorder %s359, %s360
      %p372 = scmp.eq.s32.totalorder %s35, 1
      %p373 = por %p371, %p372
      %p375 = scmp.ne.s32.totalorder %s360, %s374
      %p376 = scmp.eq.s32.totalorder %s35, 0
      %p377 = por %p375, %p376
      %s379 = sadd.s32 %s378, 1
      %p382 = scmp.eq.s32.totalorder %s29, 1
      %p383 = scmp.ne.s32.totalorder %s378, %s380
      %p384 = scmp.eq.s32.totalorder %s29, 0
      %p385 = por %p383, %p384
      %p386 = scmp.ne.s32.totalorder %s378, %s380
      %p387 = scmp.eq.s32.totalorder %s34, 1
      %p388 = por %p386, %p387
      %p389 = scmp.ne.s32.totalorder %s380, %s381
      %p390 = scmp.eq.s32.totalorder %s34, 0
      %p391 = por %p389, %p390
      %p392 = scmp.ne.s32.totalorder %s380, %s381
      %p393 = scmp.eq.s32.totalorder %s35, 1
      %p394 = por %p392, %p393
      %p396 = scmp.ne.s32.totalorder %s381, %s395
      %p397 = scmp.eq.s32.totalorder %s35, 0
      %p398 = por %p396, %p397
      %s400 = sadd.s32 %s399, 1
      %p403 = scmp.eq.s32.totalorder %s29, 1
      %p404 = scmp.ne.s32.totalorder %s399, %s401
      %p405 = scmp.eq.s32.totalorder %s29, 0
      %p406 = por %p404, %p405
      %p407 = scmp.ne.s32.totalorder %s399, %s401
      %p408 = scmp.eq.s32.totalorder %s34, 1
      %p409 = por %p407, %p408
      %p410 = scmp.ne.s32.totalorder %s401, %s402
      %p411 = scmp.eq.s32.totalorder %s34, 0
      %p412 = por %p410, %p411
      %p413 = scmp.ne.s32.totalorder %s401, %s402
      %p414 = scmp.eq.s32.totalorder %s35, 1
      %p415 = por %p413, %p414
      %p417 = scmp.ne.s32.totalorder %s402, %s416
      %p418 = scmp.eq.s32.totalorder %s35, 0
      %p419 = por %p417, %p418
      %s421 = sadd.s32 %s420, 1
      %p424 = scmp.eq.s32.totalorder %s29, 1
      %p425 = scmp.ne.s32.totalorder %s420, %s422
      %p426 = scmp.eq.s32.totalorder %s29, 0
      %p427 = por %p425, %p426
      %p428 = scmp.ne.s32.totalorder %s420, %s422
      %p429 = scmp.eq.s32.totalorder %s34, 1
      %p430 = por %p428, %p429
      %p431 = scmp.ne.s32.totalorder %s422, %s423
      %p432 = scmp.eq.s32.totalorder %s34, 0
      %p433 = por %p431, %p432
      %p434 = scmp.ne.s32.totalorder %s422, %s423
      %p435 = scmp.eq.s32.totalorder %s35, 1
      %p436 = por %p434, %p435
      %p438 = scmp.ne.s32.totalorder %s423, %s437
      %p439 = scmp.eq.s32.totalorder %s35, 0
      %p440 = por %p438, %p439
      %s442 = sadd.s32 %s441, 1
      %p445 = scmp.eq.s32.totalorder %s29, 1
      %p446 = scmp.ne.s32.totalorder %s441, %s443
      %p447 = scmp.eq.s32.totalorder %s29, 0
      %p448 = por %p446, %p447
      %p449 = scmp.ne.s32.totalorder %s441, %s443
      %p450 = scmp.eq.s32.totalorder %s34, 1
      %p451 = por %p449, %p450
      %p452 = scmp.ne.s32.totalorder %s443, %s444
      %p453 = scmp.eq.s32.totalorder %s34, 0
      %p454 = por %p452, %p453
      %p455 = scmp.ne.s32.totalorder %s443, %s444
      %p456 = scmp.eq.s32.totalorder %s35, 1
      %p457 = por %p455, %p456
      %p459 = scmp.ne.s32.totalorder %s444, %s458
      %p460 = scmp.eq.s32.totalorder %s35, 0
      %p461 = por %p459, %p460
      %s462 = ssub.s32 %s29, %s36
      %p463 = scmp.eq.s32.totalorder %s462, 0
      %s465 = sadd.s32 %s464, 1
      %s466 = scalar_select %p463, %s464, %s465
      %p469 = pneg %p463
      %p470 = scmp.eq.s32.totalorder %s29, 1
      %p471 = por %p469, %p470
      %p472 = scmp.ne.s32.totalorder %s464, %s467
      %p473 = scmp.eq.s32.totalorder %s29, 0
      %p474 = por %p472, %p473
      %p475 = scmp.ne.s32.totalorder %s464, %s467
      %p476 = scmp.eq.s32.totalorder %s34, 1
      %p477 = por %p475, %p476
      %p478 = scmp.ne.s32.totalorder %s467, %s468
      %p479 = scmp.eq.s32.totalorder %s34, 0
      %p480 = por %p478, %p479
      %p481 = scmp.ne.s32.totalorder %s467, %s468
      %p482 = scmp.eq.s32.totalorder %s35, 1
      %p483 = por %p481, %p482
      %p485 = scmp.ne.s32.totalorder %s468, %s484
      %p486 = scmp.eq.s32.totalorder %s35, 0
      %p487 = por %p485, %p486
      %p488 = scmp.le.s32.totalorder 1, %s29
      %p489 = scmp.lt.s32.totalorder %s29, 3
      %p490 = pnand %p488, %p489
      %p491 = pneg %p490
      // Predicated region
      $region9: #{cnn_features_forward.1} parent=5 // pred_check
        _
      $region10: #{cnn_features_forward.1} parent=5 // pred_check_branch
        %493 = sbr.rel (%p490) target = $region12
      $region11: #{cnn_features_forward.1} parent=5 // pred_region
        %s494 = ssub.s32 %s29, 1
        // Predicated region
        $region13: #{cnn_features_forward.1} parent=11 // pred_check
          %p495 = pneg %p76
        $region14: #{cnn_features_forward.1} parent=11 // pred_check_branch
          %497 = sbr.rel (%p495) target = $region16
        $region15: #{cnn_features_forward.1} parent=11 // pred_region
          _
        $region16: #{cnn_features_forward.1} parent=11 // pred_fallthru
          _
        // Predicated region
        $region17: #{cnn_features_forward.1} parent=11 // pred_check
          %p498 = pneg %p97
        $region18: #{cnn_features_forward.1} parent=11 // pred_check_branch
          %500 = sbr.rel (%p498) target = $region20
        $region19: #{cnn_features_forward.1} parent=11 // pred_region
          _
        $region20: #{cnn_features_forward.1} parent=11 // pred_fallthru
          _
        // Predicated region
        $region21: #{cnn_features_forward.1} parent=11 // pred_check
          %p501 = pneg %p118
        $region22: #{cnn_features_forward.1} parent=11 // pred_check_branch
          %503 = sbr.rel (%p501) target = $region24
        $region23: #{cnn_features_forward.1} parent=11 // pred_region
          _
        $region24: #{cnn_features_forward.1} parent=11 // pred_fallthru
          _
        // Predicated region
        $region25: #{cnn_features_forward.1} parent=11 // pred_check
          %p504 = pneg %p139
        $region26: #{cnn_features_forward.1} parent=11 // pred_check_branch
          %506 = sbr.rel (%p504) target = $region28
        $region27: #{cnn_features_forward.1} parent=11 // pred_region
          _
        $region28: #{cnn_features_forward.1} parent=11 // pred_fallthru
          _
        // Predicated region
        $region29: #{cnn_features_forward.1} parent=11 // pred_check
          %p507 = pneg %p160
        $region30: #{cnn_features_forward.1} parent=11 // pred_check_branch
          %509 = sbr.rel (%p507) target = $region32
        $region31: #{cnn_features_forward.1} parent=11 // pred_region
          _
        $region32: #{cnn_features_forward.1} parent=11 // pred_fallthru
          _
        // Predicated region
        $region33: #{cnn_features_forward.1} parent=11 // pred_check
          %p510 = pneg %p181
        $region34: #{cnn_features_forward.1} parent=11 // pred_check_branch
          %512 = sbr.rel (%p510) target = $region36
        $region35: #{cnn_features_forward.1} parent=11 // pred_region
          _
        $region36: #{cnn_features_forward.1} parent=11 // pred_fallthru
          _
        // Predicated region
        $region37: #{cnn_features_forward.1} parent=11 // pred_check
          %p513 = pneg %p202
        $region38: #{cnn_features_forward.1} parent=11 // pred_check_branch
          %515 = sbr.rel (%p513) target = $region40
        $region39: #{cnn_features_forward.1} parent=11 // pred_region
          _
        $region40: #{cnn_features_forward.1} parent=11 // pred_fallthru
          _
        // Predicated region
        $region41: #{cnn_features_forward.1} parent=11 // pred_check
          %p516 = pneg %p223
        $region42: #{cnn_features_forward.1} parent=11 // pred_check_branch
          %518 = sbr.rel (%p516) target = $region44
        $region43: #{cnn_features_forward.1} parent=11 // pred_region
          _
        $region44: #{cnn_features_forward.1} parent=11 // pred_fallthru
          _
        // Predicated region
        $region45: #{cnn_features_forward.1} parent=11 // pred_check
          %p519 = pneg %p244
        $region46: #{cnn_features_forward.1} parent=11 // pred_check_branch
          %521 = sbr.rel (%p519) target = $region48
        $region47: #{cnn_features_forward.1} parent=11 // pred_region
          _
        $region48: #{cnn_features_forward.1} parent=11 // pred_fallthru
          _
        // Predicated region
        $region49: #{cnn_features_forward.1} parent=11 // pred_check
          %p522 = pneg %p265
        $region50: #{cnn_features_forward.1} parent=11 // pred_check_branch
          %524 = sbr.rel (%p522) target = $region52
        $region51: #{cnn_features_forward.1} parent=11 // pred_region
          _
        $region52: #{cnn_features_forward.1} parent=11 // pred_fallthru
          _
        // Predicated region
        $region53: #{cnn_features_forward.1} parent=11 // pred_check
          %p525 = pneg %p286
        $region54: #{cnn_features_forward.1} parent=11 // pred_check_branch
          %527 = sbr.rel (%p525) target = $region56
        $region55: #{cnn_features_forward.1} parent=11 // pred_region
          _
        $region56: #{cnn_features_forward.1} parent=11 // pred_fallthru
          _
        // Predicated region
        $region57: #{cnn_features_forward.1} parent=11 // pred_check
          %p528 = pneg %p307
        $region58: #{cnn_features_forward.1} parent=11 // pred_check_branch
          %530 = sbr.rel (%p528) target = $region60
        $region59: #{cnn_features_forward.1} parent=11 // pred_region
          _
        $region60: #{cnn_features_forward.1} parent=11 // pred_fallthru
          _
        // Predicated region
        $region61: #{cnn_features_forward.1} parent=11 // pred_check
          %p531 = pneg %p328
        $region62: #{cnn_features_forward.1} parent=11 // pred_check_branch
          %533 = sbr.rel (%p531) target = $region64
        $region63: #{cnn_features_forward.1} parent=11 // pred_region
          _
        $region64: #{cnn_features_forward.1} parent=11 // pred_fallthru
          _
        // Predicated region
        $region65: #{cnn_features_forward.1} parent=11 // pred_check
          %p534 = pneg %p349
        $region66: #{cnn_features_forward.1} parent=11 // pred_check_branch
          %536 = sbr.rel (%p534) target = $region68
        $region67: #{cnn_features_forward.1} parent=11 // pred_region
          _
        $region68: #{cnn_features_forward.1} parent=11 // pred_fallthru
          _
        // Predicated region
        $region69: #{cnn_features_forward.1} parent=11 // pred_check
          %p537 = pneg %p370
        $region70: #{cnn_features_forward.1} parent=11 // pred_check_branch
          %539 = sbr.rel (%p537) target = $region72
        $region71: #{cnn_features_forward.1} parent=11 // pred_region
          _
        $region72: #{cnn_features_forward.1} parent=11 // pred_fallthru
          _
        // Predicated region
        $region73: #{cnn_features_forward.1} parent=11 // pred_check
          %p540 = pneg %p391
        $region74: #{cnn_features_forward.1} parent=11 // pred_check_branch
          %542 = sbr.rel (%p540) target = $region76
        $region75: #{cnn_features_forward.1} parent=11 // pred_region
          _
        $region76: #{cnn_features_forward.1} parent=11 // pred_fallthru
          _
        // Predicated region
        $region77: #{cnn_features_forward.1} parent=11 // pred_check
          %p543 = pneg %p412
        $region78: #{cnn_features_forward.1} parent=11 // pred_check_branch
          %545 = sbr.rel (%p543) target = $region80
        $region79: #{cnn_features_forward.1} parent=11 // pred_region
          _
        $region80: #{cnn_features_forward.1} parent=11 // pred_fallthru
          _
        // Predicated region
        $region81: #{cnn_features_forward.1} parent=11 // pred_check
          %p546 = pneg %p433
        $region82: #{cnn_features_forward.1} parent=11 // pred_check_branch
          %548 = sbr.rel (%p546) target = $region84
        $region83: #{cnn_features_forward.1} parent=11 // pred_region
          _
        $region84: #{cnn_features_forward.1} parent=11 // pred_fallthru
          _
        // Predicated region
        $region85: #{cnn_features_forward.1} parent=11 // pred_check
          %p549 = pneg %p454
        $region86: #{cnn_features_forward.1} parent=11 // pred_check_branch
          %551 = sbr.rel (%p549) target = $region88
        $region87: #{cnn_features_forward.1} parent=11 // pred_region
          _
        $region88: #{cnn_features_forward.1} parent=11 // pred_fallthru
          _
      $region12: #{cnn_features_forward.1} parent=5 // pred_fallthru
        _
      %p552 = scmp.lt.s32.totalorder %s29, 2
      // Predicated region
      $region89: #{cnn_features_forward.1} parent=5 // pred_check
        %p553 = pneg %p552
      $region90: #{cnn_features_forward.1} parent=5 // pred_check_branch
        %555 = sbr.rel (%p553) target = $region92
      $region91: #{cnn_features_forward.1} parent=5 // pred_region
        // Predicated region
        $region93: #{cnn_features_forward.1} parent=91 // pred_check
          %p556 = pneg %p49
        $region94: #{cnn_features_forward.1} parent=91 // pred_check_branch
          %558 = sbr.rel (%p556) target = $region96
        $region95: #{cnn_features_forward.1} parent=91 // pred_region
          %p559 = scmp.lt.s32.totalorder %s29, 1
          %s560 = scalar_select %p559, %s29, 1
          %s561 = smul.addr %s560, 2
          %s562 = smul.addr %s561, 8
          %s563 = scalar_lea.vmem %s0, %s562
        $region96: #{cnn_features_forward.1} parent=91 // pred_fallthru
          _
      $region92: #{cnn_features_forward.1} parent=5 // pred_fallthru
        _
      %p564 = scmp.le.s32.totalorder 1, %s29
      %p565 = scmp.lt.s32.totalorder %s29, 3
      %p566 = pnand %p564, %p565
      %p567 = pneg %p566
      // Predicated region
      $region97: #{cnn_features_forward.1} parent=5 // pred_check
        _
      $region98: #{cnn_features_forward.1} parent=5 // pred_check_branch
        %569 = sbr.rel (%p566) target = $region100
      $region99: #{cnn_features_forward.1} parent=5 // pred_region
        %s570 = ssub.s32 %s29, 1
        %p571 = scmp.lt.s32.totalorder %s34, 1
        %s572 = scalar_select %p571, %s34, 1
        %s573 = smul.addr %s572, 2
        %s574 = smul.addr %s573, 8
        %s575 = scalar_lea.vmem %s0, %s574
        %p576 = pneg %p55
        %p577 = pneg %p52
        %p578 = pneg %p76
        %p579 = pneg %p73
        %p580 = pneg %p97
        %p581 = pneg %p94
        %p582 = pneg %p118
        %p583 = pneg %p115
        %p584 = pneg %p139
        %p585 = pneg %p136
        %p586 = pneg %p160
        %p587 = pneg %p157
        %p588 = pneg %p181
        %p589 = pneg %p178
        %p590 = pneg %p202
        %p591 = pneg %p199
        %p592 = pneg %p223
        %p593 = pneg %p220
        %p594 = pneg %p244
        %p595 = pneg %p241
        %p596 = pneg %p265
        %p597 = pneg %p262
        %p598 = pneg %p286
        %p599 = pneg %p283
        %p600 = pneg %p307
        %p601 = pneg %p304
        %p602 = pneg %p328
        %p603 = pneg %p325
        %p604 = pneg %p349
        %p605 = pneg %p346
        %p606 = pneg %p370
        %p607 = pneg %p367
        %p608 = pneg %p391
        %p609 = pneg %p388
        %p610 = pneg %p412
        %p611 = pneg %p409
        %p612 = pneg %p433
        %p613 = pneg %p430
        %p614 = pneg %p454
        %p615 = pneg %p451
        %p616 = pneg %p480
        %p617 = pneg %p477
        %s618 = sand.u32 %s467, 1
        %s619 = scalar_lea.sflag [#allocation4], %s618
        %s620 = sand.u32 %s467, 1
        %s621 = scalar_lea.vmem [#allocation3], %s620
        %p622 = scmp.lt.s32.totalorder %s34, 1
        %s623 = scalar_select %p622, %s34, 1
        %s624 = smul.addr %s623, 2
        %s625 = smul.addr %s624, 8
        %s626 = scalar_lea.vmem %s0, %s625
        %v628 = vld [vmem:[%s626] sm:$0xff]
        %v629 = vld [vmem:[%s626 + $0x8] sm:$0xff]
        %632 = vrot.lane.b32.xlu0 %v628, 17
        %v633 = vpop.permute.xlu0 %632
        %634 = vrot.lane.b32.xlu0 %v629, 17
        %v635 = vpop.permute.xlu0 %634
        %vm636 = vcmask 138240
        %v637 = vsel %vm636, %v633, %v635
        %v641 = vsel %vm636, 0.0, %v633
        %v642 = vsel %vm636, %v635, 0.0
        %v643 = vld [vmem:[%s3] sm:$0x77]
        %v645 = vlaneseq
        %v646 = vshrl.u32 %v645, 7
        %v647 = vsub.s32 0, %v646
        %v648 = vrot.slane %v643, %v647
        %v649 = vlaneseq
        %v650 = vshrl.u32 %v649, 7
        %v651 = vsub.s32 4, %v650
        %v652 = vrot.slane %v643, %v651
        %v655 = vlaneseq
        %v656 = vshrl.u32 %v655, 7
        %v657 = vsub.s32 0, %v656
        %v658 = vrot.slane %v648, %v657
        %v659 = vlaneseq
        %v660 = vshrl.u32 %v659, 7
        %v661 = vsub.s32 0, %v660
        %v662 = vrot.slane %v652, %v661
        %v663 = vmul.f32 %v641, %v658
        %v664 = vmul.f32 %v637, %v662
        %v665 = vpack.c.bf16 %v663, %v663
        %v666 = vpack.c.bf16 %v664, %v664
        %v669 = vunpack.c.l.b16 %v665
        %v670 = vunpack.c.l.b16 %v666
        %v671 = vpack.c.b16 %v670, %v669
        %673 = vst [vmem:[#allocation2] sm:$0xff] %v671
        %v674 = vlaneseq
        %v675 = vshrl.u32 %v674, 7
        %v676 = vsub.s32 1, %v675
        %v677 = vrot.slane %v643, %v676
        %v678 = vlaneseq
        %v679 = vshrl.u32 %v678, 7
        %v680 = vsub.s32 5, %v679
        %v681 = vrot.slane %v643, %v680
        %v684 = vlaneseq
        %v685 = vshrl.u32 %v684, 7
        %v686 = vsub.s32 1, %v685
        %v687 = vrot.slane %v677, %v686
        %v688 = vlaneseq
        %v689 = vshrl.u32 %v688, 7
        %v690 = vsub.s32 1, %v689
        %v691 = vrot.slane %v681, %v690
        %694 = vrot.lane.b32.xlu0 %v687, 1
        %v695 = vpop.permute.xlu0 %694
        %696 = vrot.lane.b32.xlu0 %v691, 1
        %v697 = vpop.permute.xlu0 %696
        %vm698 = vcmask 7168
        %v699 = vsel %vm698, %v695, %v697
        %v703 = vmul.f32 %v641, %v695
        %v704 = vmul.f32 %v637, %v699
        %v705 = vmul.f32 %v642, %v697
        %v706 = vpack.c.bf16 %v703, %v703
        %v707 = vpack.c.bf16 %v704, %v704
        %v708 = vpack.c.bf16 %v705, %v705
        %v712 = vunpack.c.l.b16 %v706
        %v713 = vunpack.c.l.b16 %v707
        %v714 = vunpack.c.l.b16 %v708
        %v715 = vpack.c.b16 %v713, %v712
        %v716 = vpack.c.b16 %v714, %v714
        %717 = vrot.lane.b32.xlu0 %v715, 127
        %v718 = vpop.permute.xlu0 %717
        %719 = vrot.lane.b32.xlu0 %v716, 127
        %v720 = vpop.permute.xlu0 %719
        %v721 = vrot.slane %v718, 4
        %v722 = vrot.slane %v720, 4
        %vm723 = vcmask 1043456
        %v724 = vsel %vm723, %v721, %v722
        %vm725 = vcmask 1039360
        %v726 = vsel %vm725, %v718, %v724
        %728 = vst [vmem:[#allocation2 + $0x8] sm:$0xff] %v726
        %v729 = vlaneseq
        %v730 = vshrl.u32 %v729, 7
        %v731 = vsub.s32 2, %v730
        %v732 = vrot.slane %v643, %v731
        %v733 = vlaneseq
        %v734 = vshrl.u32 %v733, 7
        %v735 = vsub.s32 6, %v734
        %v736 = vrot.slane %v643, %v735
        %v739 = vlaneseq
        %v740 = vshrl.u32 %v739, 7
        %v741 = vsub.s32 2, %v740
        %v742 = vrot.slane %v732, %v741
        %v743 = vlaneseq
        %v744 = vshrl.u32 %v743, 7
        %v745 = vsub.s32 2, %v744
        %v746 = vrot.slane %v736, %v745
        %749 = vrot.lane.b32.xlu0 %v742, 2
        %v750 = vpop.permute.xlu0 %749
        %751 = vrot.lane.b32.xlu0 %v746, 2
        %v752 = vpop.permute.xlu0 %751
        %vm753 = vcmask 15360
        %v754 = vsel %vm753, %v750, %v752
        %v758 = vmul.f32 %v641, %v750
        %v759 = vmul.f32 %v637, %v754
        %v760 = vmul.f32 %v642, %v752
        %v761 = vpack.c.bf16 %v758, %v758
        %v762 = vpack.c.bf16 %v759, %v759
        %v763 = vpack.c.bf16 %v760, %v760
        %v767 = vunpack.c.l.b16 %v761
        %v768 = vunpack.c.l.b16 %v762
        %v769 = vunpack.c.l.b16 %v763
        %v770 = vpack.c.b16 %v768, %v767
        %v771 = vpack.c.b16 %v769, %v769
        %772 = vrot.lane.b32.xlu0 %v770, 126
        %v773 = vpop.permute.xlu0 %772
        %774 = vrot.lane.b32.xlu0 %v771, 126
        %v775 = vpop.permute.xlu0 %774
        %v776 = vrot.slane %v773, 4
        %v777 = vrot.slane %v775, 4
        %v778 = vsel %vm723, %v776, %v777
        %vm779 = vcmask 1031168
        %v780 = vsel %vm779, %v773, %v778
        %782 = vst [vmem:[#allocation2 + $0x10] sm:$0xff] %v780
        %785 = vrot.lane.b32.xlu0 %v658, 16
        %v786 = vpop.permute.xlu0 %785
        %787 = vrot.lane.b32.xlu0 %v662, 16
        %v788 = vpop.permute.xlu0 %787
        %vm789 = vcmask 130048
        %v790 = vsel %vm789, %v786, %v788
        %v794 = vmul.f32 %v641, %v786
        %v795 = vmul.f32 %v637, %v790
        %v796 = vmul.f32 %v642, %v788
        %v797 = vpack.c.bf16 %v794, %v794
        %v798 = vpack.c.bf16 %v795, %v795
        %v799 = vpack.c.bf16 %v796, %v796
        %v803 = vunpack.c.l.b16 %v797
        %v804 = vunpack.c.l.b16 %v798
        %v805 = vunpack.c.l.b16 %v799
        %v806 = vpack.c.b16 %v804, %v803
        %v807 = vpack.c.b16 %v805, %v805
        %808 = vrot.lane.b32.xlu0 %v806, 112
        %v809 = vpop.permute.xlu0 %808
        %810 = vrot.lane.b32.xlu0 %v807, 112
        %v811 = vpop.permute.xlu0 %810
        %v812 = vrot.slane %v809, 4
        %v813 = vrot.slane %v811, 4
        %v814 = vsel %vm723, %v812, %v813
        %vm815 = vcmask 916480
        %v816 = vsel %vm815, %v809, %v814
        %818 = vst [vmem:[#allocation2 + $0x18] sm:$0xff] %v816
        %819 = vrot.lane.b32.xlu0 %v687, 17
        %v820 = vpop.permute.xlu0 %819
        %821 = vrot.lane.b32.xlu0 %v691, 17
        %v822 = vpop.permute.xlu0 %821
        %v823 = vsel %vm636, %v820, %v822
        %v827 = vmul.f32 %v641, %v820
        %v828 = vmul.f32 %v637, %v823
        %v829 = vmul.f32 %v642, %v822
        %v830 = vpack.c.bf16 %v827, %v827
        %v831 = vpack.c.bf16 %v828, %v828
        %v832 = vpack.c.bf16 %v829, %v829
        %v836 = vunpack.c.l.b16 %v830
        %v837 = vunpack.c.l.b16 %v831
        %v838 = vunpack.c.l.b16 %v832
        %v839 = vpack.c.b16 %v837, %v836
        %v840 = vpack.c.b16 %v838, %v838
        %841 = vrot.lane.b32.xlu0 %v839, 111
        %v842 = vpop.permute.xlu0 %841
        %843 = vrot.lane.b32.xlu0 %v840, 111
        %v844 = vpop.permute.xlu0 %843
        %v845 = vrot.slane %v842, 4
        %v846 = vrot.slane %v844, 4
        %v847 = vsel %vm723, %v845, %v846
        %vm848 = vcmask 908288
        %v849 = vsel %vm848, %v842, %v847
        %851 = vst [vmem:[#allocation2 + $0x20] sm:$0xff] %v849
        %852 = vrot.lane.b32.xlu0 %v742, 18
        %v853 = vpop.permute.xlu0 %852
        %854 = vrot.lane.b32.xlu0 %v746, 18
        %v855 = vpop.permute.xlu0 %854
        %vm856 = vcmask 146432
        %v857 = vsel %vm856, %v853, %v855
        %v861 = vmul.f32 %v641, %v853
        %v862 = vmul.f32 %v637, %v857
        %v863 = vmul.f32 %v642, %v855
        %v864 = vpack.c.bf16 %v861, %v861
        %v865 = vpack.c.bf16 %v862, %v862
        %v866 = vpack.c.bf16 %v863, %v863
        %v870 = vunpack.c.l.b16 %v864
        %v871 = vunpack.c.l.b16 %v865
        %v872 = vunpack.c.l.b16 %v866
        %v873 = vpack.c.b16 %v871, %v870
        %v874 = vpack.c.b16 %v872, %v872
        %875 = vrot.lane.b32.xlu0 %v873, 110
        %v876 = vpop.permute.xlu0 %875
        %877 = vrot.lane.b32.xlu0 %v874, 110
        %v878 = vpop.permute.xlu0 %877
        %v879 = vrot.slane %v876, 4
        %v880 = vrot.slane %v878, 4
        %v881 = vsel %vm723, %v879, %v880
        %vm882 = vcmask 900096
        %v883 = vsel %vm882, %v876, %v881
        %885 = vst [vmem:[#allocation2 + $0x28] sm:$0xff] %v883
        %886 = vrot.lane.b32.xlu0 %v658, 32
        %v887 = vpop.permute.xlu0 %886
        %888 = vrot.lane.b32.xlu0 %v662, 32
        %v889 = vpop.permute.xlu0 %888
        %vm890 = vcmask 261120
        %v891 = vsel %vm890, %v887, %v889
        %v895 = vmul.f32 %v641, %v887
        %v896 = vmul.f32 %v637, %v891
        %v897 = vmul.f32 %v642, %v889
        %v898 = vpack.c.bf16 %v895, %v895
        %v899 = vpack.c.bf16 %v896, %v896
        %v900 = vpack.c.bf16 %v897, %v897
        %v904 = vunpack.c.l.b16 %v898
        %v905 = vunpack.c.l.b16 %v899
        %v906 = vunpack.c.l.b16 %v900
        %v907 = vpack.c.b16 %v905, %v904
        %v908 = vpack.c.b16 %v906, %v906
        %909 = vrot.lane.b32.xlu0 %v907, 96
        %v910 = vpop.permute.xlu0 %909
        %911 = vrot.lane.b32.xlu0 %v908, 96
        %v912 = vpop.permute.xlu0 %911
        %v913 = vrot.slane %v910, 4
        %v914 = vrot.slane %v912, 4
        %v915 = vsel %vm723, %v913, %v914
        %vm916 = vcmask 785408
        %v917 = vsel %vm916, %v910, %v915
        %919 = vst [vmem:[#allocation2 + $0x30] sm:$0xff] %v917
        %920 = vrot.lane.b32.xlu0 %v687, 33
        %v921 = vpop.permute.xlu0 %920
        %922 = vrot.lane.b32.xlu0 %v691, 33
        %v923 = vpop.permute.xlu0 %922
        %vm924 = vcmask 269312
        %v925 = vsel %vm924, %v921, %v923
        %v929 = vmul.f32 %v641, %v921
        %v930 = vmul.f32 %v637, %v925
        %v931 = vmul.f32 %v642, %v923
        %v932 = vpack.c.bf16 %v929, %v929
        %v933 = vpack.c.bf16 %v930, %v930
        %v934 = vpack.c.bf16 %v931, %v931
        %v938 = vunpack.c.l.b16 %v932
        %v939 = vunpack.c.l.b16 %v933
        %v940 = vunpack.c.l.b16 %v934
        %v941 = vpack.c.b16 %v939, %v938
        %v942 = vpack.c.b16 %v940, %v940
        %943 = vrot.lane.b32.xlu0 %v941, 95
        %v944 = vpop.permute.xlu0 %943
        %945 = vrot.lane.b32.xlu0 %v942, 95
        %v946 = vpop.permute.xlu0 %945
        %v947 = vrot.slane %v944, 4
        %v948 = vrot.slane %v946, 4
        %v949 = vsel %vm723, %v947, %v948
        %vm950 = vcmask 777216
        %v951 = vsel %vm950, %v944, %v949
        %953 = vst [vmem:[#allocation2 + $0x38] sm:$0xff] %v951
        %954 = vrot.lane.b32.xlu0 %v742, 34
        %v955 = vpop.permute.xlu0 %954
        %956 = vrot.lane.b32.xlu0 %v746, 34
        %v957 = vpop.permute.xlu0 %956
        %vm958 = vcmask 277504
        %v959 = vsel %vm958, %v955, %v957
        %v963 = vmul.f32 %v641, %v955
        %v964 = vmul.f32 %v637, %v959
        %v965 = vmul.f32 %v642, %v957
        %v966 = vpack.c.bf16 %v963, %v963
        %v967 = vpack.c.bf16 %v964, %v964
        %v968 = vpack.c.bf16 %v965, %v965
        %v972 = vunpack.c.l.b16 %v966
        %v973 = vunpack.c.l.b16 %v967
        %v974 = vunpack.c.l.b16 %v968
        %v975 = vpack.c.b16 %v973, %v972
        %v976 = vpack.c.b16 %v974, %v974
        %977 = vrot.lane.b32.xlu0 %v975, 94
        %v978 = vpop.permute.xlu0 %977
        %979 = vrot.lane.b32.xlu0 %v976, 94
        %v980 = vpop.permute.xlu0 %979
        %v981 = vrot.slane %v978, 4
        %v982 = vrot.slane %v980, 4
        %v983 = vsel %vm723, %v981, %v982
        %vm984 = vcmask 769024
        %v985 = vsel %vm984, %v978, %v983
        %987 = vst [vmem:[#allocation2 + $0x40] sm:$0xff] %v985
        %v988 = vld [vmem:[%s1] sm:$0xf]
        %v989 = vld [vmem:[#allocation2] sm:$0xff]
        %v990 = vld [vmem:[#allocation2 + $0x8] sm:$0xff]
        %v991 = vld [vmem:[#allocation2 + $0x10] sm:$0xff]
        %v992 = vld [vmem:[#allocation2 + $0x18] sm:$0xff]
        %v993 = vld [vmem:[#allocation2 + $0x20] sm:$0xff]
        %v994 = vld [vmem:[#allocation2 + $0x28] sm:$0xff]
        %v995 = vld [vmem:[#allocation2 + $0x30] sm:$0xff]
        %v996 = vld [vmem:[#allocation2 + $0x38] sm:$0xff]
        %v997 = vld [vmem:[#allocation2 + $0x40] sm:$0xff]
        %v998 = vld [vmem:[%s2] sm:$0xff]
        %1000 = vset.pattern.permute.xlu0 0
        %1001 = vperm.xlu0 %1000, %v998
        %v1002 = vpop.permute.xlu0 %1001
        %v1013 = vunpack.c.l.b16 %v989
        %v1014 = vunpack.c.h.b16 %v989
        %v1015 = vunpack.c.l.b16 %v990
        %v1016 = vunpack.c.h.b16 %v990
        %v1017 = vunpack.c.l.b16 %v991
        %v1018 = vunpack.c.h.b16 %v991
        %v1019 = vunpack.c.l.b16 %v992
        %v1020 = vunpack.c.h.b16 %v992
        %v1021 = vunpack.c.l.b16 %v993
        %v1022 = vunpack.c.h.b16 %v993
        %v1023 = vunpack.c.l.b16 %v994
        %v1024 = vunpack.c.h.b16 %v994
        %v1025 = vunpack.c.l.b16 %v995
        %v1026 = vunpack.c.h.b16 %v995
        %v1027 = vunpack.c.l.b16 %v996
        %v1028 = vunpack.c.h.b16 %v996
        %v1029 = vunpack.c.l.b16 %v997
        %v1030 = vunpack.c.h.b16 %v997
        %v1031 = vpack.c.b16 %v1015, %v1013
        %v1032 = vpack.c.b16 %v1016, %v1014
        %v1033 = vpack.c.b16 %v1019, %v1017
        %v1034 = vpack.c.b16 %v1020, %v1018
        %v1035 = vpack.c.b16 %v1023, %v1021
        %v1036 = vpack.c.b16 %v1024, %v1022
        %v1037 = vpack.c.b16 %v1027, %v1025
        %v1038 = vpack.c.b16 %v1028, %v1026
        %v1039 = vpack.c.b16 %v1029, %v1029
        %v1040 = vpack.c.b16 %v1030, %v1030
        %vm1049 = vcmask 588800
        %v1051 = vsel %vm1049, %v988, 0
        %vm1053 = vcmask 1043456
        %v1055 = vsel %vm1053, %v1039, 0
        %v1058 = vsel %vm1053, %v1040, 0
        %1060 = vmatprep.subr.bf16.mxu0 0
        %1061 = vmatpush1.bf16.msra.mxu0 0
        %1062 = vmatprep.subr.bf16.mxu0 0
        %1063 = vmatpush1.bf16.msra.mxu0 0
        %1064 = vmatprep.subr.bf16.mxu0 0
        %1065 = vmatpush1.bf16.msra.mxu0 0
        %1066 = vmatprep.subr.bf16.mxu0 %v1058
        %1067 = vmatpush1.bf16.msra.mxu0 %v1055
        %1068 = vmatprep.subr.bf16.mxu0 %v1038
        %1069 = vmatpush1.bf16.msra.mxu0 %v1037
        %1070 = vmatprep.subr.bf16.mxu0 %v1036
        %1071 = vmatpush1.bf16.msra.mxu0 %v1035
        %1072 = vmatprep.subr.bf16.mxu0 %v1034
        %1073 = vmatpush1.bf16.msra.mxu0 %v1033
        %1074 = vmatprep.subr.bf16.mxu0 %v1032
        %1075 = vmatpush1.bf16.msra.mxu0 %v1031
        %1076 = vmatprep.subr.bf16.mxu0 0
        %1077 = vmatpush2.bf16.msra.mxu0 0
        %1078 = vmatprep.subr.bf16.mxu0 0
        %1079 = vmatpush2.bf16.msra.mxu0 0
        %1080 = vmatprep.subr.bf16.mxu0 0
        %1081 = vmatpush2.bf16.msra.mxu0 0
        %1082 = vmatprep.subr.bf16.mxu0 0
        %1083 = vmatpush2.bf16.msra.mxu0 0
        %1084 = vmatprep.subr.bf16.mxu0 0
        %1085 = vmatpush2.bf16.msra.mxu0 0
        %1086 = vmatprep.subr.bf16.mxu0 0
        %1087 = vmatpush2.bf16.msra.mxu0 0
        %1088 = vmatprep.subr.bf16.mxu0 0
        %1089 = vmatpush2.bf16.msra.mxu0 0
        %1090 = vmatprep.subr.bf16.mxu0 0
        %1091 = vmatpush2.bf16.msra.mxu0 0
        %1092 = vmatprep.mubr.bf16.mxu0 0
        %1093 = vmatmul.mubr.bf16.gmra.mxu0 %v1051
        %v1094 = vpop.f32.mrf.mxu0
        %v1095 = vadd.f32 %v1002, %v1094
        %v1096 = vpop.f32.mrf.mxu0
        %v1097 = vadd.f32 %v1002, %v1096
        %v1098 = vpop.f32.mrf.mxu0
        %v1099 = vpop.f32.mrf.mxu0
        %1100 = vdwg.mxu0
        %v1101 = vsub.f32 0.0, %v1095
        %v1102 = vsub.f32 0.0, %v1097
        %v1103 = vmul.f32 %v1101, 1.442695
        %v1104 = vpow.pop %v1103
        %v1105 = vmul.f32 %v1102, 1.442695
        %v1106 = vpow.pop %v1105
        %v1107 = vadd.f32 %v1104, 1.0
        %v1108 = vadd.f32 %v1106, 1.0
        %v1109 = vrcp.pop %v1107
        %v1110 = vmul.f32 1.0, %v1109
        %v1111 = vrcp.pop %v1108
        %v1112 = vmul.f32 1.0, %v1111
        %v1113 = vmul.f32 %v1095, %v1110
        %v1114 = vmul.f32 %v1097, %v1112
        %1117 = vrot.lane.b32.xlu0 %v1113, 34
        %v1118 = vpop.permute.xlu0 %1117
        %1119 = vrot.lane.b32.xlu0 %v1114, 34
        %v1120 = vpop.permute.xlu0 %1119
        %v1121 = vsel %vm958, %v1118, %v1120
        %v1125 = vsel %vm958, 0.0, %v1118
        %v1126 = vsel %vm958, %v1120, 0.0
        %v1127 = vld [vmem:[%s8] sm:$0x1f]
        %v1128 = vld [vmem:[%s8 + $0x8] sm:$0x1f]
        %v1129 = vlaneseq
        %v1130 = vshrl.u32 %v1129, 7
        %v1131 = vsub.s32 0, %v1130
        %v1132 = vrot.slane %v1127, %v1131
        %v1133 = vlaneseq
        %v1134 = vshrl.u32 %v1133, 7
        %v1135 = vsub.s32 0, %v1134
        %v1136 = vrot.slane %v1128, %v1135
        %v1137 = vmul.f32 %v1125, %v1132
        %v1138 = vmul.f32 %v1121, %v1136
        %v1139 = vpack.c.bf16 %v1137, %v1137
        %v1140 = vpack.c.bf16 %v1138, %v1138
        %v1143 = vunpack.c.l.b16 %v1139
        %v1144 = vunpack.c.l.b16 %v1140
        %v1145 = vpack.c.b16 %v1144, %v1143
        %1147 = vst [vmem:[#allocation2] sm:$0xff] %v1145
        %v1148 = vlaneseq
        %v1149 = vshrl.u32 %v1148, 7
        %v1150 = vsub.s32 1, %v1149
        %v1151 = vrot.slane %v1127, %v1150
        %v1152 = vlaneseq
        %v1153 = vshrl.u32 %v1152, 7
        %v1154 = vsub.s32 1, %v1153
        %v1155 = vrot.slane %v1128, %v1154
        %1158 = vrot.lane.b32.xlu0 %v1151, 1
        %v1159 = vpop.permute.xlu0 %1158
        %1160 = vrot.lane.b32.xlu0 %v1155, 1
        %v1161 = vpop.permute.xlu0 %1160
        %v1162 = vsel %vm698, %v1159, %v1161
        %v1166 = vmul.f32 %v1125, %v1159
        %v1167 = vmul.f32 %v1121, %v1162
        %v1168 = vmul.f32 %v1126, %v1161
        %v1169 = vpack.c.bf16 %v1166, %v1166
        %v1170 = vpack.c.bf16 %v1167, %v1167
        %v1171 = vpack.c.bf16 %v1168, %v1168
        %v1175 = vunpack.c.l.b16 %v1169
        %v1176 = vunpack.c.l.b16 %v1170
        %v1177 = vunpack.c.l.b16 %v1171
        %v1178 = vpack.c.b16 %v1176, %v1175
        %v1179 = vpack.c.b16 %v1177, %v1177
        %1180 = vrot.lane.b32.xlu0 %v1178, 127
        %v1181 = vpop.permute.xlu0 %1180
        %1182 = vrot.lane.b32.xlu0 %v1179, 127
        %v1183 = vpop.permute.xlu0 %1182
        %v1184 = vrot.slane %v1181, 4
        %v1185 = vrot.slane %v1183, 4
        %v1186 = vsel %vm723, %v1184, %v1185
        %v1187 = vsel %vm725, %v1181, %v1186
        %1189 = vst [vmem:[#allocation2 + $0x8] sm:$0xff] %v1187
        %v1190 = vlaneseq
        %v1191 = vshrl.u32 %v1190, 7
        %v1192 = vsub.s32 2, %v1191
        %v1193 = vrot.slane %v1127, %v1192
        %v1194 = vlaneseq
        %v1195 = vshrl.u32 %v1194, 7
        %v1196 = vsub.s32 2, %v1195
        %v1197 = vrot.slane %v1128, %v1196
        %1200 = vrot.lane.b32.xlu0 %v1193, 2
        %v1201 = vpop.permute.xlu0 %1200
        %1202 = vrot.lane.b32.xlu0 %v1197, 2
        %v1203 = vpop.permute.xlu0 %1202
        %v1204 = vsel %vm753, %v1201, %v1203
        %v1208 = vmul.f32 %v1125, %v1201
        %v1209 = vmul.f32 %v1121, %v1204
        %v1210 = vmul.f32 %v1126, %v1203
        %v1211 = vpack.c.bf16 %v1208, %v1208
        %v1212 = vpack.c.bf16 %v1209, %v1209
        %v1213 = vpack.c.bf16 %v1210, %v1210
        %v1217 = vunpack.c.l.b16 %v1211
        %v1218 = vunpack.c.l.b16 %v1212
        %v1219 = vunpack.c.l.b16 %v1213
        %v1220 = vpack.c.b16 %v1218, %v1217
        %v1221 = vpack.c.b16 %v1219, %v1219
        %1222 = vrot.lane.b32.xlu0 %v1220, 126
        %v1223 = vpop.permute.xlu0 %1222
        %1224 = vrot.lane.b32.xlu0 %v1221, 126
        %v1225 = vpop.permute.xlu0 %1224
        %v1226 = vrot.slane %v1223, 4
        %v1227 = vrot.slane %v1225, 4
        %v1228 = vsel %vm723, %v1226, %v1227
        %v1229 = vsel %vm779, %v1223, %v1228
        %1231 = vst [vmem:[#allocation2 + $0x10] sm:$0xff] %v1229
        %v1232 = vlaneseq
        %v1233 = vshrl.u32 %v1232, 7
        %v1234 = vsub.s32 3, %v1233
        %v1235 = vrot.slane %v1127, %v1234
        %v1236 = vlaneseq
        %v1237 = vshrl.u32 %v1236, 7
        %v1238 = vsub.s32 3, %v1237
        %v1239 = vrot.slane %v1128, %v1238
        %1242 = vrot.lane.b32.xlu0 %v1235, 3
        %v1243 = vpop.permute.xlu0 %1242
        %1244 = vrot.lane.b32.xlu0 %v1239, 3
        %v1245 = vpop.permute.xlu0 %1244
        %vm1246 = vcmask 23552
        %v1247 = vsel %vm1246, %v1243, %v1245
        %v1251 = vmul.f32 %v1125, %v1243
        %v1252 = vmul.f32 %v1121, %v1247
        %v1253 = vmul.f32 %v1126, %v1245
        %v1254 = vpack.c.bf16 %v1251, %v1251
        %v1255 = vpack.c.bf16 %v1252, %v1252
        %v1256 = vpack.c.bf16 %v1253, %v1253
        %v1260 = vunpack.c.l.b16 %v1254
        %v1261 = vunpack.c.l.b16 %v1255
        %v1262 = vunpack.c.l.b16 %v1256
        %v1263 = vpack.c.b16 %v1261, %v1260
        %v1264 = vpack.c.b16 %v1262, %v1262
        %1265 = vrot.lane.b32.xlu0 %v1263, 125
        %v1266 = vpop.permute.xlu0 %1265
        %1267 = vrot.lane.b32.xlu0 %v1264, 125
        %v1268 = vpop.permute.xlu0 %1267
        %v1269 = vrot.slane %v1266, 4
        %v1270 = vrot.slane %v1268, 4
        %v1271 = vsel %vm723, %v1269, %v1270
        %vm1272 = vcmask 1022976
        %v1273 = vsel %vm1272, %v1266, %v1271
        %1275 = vst [vmem:[#allocation2 + $0x18] sm:$0xff] %v1273
        %v1276 = vlaneseq
        %v1277 = vshrl.u32 %v1276, 7
        %v1278 = vsub.s32 4, %v1277
        %v1279 = vrot.slane %v1127, %v1278
        %v1280 = vlaneseq
        %v1281 = vshrl.u32 %v1280, 7
        %v1282 = vsub.s32 4, %v1281
        %v1283 = vrot.slane %v1128, %v1282
        %1286 = vrot.lane.b32.xlu0 %v1279, 4
        %v1287 = vpop.permute.xlu0 %1286
        %1288 = vrot.lane.b32.xlu0 %v1283, 4
        %v1289 = vpop.permute.xlu0 %1288
        %vm1290 = vcmask 31744
        %v1291 = vsel %vm1290, %v1287, %v1289
        %v1295 = vmul.f32 %v1125, %v1287
        %v1296 = vmul.f32 %v1121, %v1291
        %v1297 = vmul.f32 %v1126, %v1289
        %v1298 = vpack.c.bf16 %v1295, %v1295
        %v1299 = vpack.c.bf16 %v1296, %v1296
        %v1300 = vpack.c.bf16 %v1297, %v1297
        %v1304 = vunpack.c.l.b16 %v1298
        %v1305 = vunpack.c.l.b16 %v1299
        %v1306 = vunpack.c.l.b16 %v1300
        %v1307 = vpack.c.b16 %v1305, %v1304
        %v1308 = vpack.c.b16 %v1306, %v1306
        %1309 = vrot.lane.b32.xlu0 %v1307, 124
        %v1310 = vpop.permute.xlu0 %1309
        %1311 = vrot.lane.b32.xlu0 %v1308, 124
        %v1312 = vpop.permute.xlu0 %1311
        %v1313 = vrot.slane %v1310, 4
        %v1314 = vrot.slane %v1312, 4
        %v1315 = vsel %vm723, %v1313, %v1314
        %vm1316 = vcmask 1014784
        %v1317 = vsel %vm1316, %v1310, %v1315
        %1319 = vst [vmem:[#allocation2 + $0x20] sm:$0xff] %v1317
        %1322 = vrot.lane.b32.xlu0 %v1132, 16
        %v1323 = vpop.permute.xlu0 %1322
        %1324 = vrot.lane.b32.xlu0 %v1136, 16
        %v1325 = vpop.permute.xlu0 %1324
        %v1326 = vsel %vm789, %v1323, %v1325
        %v1330 = vmul.f32 %v1125, %v1323
        %v1331 = vmul.f32 %v1121, %v1326
        %v1332 = vmul.f32 %v1126, %v1325
        %v1333 = vpack.c.bf16 %v1330, %v1330
        %v1334 = vpack.c.bf16 %v1331, %v1331
        %v1335 = vpack.c.bf16 %v1332, %v1332
        %v1339 = vunpack.c.l.b16 %v1333
        %v1340 = vunpack.c.l.b16 %v1334
        %v1341 = vunpack.c.l.b16 %v1335
        %v1342 = vpack.c.b16 %v1340, %v1339
        %v1343 = vpack.c.b16 %v1341, %v1341
        %1344 = vrot.lane.b32.xlu0 %v1342, 112
        %v1345 = vpop.permute.xlu0 %1344
        %1346 = vrot.lane.b32.xlu0 %v1343, 112
        %v1347 = vpop.permute.xlu0 %1346
        %v1348 = vrot.slane %v1345, 4
        %v1349 = vrot.slane %v1347, 4
        %v1350 = vsel %vm723, %v1348, %v1349
        %v1351 = vsel %vm815, %v1345, %v1350
        %1353 = vst [vmem:[#allocation2 + $0x28] sm:$0xff] %v1351
        %1354 = vrot.lane.b32.xlu0 %v1151, 17
        %v1355 = vpop.permute.xlu0 %1354
        %1356 = vrot.lane.b32.xlu0 %v1155, 17
        %v1357 = vpop.permute.xlu0 %1356
        %v1358 = vsel %vm636, %v1355, %v1357
        %v1362 = vmul.f32 %v1125, %v1355
        %v1363 = vmul.f32 %v1121, %v1358
        %v1364 = vmul.f32 %v1126, %v1357
        %v1365 = vpack.c.bf16 %v1362, %v1362
        %v1366 = vpack.c.bf16 %v1363, %v1363
        %v1367 = vpack.c.bf16 %v1364, %v1364
        %v1371 = vunpack.c.l.b16 %v1365
        %v1372 = vunpack.c.l.b16 %v1366
        %v1373 = vunpack.c.l.b16 %v1367
        %v1374 = vpack.c.b16 %v1372, %v1371
        %v1375 = vpack.c.b16 %v1373, %v1373
        %1376 = vrot.lane.b32.xlu0 %v1374, 111
        %v1377 = vpop.permute.xlu0 %1376
        %1378 = vrot.lane.b32.xlu0 %v1375, 111
        %v1379 = vpop.permute.xlu0 %1378
        %v1380 = vrot.slane %v1377, 4
        %v1381 = vrot.slane %v1379, 4
        %v1382 = vsel %vm723, %v1380, %v1381
        %v1383 = vsel %vm848, %v1377, %v1382
        %1385 = vst [vmem:[#allocation2 + $0x30] sm:$0xff] %v1383
        %1386 = vrot.lane.b32.xlu0 %v1193, 18
        %v1387 = vpop.permute.xlu0 %1386
        %1388 = vrot.lane.b32.xlu0 %v1197, 18
        %v1389 = vpop.permute.xlu0 %1388
        %v1390 = vsel %vm856, %v1387, %v1389
        %v1394 = vmul.f32 %v1125, %v1387
        %v1395 = vmul.f32 %v1121, %v1390
        %v1396 = vmul.f32 %v1126, %v1389
        %v1397 = vpack.c.bf16 %v1394, %v1394
        %v1398 = vpack.c.bf16 %v1395, %v1395
        %v1399 = vpack.c.bf16 %v1396, %v1396
        %v1403 = vunpack.c.l.b16 %v1397
        %v1404 = vunpack.c.l.b16 %v1398
        %v1405 = vunpack.c.l.b16 %v1399
        %v1406 = vpack.c.b16 %v1404, %v1403
        %v1407 = vpack.c.b16 %v1405, %v1405
        %1408 = vrot.lane.b32.xlu0 %v1406, 110
        %v1409 = vpop.permute.xlu0 %1408
        %1410 = vrot.lane.b32.xlu0 %v1407, 110
        %v1411 = vpop.permute.xlu0 %1410
        %v1412 = vrot.slane %v1409, 4
        %v1413 = vrot.slane %v1411, 4
        %v1414 = vsel %vm723, %v1412, %v1413
        %v1415 = vsel %vm882, %v1409, %v1414
        %1417 = vst [vmem:[#allocation2 + $0x38] sm:$0xff] %v1415
        %1418 = vrot.lane.b32.xlu0 %v1235, 19
        %v1419 = vpop.permute.xlu0 %1418
        %1420 = vrot.lane.b32.xlu0 %v1239, 19
        %v1421 = vpop.permute.xlu0 %1420
        %vm1422 = vcmask 154624
        %v1423 = vsel %vm1422, %v1419, %v1421
        %v1427 = vmul.f32 %v1125, %v1419
        %v1428 = vmul.f32 %v1121, %v1423
        %v1429 = vmul.f32 %v1126, %v1421
        %v1430 = vpack.c.bf16 %v1427, %v1427
        %v1431 = vpack.c.bf16 %v1428, %v1428
        %v1432 = vpack.c.bf16 %v1429, %v1429
        %v1436 = vunpack.c.l.b16 %v1430
        %v1437 = vunpack.c.l.b16 %v1431
        %v1438 = vunpack.c.l.b16 %v1432
        %v1439 = vpack.c.b16 %v1437, %v1436
        %v1440 = vpack.c.b16 %v1438, %v1438
        %1441 = vrot.lane.b32.xlu0 %v1439, 109
        %v1442 = vpop.permute.xlu0 %1441
        %1443 = vrot.lane.b32.xlu0 %v1440, 109
        %v1444 = vpop.permute.xlu0 %1443
        %v1445 = vrot.slane %v1442, 4
        %v1446 = vrot.slane %v1444, 4
        %v1447 = vsel %vm723, %v1445, %v1446
        %vm1448 = vcmask 891904
        %v1449 = vsel %vm1448, %v1442, %v1447
        %1451 = vst [vmem:[#allocation2 + $0x40] sm:$0xff] %v1449
        %1452 = vrot.lane.b32.xlu0 %v1279, 20
        %v1453 = vpop.permute.xlu0 %1452
        %1454 = vrot.lane.b32.xlu0 %v1283, 20
        %v1455 = vpop.permute.xlu0 %1454
        %vm1456 = vcmask 162816
        %v1457 = vsel %vm1456, %v1453, %v1455
        %v1461 = vmul.f32 %v1125, %v1453
        %v1462 = vmul.f32 %v1121, %v1457
        %v1463 = vmul.f32 %v1126, %v1455
        %v1464 = vpack.c.bf16 %v1461, %v1461
        %v1465 = vpack.c.bf16 %v1462, %v1462
        %v1466 = vpack.c.bf16 %v1463, %v1463
        %v1470 = vunpack.c.l.b16 %v1464
        %v1471 = vunpack.c.l.b16 %v1465
        %v1472 = vunpack.c.l.b16 %v1466
        %v1473 = vpack.c.b16 %v1471, %v1470
        %v1474 = vpack.c.b16 %v1472, %v1472
        %1475 = vrot.lane.b32.xlu0 %v1473, 108
        %v1476 = vpop.permute.xlu0 %1475
        %1477 = vrot.lane.b32.xlu0 %v1474, 108
        %v1478 = vpop.permute.xlu0 %1477
        %v1479 = vrot.slane %v1476, 4
        %v1480 = vrot.slane %v1478, 4
        %v1481 = vsel %vm723, %v1479, %v1480
        %vm1482 = vcmask 883712
        %v1483 = vsel %vm1482, %v1476, %v1481
        %1485 = vst [vmem:[#allocation2 + $0x48] sm:$0xff] %v1483
        %1486 = vrot.lane.b32.xlu0 %v1132, 32
        %v1487 = vpop.permute.xlu0 %1486
        %1488 = vrot.lane.b32.xlu0 %v1136, 32
        %v1489 = vpop.permute.xlu0 %1488
        %v1490 = vsel %vm890, %v1487, %v1489
        %v1494 = vmul.f32 %v1125, %v1487
        %v1495 = vmul.f32 %v1121, %v1490
        %v1496 = vmul.f32 %v1126, %v1489
        %v1497 = vpack.c.bf16 %v1494, %v1494
        %v1498 = vpack.c.bf16 %v1495, %v1495
        %v1499 = vpack.c.bf16 %v1496, %v1496
        %v1503 = vunpack.c.l.b16 %v1497
        %v1504 = vunpack.c.l.b16 %v1498
        %v1505 = vunpack.c.l.b16 %v1499
        %v1506 = vpack.c.b16 %v1504, %v1503
        %v1507 = vpack.c.b16 %v1505, %v1505
        %1508 = vrot.lane.b32.xlu0 %v1506, 96
        %v1509 = vpop.permute.xlu0 %1508
        %1510 = vrot.lane.b32.xlu0 %v1507, 96
        %v1511 = vpop.permute.xlu0 %1510
        %v1512 = vrot.slane %v1509, 4
        %v1513 = vrot.slane %v1511, 4
        %v1514 = vsel %vm723, %v1512, %v1513
        %v1515 = vsel %vm916, %v1509, %v1514
        %1517 = vst [vmem:[#allocation2 + $0x50] sm:$0xff] %v1515
        %1518 = vrot.lane.b32.xlu0 %v1151, 33
        %v1519 = vpop.permute.xlu0 %1518
        %1520 = vrot.lane.b32.xlu0 %v1155, 33
        %v1521 = vpop.permute.xlu0 %1520
        %v1522 = vsel %vm924, %v1519, %v1521
        %v1526 = vmul.f32 %v1125, %v1519
        %v1527 = vmul.f32 %v1121, %v1522
        %v1528 = vmul.f32 %v1126, %v1521
        %v1529 = vpack.c.bf16 %v1526, %v1526
        %v1530 = vpack.c.bf16 %v1527, %v1527
        %v1531 = vpack.c.bf16 %v1528, %v1528
        %v1535 = vunpack.c.l.b16 %v1529
        %v1536 = vunpack.c.l.b16 %v1530
        %v1537 = vunpack.c.l.b16 %v1531
        %v1538 = vpack.c.b16 %v1536, %v1535
        %v1539 = vpack.c.b16 %v1537, %v1537
        %1540 = vrot.lane.b32.xlu0 %v1538, 95
        %v1541 = vpop.permute.xlu0 %1540
        %1542 = vrot.lane.b32.xlu0 %v1539, 95
        %v1543 = vpop.permute.xlu0 %1542
        %v1544 = vrot.slane %v1541, 4
        %v1545 = vrot.slane %v1543, 4
        %v1546 = vsel %vm723, %v1544, %v1545
        %v1547 = vsel %vm950, %v1541, %v1546
        %1549 = vst [vmem:[#allocation2 + $0x58] sm:$0xff] %v1547
        %1550 = vrot.lane.b32.xlu0 %v1193, 34
        %v1551 = vpop.permute.xlu0 %1550
        %1552 = vrot.lane.b32.xlu0 %v1197, 34
        %v1553 = vpop.permute.xlu0 %1552
        %v1554 = vsel %vm958, %v1551, %v1553
        %v1558 = vmul.f32 %v1125, %v1551
        %v1559 = vmul.f32 %v1121, %v1554
        %v1560 = vmul.f32 %v1126, %v1553
        %v1561 = vpack.c.bf16 %v1558, %v1558
        %v1562 = vpack.c.bf16 %v1559, %v1559
        %v1563 = vpack.c.bf16 %v1560, %v1560
        %v1567 = vunpack.c.l.b16 %v1561
        %v1568 = vunpack.c.l.b16 %v1562
        %v1569 = vunpack.c.l.b16 %v1563
        %v1570 = vpack.c.b16 %v1568, %v1567
        %v1571 = vpack.c.b16 %v1569, %v1569
        %1572 = vrot.lane.b32.xlu0 %v1570, 94
        %v1573 = vpop.permute.xlu0 %1572
        %1574 = vrot.lane.b32.xlu0 %v1571, 94
        %v1575 = vpop.permute.xlu0 %1574
        %v1576 = vrot.slane %v1573, 4
        %v1577 = vrot.slane %v1575, 4
        %v1578 = vsel %vm723, %v1576, %v1577
        %v1579 = vsel %vm984, %v1573, %v1578
        %1581 = vst [vmem:[#allocation2 + $0x60] sm:$0xff] %v1579
        %1582 = vrot.lane.b32.xlu0 %v1235, 35
        %v1583 = vpop.permute.xlu0 %1582
        %1584 = vrot.lane.b32.xlu0 %v1239, 35
        %v1585 = vpop.permute.xlu0 %1584
        %vm1586 = vcmask 285696
        %v1587 = vsel %vm1586, %v1583, %v1585
        %v1591 = vmul.f32 %v1125, %v1583
        %v1592 = vmul.f32 %v1121, %v1587
        %v1593 = vmul.f32 %v1126, %v1585
        %v1594 = vpack.c.bf16 %v1591, %v1591
        %v1595 = vpack.c.bf16 %v1592, %v1592
        %v1596 = vpack.c.bf16 %v1593, %v1593
        %v1600 = vunpack.c.l.b16 %v1594
        %v1601 = vunpack.c.l.b16 %v1595
        %v1602 = vunpack.c.l.b16 %v1596
        %v1603 = vpack.c.b16 %v1601, %v1600
        %v1604 = vpack.c.b16 %v1602, %v1602
        %1605 = vrot.lane.b32.xlu0 %v1603, 93
        %v1606 = vpop.permute.xlu0 %1605
        %1607 = vrot.lane.b32.xlu0 %v1604, 93
        %v1608 = vpop.permute.xlu0 %1607
        %v1609 = vrot.slane %v1606, 4
        %v1610 = vrot.slane %v1608, 4
        %v1611 = vsel %vm723, %v1609, %v1610
        %vm1612 = vcmask 760832
        %v1613 = vsel %vm1612, %v1606, %v1611
        %1615 = vst [vmem:[#allocation2 + $0x68] sm:$0xff] %v1613
        %1616 = vrot.lane.b32.xlu0 %v1279, 36
        %v1617 = vpop.permute.xlu0 %1616
        %1618 = vrot.lane.b32.xlu0 %v1283, 36
        %v1619 = vpop.permute.xlu0 %1618
        %vm1620 = vcmask 293888
        %v1621 = vsel %vm1620, %v1617, %v1619
        %v1625 = vmul.f32 %v1125, %v1617
        %v1626 = vmul.f32 %v1121, %v1621
        %v1627 = vmul.f32 %v1126, %v1619
        %v1628 = vpack.c.bf16 %v1625, %v1625
        %v1629 = vpack.c.bf16 %v1626, %v1626
        %v1630 = vpack.c.bf16 %v1627, %v1627
        %v1634 = vunpack.c.l.b16 %v1628
        %v1635 = vunpack.c.l.b16 %v1629
        %v1636 = vunpack.c.l.b16 %v1630
        %v1637 = vpack.c.b16 %v1635, %v1634
        %v1638 = vpack.c.b16 %v1636, %v1636
        %1639 = vrot.lane.b32.xlu0 %v1637, 92
        %v1640 = vpop.permute.xlu0 %1639
        %1641 = vrot.lane.b32.xlu0 %v1638, 92
        %v1642 = vpop.permute.xlu0 %1641
        %v1643 = vrot.slane %v1640, 4
        %v1644 = vrot.slane %v1642, 4
        %v1645 = vsel %vm723, %v1643, %v1644
        %vm1646 = vcmask 752640
        %v1647 = vsel %vm1646, %v1640, %v1645
        %1649 = vst [vmem:[#allocation2 + $0x70] sm:$0xff] %v1647
        %1650 = vrot.lane.b32.xlu0 %v1132, 48
        %v1651 = vpop.permute.xlu0 %1650
        %1652 = vrot.lane.b32.xlu0 %v1136, 48
        %v1653 = vpop.permute.xlu0 %1652
        %vm1654 = vcmask 392192
        %v1655 = vsel %vm1654, %v1651, %v1653
        %v1659 = vmul.f32 %v1125, %v1651
        %v1660 = vmul.f32 %v1121, %v1655
        %v1661 = vmul.f32 %v1126, %v1653
        %v1662 = vpack.c.bf16 %v1659, %v1659
        %v1663 = vpack.c.bf16 %v1660, %v1660
        %v1664 = vpack.c.bf16 %v1661, %v1661
        %v1668 = vunpack.c.l.b16 %v1662
        %v1669 = vunpack.c.l.b16 %v1663
        %v1670 = vunpack.c.l.b16 %v1664
        %v1671 = vpack.c.b16 %v1669, %v1668
        %v1672 = vpack.c.b16 %v1670, %v1670
        %1673 = vrot.lane.b32.xlu0 %v1671, 80
        %v1674 = vpop.permute.xlu0 %1673
        %1675 = vrot.lane.b32.xlu0 %v1672, 80
        %v1676 = vpop.permute.xlu0 %1675
        %v1677 = vrot.slane %v1674, 4
        %v1678 = vrot.slane %v1676, 4
        %v1679 = vsel %vm723, %v1677, %v1678
        %vm1680 = vcmask 654336
        %v1681 = vsel %vm1680, %v1674, %v1679
        %1683 = vst [vmem:[#allocation2 + $0x78] sm:$0xff] %v1681
        %1684 = vrot.lane.b32.xlu0 %v1151, 49
        %v1685 = vpop.permute.xlu0 %1684
        %1686 = vrot.lane.b32.xlu0 %v1155, 49
        %v1687 = vpop.permute.xlu0 %1686
        %vm1688 = vcmask 400384
        %v1689 = vsel %vm1688, %v1685, %v1687
        %v1693 = vmul.f32 %v1125, %v1685
        %v1694 = vmul.f32 %v1121, %v1689
        %v1695 = vmul.f32 %v1126, %v1687
        %v1696 = vpack.c.bf16 %v1693, %v1693
        %v1697 = vpack.c.bf16 %v1694, %v1694
        %v1698 = vpack.c.bf16 %v1695, %v1695
        %v1702 = vunpack.c.l.b16 %v1696
        %v1703 = vunpack.c.l.b16 %v1697
        %v1704 = vunpack.c.l.b16 %v1698
        %v1705 = vpack.c.b16 %v1703, %v1702
        %v1706 = vpack.c.b16 %v1704, %v1704
        %1707 = vrot.lane.b32.xlu0 %v1705, 79
        %v1708 = vpop.permute.xlu0 %1707
        %1709 = vrot.lane.b32.xlu0 %v1706, 79
        %v1710 = vpop.permute.xlu0 %1709
        %v1711 = vrot.slane %v1708, 4
        %v1712 = vrot.slane %v1710, 4
        %v1713 = vsel %vm723, %v1711, %v1712
        %vm1714 = vcmask 646144
        %v1715 = vsel %vm1714, %v1708, %v1713
        %1717 = vst [vmem:[#allocation2 + $0x80] sm:$0xff] %v1715
        %1718 = vrot.lane.b32.xlu0 %v1193, 50
        %v1719 = vpop.permute.xlu0 %1718
        %1720 = vrot.lane.b32.xlu0 %v1197, 50
        %v1721 = vpop.permute.xlu0 %1720
        %vm1722 = vcmask 408576
        %v1723 = vsel %vm1722, %v1719, %v1721
        %v1727 = vmul.f32 %v1125, %v1719
        %v1728 = vmul.f32 %v1121, %v1723
        %v1729 = vmul.f32 %v1126, %v1721
        %v1730 = vpack.c.bf16 %v1727, %v1727
        %v1731 = vpack.c.bf16 %v1728, %v1728
        %v1732 = vpack.c.bf16 %v1729, %v1729
        %v1736 = vunpack.c.l.b16 %v1730
        %v1737 = vunpack.c.l.b16 %v1731
        %v1738 = vunpack.c.l.b16 %v1732
        %v1739 = vpack.c.b16 %v1737, %v1736
        %v1740 = vpack.c.b16 %v1738, %v1738
        %1741 = vrot.lane.b32.xlu0 %v1739, 78
        %v1742 = vpop.permute.xlu0 %1741
        %1743 = vrot.lane.b32.xlu0 %v1740, 78
        %v1744 = vpop.permute.xlu0 %1743
        %v1745 = vrot.slane %v1742, 4
        %v1746 = vrot.slane %v1744, 4
        %v1747 = vsel %vm723, %v1745, %v1746
        %vm1748 = vcmask 637952
        %v1749 = vsel %vm1748, %v1742, %v1747
        %1751 = vst [vmem:[#allocation2 + $0x88] sm:$0xff] %v1749
        %1752 = vrot.lane.b32.xlu0 %v1235, 51
        %v1753 = vpop.permute.xlu0 %1752
        %1754 = vrot.lane.b32.xlu0 %v1239, 51
        %v1755 = vpop.permute.xlu0 %1754
        %vm1756 = vcmask 416768
        %v1757 = vsel %vm1756, %v1753, %v1755
        %v1761 = vmul.f32 %v1125, %v1753
        %v1762 = vmul.f32 %v1121, %v1757
        %v1763 = vmul.f32 %v1126, %v1755
        %v1764 = vpack.c.bf16 %v1761, %v1761
        %v1765 = vpack.c.bf16 %v1762, %v1762
        %v1766 = vpack.c.bf16 %v1763, %v1763
        %v1770 = vunpack.c.l.b16 %v1764
        %v1771 = vunpack.c.l.b16 %v1765
        %v1772 = vunpack.c.l.b16 %v1766
        %v1773 = vpack.c.b16 %v1771, %v1770
        %v1774 = vpack.c.b16 %v1772, %v1772
        %1775 = vrot.lane.b32.xlu0 %v1773, 77
        %v1776 = vpop.permute.xlu0 %1775
        %1777 = vrot.lane.b32.xlu0 %v1774, 77
        %v1778 = vpop.permute.xlu0 %1777
        %v1779 = vrot.slane %v1776, 4
        %v1780 = vrot.slane %v1778, 4
        %v1781 = vsel %vm723, %v1779, %v1780
        %vm1782 = vcmask 629760
        %v1783 = vsel %vm1782, %v1776, %v1781
        %1785 = vst [vmem:[#allocation2 + $0x90] sm:$0xff] %v1783
        %1786 = vrot.lane.b32.xlu0 %v1279, 52
        %v1787 = vpop.permute.xlu0 %1786
        %1788 = vrot.lane.b32.xlu0 %v1283, 52
        %v1789 = vpop.permute.xlu0 %1788
        %vm1790 = vcmask 424960
        %v1791 = vsel %vm1790, %v1787, %v1789
        %v1795 = vmul.f32 %v1125, %v1787
        %v1796 = vmul.f32 %v1121, %v1791
        %v1797 = vmul.f32 %v1126, %v1789
        %v1798 = vpack.c.bf16 %v1795, %v1795
        %v1799 = vpack.c.bf16 %v1796, %v1796
        %v1800 = vpack.c.bf16 %v1797, %v1797
        %v1804 = vunpack.c.l.b16 %v1798
        %v1805 = vunpack.c.l.b16 %v1799
        %v1806 = vunpack.c.l.b16 %v1800
        %v1807 = vpack.c.b16 %v1805, %v1804
        %v1808 = vpack.c.b16 %v1806, %v1806
        %1809 = vrot.lane.b32.xlu0 %v1807, 76
        %v1810 = vpop.permute.xlu0 %1809
        %1811 = vrot.lane.b32.xlu0 %v1808, 76
        %v1812 = vpop.permute.xlu0 %1811
        %v1813 = vrot.slane %v1810, 4
        %v1814 = vrot.slane %v1812, 4
        %v1815 = vsel %vm723, %v1813, %v1814
        %vm1816 = vcmask 621568
        %v1817 = vsel %vm1816, %v1810, %v1815
        %1819 = vst [vmem:[#allocation2 + $0x98] sm:$0xff] %v1817
        %1820 = vrot.lane.b32.xlu0 %v1132, 64
        %v1821 = vpop.permute.xlu0 %1820
        %1822 = vrot.lane.b32.xlu0 %v1136, 64
        %v1823 = vpop.permute.xlu0 %1822
        %vm1824 = vcmask 523264
        %v1825 = vsel %vm1824, %v1821, %v1823
        %v1829 = vmul.f32 %v1125, %v1821
        %v1830 = vmul.f32 %v1121, %v1825
        %v1831 = vmul.f32 %v1126, %v1823
        %v1832 = vpack.c.bf16 %v1829, %v1829
        %v1833 = vpack.c.bf16 %v1830, %v1830
        %v1834 = vpack.c.bf16 %v1831, %v1831
        %v1838 = vunpack.c.l.b16 %v1832
        %v1839 = vunpack.c.l.b16 %v1833
        %v1840 = vunpack.c.l.b16 %v1834
        %v1841 = vpack.c.b16 %v1839, %v1838
        %v1842 = vpack.c.b16 %v1840, %v1840
        %1843 = vrot.lane.b32.xlu0 %v1841, 64
        %v1844 = vpop.permute.xlu0 %1843
        %1845 = vrot.lane.b32.xlu0 %v1842, 64
        %v1846 = vpop.permute.xlu0 %1845
        %v1847 = vrot.slane %v1844, 4
        %v1848 = vrot.slane %v1846, 4
        %v1849 = vsel %vm723, %v1847, %v1848
        %vm1850 = vcmask 523264
        %v1851 = vsel %vm1850, %v1844, %v1849
        %1853 = vst [vmem:[#allocation2 + $0xa0] sm:$0xff] %v1851
        %1854 = vrot.lane.b32.xlu0 %v1151, 65
        %v1855 = vpop.permute.xlu0 %1854
        %1856 = vrot.lane.b32.xlu0 %v1155, 65
        %v1857 = vpop.permute.xlu0 %1856
        %vm1858 = vcmask 531456
        %v1859 = vsel %vm1858, %v1855, %v1857
        %v1863 = vmul.f32 %v1125, %v1855
        %v1864 = vmul.f32 %v1121, %v1859
        %v1865 = vmul.f32 %v1126, %v1857
        %v1866 = vpack.c.bf16 %v1863, %v1863
        %v1867 = vpack.c.bf16 %v1864, %v1864
        %v1868 = vpack.c.bf16 %v1865, %v1865
        %v1872 = vunpack.c.l.b16 %v1866
        %v1873 = vunpack.c.l.b16 %v1867
        %v1874 = vunpack.c.l.b16 %v1868
        %v1875 = vpack.c.b16 %v1873, %v1872
        %v1876 = vpack.c.b16 %v1874, %v1874
        %1877 = vrot.lane.b32.xlu0 %v1875, 63
        %v1878 = vpop.permute.xlu0 %1877
        %1879 = vrot.lane.b32.xlu0 %v1876, 63
        %v1880 = vpop.permute.xlu0 %1879
        %v1881 = vrot.slane %v1878, 4
        %v1882 = vrot.slane %v1880, 4
        %v1883 = vsel %vm723, %v1881, %v1882
        %vm1884 = vcmask 515072
        %v1885 = vsel %vm1884, %v1878, %v1883
        %1887 = vst [vmem:[#allocation2 + $0xa8] sm:$0xff] %v1885
        %1888 = vrot.lane.b32.xlu0 %v1193, 66
        %v1889 = vpop.permute.xlu0 %1888
        %1890 = vrot.lane.b32.xlu0 %v1197, 66
        %v1891 = vpop.permute.xlu0 %1890
        %vm1892 = vcmask 539648
        %v1893 = vsel %vm1892, %v1889, %v1891
        %v1897 = vmul.f32 %v1125, %v1889
        %v1898 = vmul.f32 %v1121, %v1893
        %v1899 = vmul.f32 %v1126, %v1891
        %v1900 = vpack.c.bf16 %v1897, %v1897
        %v1901 = vpack.c.bf16 %v1898, %v1898
        %v1902 = vpack.c.bf16 %v1899, %v1899
        %v1906 = vunpack.c.l.b16 %v1900
        %v1907 = vunpack.c.l.b16 %v1901
        %v1908 = vunpack.c.l.b16 %v1902
        %v1909 = vpack.c.b16 %v1907, %v1906
        %v1910 = vpack.c.b16 %v1908, %v1908
        %1911 = vrot.lane.b32.xlu0 %v1909, 62
        %v1912 = vpop.permute.xlu0 %1911
        %1913 = vrot.lane.b32.xlu0 %v1910, 62
        %v1914 = vpop.permute.xlu0 %1913
        %v1915 = vrot.slane %v1912, 4
        %v1916 = vrot.slane %v1914, 4
        %v1917 = vsel %vm723, %v1915, %v1916
        %vm1918 = vcmask 506880
        %v1919 = vsel %vm1918, %v1912, %v1917
        %1921 = vst [vmem:[#allocation2 + $0xb0] sm:$0xff] %v1919
        %1922 = vrot.lane.b32.xlu0 %v1235, 67
        %v1923 = vpop.permute.xlu0 %1922
        %1924 = vrot.lane.b32.xlu0 %v1239, 67
        %v1925 = vpop.permute.xlu0 %1924
        %vm1926 = vcmask 547840
        %v1927 = vsel %vm1926, %v1923, %v1925
        %v1931 = vmul.f32 %v1125, %v1923
        %v1932 = vmul.f32 %v1121, %v1927
        %v1933 = vmul.f32 %v1126, %v1925
        %v1934 = vpack.c.bf16 %v1931, %v1931
        %v1935 = vpack.c.bf16 %v1932, %v1932
        %v1936 = vpack.c.bf16 %v1933, %v1933
        %v1940 = vunpack.c.l.b16 %v1934
        %v1941 = vunpack.c.l.b16 %v1935
        %v1942 = vunpack.c.l.b16 %v1936
        %v1943 = vpack.c.b16 %v1941, %v1940
        %v1944 = vpack.c.b16 %v1942, %v1942
        %1945 = vrot.lane.b32.xlu0 %v1943, 61
        %v1946 = vpop.permute.xlu0 %1945
        %1947 = vrot.lane.b32.xlu0 %v1944, 61
        %v1948 = vpop.permute.xlu0 %1947
        %v1949 = vrot.slane %v1946, 4
        %v1950 = vrot.slane %v1948, 4
        %v1951 = vsel %vm723, %v1949, %v1950
        %vm1952 = vcmask 498688
        %v1953 = vsel %vm1952, %v1946, %v1951
        %1955 = vst [vmem:[#allocation2 + $0xb8] sm:$0xff] %v1953
        %1956 = vrot.lane.b32.xlu0 %v1279, 68
        %v1957 = vpop.permute.xlu0 %1956
        %1958 = vrot.lane.b32.xlu0 %v1283, 68
        %v1959 = vpop.permute.xlu0 %1958
        %vm1960 = vcmask 556032
        %v1961 = vsel %vm1960, %v1957, %v1959
        %v1965 = vmul.f32 %v1125, %v1957
        %v1966 = vmul.f32 %v1121, %v1961
        %v1967 = vmul.f32 %v1126, %v1959
        %v1968 = vpack.c.bf16 %v1965, %v1965
        %v1969 = vpack.c.bf16 %v1966, %v1966
        %v1970 = vpack.c.bf16 %v1967, %v1967
        %v1974 = vunpack.c.l.b16 %v1968
        %v1975 = vunpack.c.l.b16 %v1969
        %v1976 = vunpack.c.l.b16 %v1970
        %v1977 = vpack.c.b16 %v1975, %v1974
        %v1978 = vpack.c.b16 %v1976, %v1976
        %1979 = vrot.lane.b32.xlu0 %v1977, 60
        %v1980 = vpop.permute.xlu0 %1979
        %1981 = vrot.lane.b32.xlu0 %v1978, 60
        %v1982 = vpop.permute.xlu0 %1981
        %v1983 = vrot.slane %v1980, 4
        %v1984 = vrot.slane %v1982, 4
        %v1985 = vsel %vm723, %v1983, %v1984
        %vm1986 = vcmask 490496
        %v1987 = vsel %vm1986, %v1980, %v1985
        %1989 = vst [vmem:[#allocation2 + $0xc0] sm:$0xff] %v1987
        %v1990 = vld [vmem:[%s4] sm:$0xff]
        %v1991 = vld [vmem:[#allocation2] sm:$0xff]
        %v1992 = vld [vmem:[#allocation2 + $0x8] sm:$0xff]
        %v1993 = vld [vmem:[#allocation2 + $0x10] sm:$0xff]
        %v1994 = vld [vmem:[#allocation2 + $0x18] sm:$0xff]
        %v1995 = vld [vmem:[#allocation2 + $0x20] sm:$0xff]
        %v1996 = vld [vmem:[#allocation2 + $0x28] sm:$0xff]
        %v1997 = vld [vmem:[#allocation2 + $0x30] sm:$0xff]
        %v1998 = vld [vmem:[#allocation2 + $0x38] sm:$0xff]
        %v1999 = vld [vmem:[#allocation2 + $0x40] sm:$0xff]
        %v2000 = vld [vmem:[#allocation2 + $0x48] sm:$0xff]
        %v2001 = vld [vmem:[#allocation2 + $0x50] sm:$0xff]
        %v2002 = vld [vmem:[#allocation2 + $0x58] sm:$0xff]
        %v2003 = vld [vmem:[#allocation2 + $0x60] sm:$0xff]
        %v2004 = vld [vmem:[#allocation2 + $0x68] sm:$0xff]
        %v2005 = vld [vmem:[#allocation2 + $0x70] sm:$0xff]
        %v2006 = vld [vmem:[#allocation2 + $0x78] sm:$0xff]
        %v2007 = vld [vmem:[#allocation2 + $0x80] sm:$0xff]
        %v2008 = vld [vmem:[#allocation2 + $0x88] sm:$0xff]
        %v2009 = vld [vmem:[#allocation2 + $0x90] sm:$0xff]
        %v2010 = vld [vmem:[#allocation2 + $0x98] sm:$0xff]
        %v2011 = vld [vmem:[#allocation2 + $0xa0] sm:$0xff]
        %v2012 = vld [vmem:[#allocation2 + $0xa8] sm:$0xff]
        %v2013 = vld [vmem:[#allocation2 + $0xb0] sm:$0xff]
        %v2014 = vld [vmem:[#allocation2 + $0xb8] sm:$0xff]
        %v2015 = vld [vmem:[#allocation2 + $0xc0] sm:$0xff]
        %v2016 = vld [vmem:[%s5] sm:$0xff]
        %2018 = vset.pattern.permute.xlu0 0
        %2019 = vperm.xlu0 %2018, %v2016
        %v2020 = vpop.permute.xlu0 %2019
        %v2023 = vunpack.c.l.b16 %v1990
        %v2024 = vunpack.c.h.b16 %v1990
        %v2025 = vpack.c.b16 %v2023, %v2023
        %v2026 = vpack.c.b16 %v2024, %v2024
        %v2053 = vunpack.c.l.b16 %v1991
        %v2054 = vunpack.c.h.b16 %v1991
        %v2055 = vunpack.c.l.b16 %v1992
        %v2056 = vunpack.c.h.b16 %v1992
        %v2057 = vunpack.c.l.b16 %v1993
        %v2058 = vunpack.c.h.b16 %v1993
        %v2059 = vunpack.c.l.b16 %v1994
        %v2060 = vunpack.c.h.b16 %v1994
        %v2061 = vunpack.c.l.b16 %v1995
        %v2062 = vunpack.c.h.b16 %v1995
        %v2063 = vunpack.c.l.b16 %v1996
        %v2064 = vunpack.c.h.b16 %v1996
        %v2065 = vunpack.c.l.b16 %v1997
        %v2066 = vunpack.c.h.b16 %v1997
        %v2067 = vunpack.c.l.b16 %v1998
        %v2068 = vunpack.c.h.b16 %v1998
        %v2069 = vunpack.c.l.b16 %v1999
        %v2070 = vunpack.c.h.b16 %v1999
        %v2071 = vunpack.c.l.b16 %v2000
        %v2072 = vunpack.c.h.b16 %v2000
        %v2073 = vunpack.c.l.b16 %v2001
        %v2074 = vunpack.c.h.b16 %v2001
        %v2075 = vunpack.c.l.b16 %v2002
        %v2076 = vunpack.c.h.b16 %v2002
        %v2077 = vunpack.c.l.b16 %v2003
        %v2078 = vunpack.c.h.b16 %v2003
        %v2079 = vunpack.c.l.b16 %v2004
        %v2080 = vunpack.c.h.b16 %v2004
        %v2081 = vunpack.c.l.b16 %v2005
        %v2082 = vunpack.c.h.b16 %v2005
        %v2083 = vunpack.c.l.b16 %v2006
        %v2084 = vunpack.c.h.b16 %v2006
        %v2085 = vunpack.c.l.b16 %v2007
        %v2086 = vunpack.c.h.b16 %v2007
        %v2087 = vunpack.c.l.b16 %v2008
        %v2088 = vunpack.c.h.b16 %v2008
        %v2089 = vunpack.c.l.b16 %v2009
        %v2090 = vunpack.c.h.b16 %v2009
        %v2091 = vunpack.c.l.b16 %v2010
        %v2092 = vunpack.c.h.b16 %v2010
        %v2093 = vunpack.c.l.b16 %v2011
        %v2094 = vunpack.c.h.b16 %v2011
        %v2095 = vunpack.c.l.b16 %v2012
        %v2096 = vunpack.c.h.b16 %v2012
        %v2097 = vunpack.c.l.b16 %v2013
        %v2098 = vunpack.c.h.b16 %v2013
        %v2099 = vunpack.c.l.b16 %v2014
        %v2100 = vunpack.c.h.b16 %v2014
        %v2101 = vunpack.c.l.b16 %v2015
        %v2102 = vunpack.c.h.b16 %v2015
        %v2103 = vpack.c.b16 %v2055, %v2053
        %v2104 = vpack.c.b16 %v2056, %v2054
        %v2105 = vpack.c.b16 %v2059, %v2057
        %v2106 = vpack.c.b16 %v2060, %v2058
        %v2107 = vpack.c.b16 %v2063, %v2061
        %v2108 = vpack.c.b16 %v2064, %v2062
        %v2109 = vpack.c.b16 %v2067, %v2065
        %v2110 = vpack.c.b16 %v2068, %v2066
        %v2111 = vpack.c.b16 %v2071, %v2069
        %v2112 = vpack.c.b16 %v2072, %v2070
        %v2113 = vpack.c.b16 %v2075, %v2073
        %v2114 = vpack.c.b16 %v2076, %v2074
        %v2115 = vpack.c.b16 %v2079, %v2077
        %v2116 = vpack.c.b16 %v2080, %v2078
        %v2117 = vpack.c.b16 %v2083, %v2081
        %v2118 = vpack.c.b16 %v2084, %v2082
        %v2119 = vpack.c.b16 %v2087, %v2085
        %v2120 = vpack.c.b16 %v2088, %v2086
        %v2121 = vpack.c.b16 %v2091, %v2089
        %v2122 = vpack.c.b16 %v2092, %v2090
        %v2123 = vpack.c.b16 %v2095, %v2093
        %v2124 = vpack.c.b16 %v2096, %v2094
        %v2125 = vpack.c.b16 %v2099, %v2097
        %v2126 = vpack.c.b16 %v2100, %v2098
        %v2127 = vpack.c.b16 %v2101, %v2101
        %v2128 = vpack.c.b16 %v2102, %v2102
        %v2154 = vsel %vm1049, %v2026, 0
        %v2157 = vsel %vm1053, %v2127, 0
        %v2160 = vsel %vm1053, %v2128, 0
        %2162 = vmatprep.subr.bf16.mxu0 %v2118
        %2163 = vmatpush1.bf16.msra.mxu0 %v2117
        %2164 = vmatprep.subr.bf16.mxu0 %v2116
        %2165 = vmatpush1.bf16.msra.mxu0 %v2115
        %2166 = vmatprep.subr.bf16.mxu0 %v2114
        %2167 = vmatpush1.bf16.msra.mxu0 %v2113
        %2168 = vmatprep.subr.bf16.mxu0 %v2112
        %2169 = vmatpush1.bf16.msra.mxu0 %v2111
        %2170 = vmatprep.subr.bf16.mxu0 %v2110
        %2171 = vmatpush1.bf16.msra.mxu0 %v2109
        %2172 = vmatprep.subr.bf16.mxu0 %v2108
        %2173 = vmatpush1.bf16.msra.mxu0 %v2107
        %2174 = vmatprep.subr.bf16.mxu0 %v2106
        %2175 = vmatpush1.bf16.msra.mxu0 %v2105
        %2176 = vmatprep.subr.bf16.mxu0 %v2104
        %2177 = vmatpush1.bf16.msra.mxu0 %v2103
        %2178 = vmatprep.subr.bf16.mxu0 0
        %2179 = vmatpush2.bf16.msra.mxu0 0
        %2180 = vmatprep.subr.bf16.mxu0 0
        %2181 = vmatpush2.bf16.msra.mxu0 0
        %2182 = vmatprep.subr.bf16.mxu0 0
        %2183 = vmatpush2.bf16.msra.mxu0 0
        %2184 = vmatprep.subr.bf16.mxu0 %v2160
        %2185 = vmatpush2.bf16.msra.mxu0 %v2157
        %2186 = vmatprep.subr.bf16.mxu0 %v2126
        %2187 = vmatpush2.bf16.msra.mxu0 %v2125
        %2188 = vmatprep.subr.bf16.mxu0 %v2124
        %2189 = vmatpush2.bf16.msra.mxu0 %v2123
        %2190 = vmatprep.subr.bf16.mxu0 %v2122
        %2191 = vmatpush2.bf16.msra.mxu0 %v2121
        %2192 = vmatprep.subr.bf16.mxu0 %v2120
        %2193 = vmatpush2.bf16.msra.mxu0 %v2119
        %2194 = vmatprep.mubr.bf16.mxu0 %v2154
        %2195 = vmatmul.mubr.bf16.gmra.mxu0 %v2025
        %v2196 = vpop.f32.mrf.mxu0
        %v2197 = vadd.f32 %v2020, %v2196
        %v2198 = vpop.f32.mrf.mxu0
        %v2199 = vadd.f32 %v2020, %v2198
        %v2200 = vpop.f32.mrf.mxu0
        %v2201 = vpop.f32.mrf.mxu0
        %2202 = vdwg.mxu0
        %v2203 = vsub.f32 0.0, %v2197
        %v2204 = vsub.f32 0.0, %v2199
        %v2205 = vmul.f32 %v2203, 1.442695
        %v2206 = vpow.pop %v2205
        %v2207 = vmul.f32 %v2204, 1.442695
        %v2208 = vpow.pop %v2207
        %v2209 = vadd.f32 %v2206, 1.0
        %v2210 = vadd.f32 %v2208, 1.0
        %v2211 = vrcp.pop %v2209
        %v2212 = vmul.f32 1.0, %v2211
        %v2213 = vrcp.pop %v2210
        %v2214 = vmul.f32 1.0, %v2213
        %v2215 = vmul.f32 %v2197, %v2212
        %v2216 = vmul.f32 %v2199, %v2214
        %2219 = vrot.lane.b32.xlu0 %v2215, 34
        %v2220 = vpop.permute.xlu0 %2219
        %2221 = vrot.lane.b32.xlu0 %v2216, 34
        %v2222 = vpop.permute.xlu0 %2221
        %v2223 = vsel %vm958, %v2220, %v2222
        %v2227 = vsel %vm958, 0.0, %v2220
        %v2228 = vsel %vm958, %v2222, 0.0
        %v2229 = vld [vmem:[%s8] sm:$0x1f]
        %v2230 = vld [vmem:[%s8 + $0x8] sm:$0x1f]
        %v2231 = vlaneseq
        %v2232 = vshrl.u32 %v2231, 7
        %v2233 = vsub.s32 0, %v2232
        %v2234 = vrot.slane %v2229, %v2233
        %v2235 = vlaneseq
        %v2236 = vshrl.u32 %v2235, 7
        %v2237 = vsub.s32 0, %v2236
        %v2238 = vrot.slane %v2230, %v2237
        %v2239 = vmul.f32 %v2227, %v2234
        %v2240 = vmul.f32 %v2223, %v2238
        %v2241 = vpack.c.bf16 %v2239, %v2239
        %v2242 = vpack.c.bf16 %v2240, %v2240
        %v2245 = vunpack.c.l.b16 %v2241
        %v2246 = vunpack.c.l.b16 %v2242
        %v2247 = vpack.c.b16 %v2246, %v2245
        %2249 = vst [vmem:[#allocation2] sm:$0xff] %v2247
        %v2250 = vlaneseq
        %v2251 = vshrl.u32 %v2250, 7
        %v2252 = vsub.s32 1, %v2251
        %v2253 = vrot.slane %v2229, %v2252
        %v2254 = vlaneseq
        %v2255 = vshrl.u32 %v2254, 7
        %v2256 = vsub.s32 1, %v2255
        %v2257 = vrot.slane %v2230, %v2256
        %2260 = vrot.lane.b32.xlu0 %v2253, 1
        %v2261 = vpop.permute.xlu0 %2260
        %2262 = vrot.lane.b32.xlu0 %v2257, 1
        %v2263 = vpop.permute.xlu0 %2262
        %v2264 = vsel %vm698, %v2261, %v2263
        %v2268 = vmul.f32 %v2227, %v2261
        %v2269 = vmul.f32 %v2223, %v2264
        %v2270 = vmul.f32 %v2228, %v2263
        %v2271 = vpack.c.bf16 %v2268, %v2268
        %v2272 = vpack.c.bf16 %v2269, %v2269
        %v2273 = vpack.c.bf16 %v2270, %v2270
        %v2277 = vunpack.c.l.b16 %v2271
        %v2278 = vunpack.c.l.b16 %v2272
        %v2279 = vunpack.c.l.b16 %v2273
        %v2280 = vpack.c.b16 %v2278, %v2277
        %v2281 = vpack.c.b16 %v2279, %v2279
        %2282 = vrot.lane.b32.xlu0 %v2280, 127
        %v2283 = vpop.permute.xlu0 %2282
        %2284 = vrot.lane.b32.xlu0 %v2281, 127
        %v2285 = vpop.permute.xlu0 %2284
        %v2286 = vrot.slane %v2283, 4
        %v2287 = vrot.slane %v2285, 4
        %v2288 = vsel %vm723, %v2286, %v2287
        %v2289 = vsel %vm725, %v2283, %v2288
        %2291 = vst [vmem:[#allocation2 + $0x8] sm:$0xff] %v2289
        %v2292 = vlaneseq
        %v2293 = vshrl.u32 %v2292, 7
        %v2294 = vsub.s32 2, %v2293
        %v2295 = vrot.slane %v2229, %v2294
        %v2296 = vlaneseq
        %v2297 = vshrl.u32 %v2296, 7
        %v2298 = vsub.s32 2, %v2297
        %v2299 = vrot.slane %v2230, %v2298
        %2302 = vrot.lane.b32.xlu0 %v2295, 2
        %v2303 = vpop.permute.xlu0 %2302
        %2304 = vrot.lane.b32.xlu0 %v2299, 2
        %v2305 = vpop.permute.xlu0 %2304
        %v2306 = vsel %vm753, %v2303, %v2305
        %v2310 = vmul.f32 %v2227, %v2303
        %v2311 = vmul.f32 %v2223, %v2306
        %v2312 = vmul.f32 %v2228, %v2305
        %v2313 = vpack.c.bf16 %v2310, %v2310
        %v2314 = vpack.c.bf16 %v2311, %v2311
        %v2315 = vpack.c.bf16 %v2312, %v2312
        %v2319 = vunpack.c.l.b16 %v2313
        %v2320 = vunpack.c.l.b16 %v2314
        %v2321 = vunpack.c.l.b16 %v2315
        %v2322 = vpack.c.b16 %v2320, %v2319
        %v2323 = vpack.c.b16 %v2321, %v2321
        %2324 = vrot.lane.b32.xlu0 %v2322, 126
        %v2325 = vpop.permute.xlu0 %2324
        %2326 = vrot.lane.b32.xlu0 %v2323, 126
        %v2327 = vpop.permute.xlu0 %2326
        %v2328 = vrot.slane %v2325, 4
        %v2329 = vrot.slane %v2327, 4
        %v2330 = vsel %vm723, %v2328, %v2329
        %v2331 = vsel %vm779, %v2325, %v2330
        %2333 = vst [vmem:[#allocation2 + $0x10] sm:$0xff] %v2331
        %v2334 = vlaneseq
        %v2335 = vshrl.u32 %v2334, 7
        %v2336 = vsub.s32 3, %v2335
        %v2337 = vrot.slane %v2229, %v2336
        %v2338 = vlaneseq
        %v2339 = vshrl.u32 %v2338, 7
        %v2340 = vsub.s32 3, %v2339
        %v2341 = vrot.slane %v2230, %v2340
        %2344 = vrot.lane.b32.xlu0 %v2337, 3
        %v2345 = vpop.permute.xlu0 %2344
        %2346 = vrot.lane.b32.xlu0 %v2341, 3
        %v2347 = vpop.permute.xlu0 %2346
        %v2348 = vsel %vm1246, %v2345, %v2347
        %v2352 = vmul.f32 %v2227, %v2345
        %v2353 = vmul.f32 %v2223, %v2348
        %v2354 = vmul.f32 %v2228, %v2347
        %v2355 = vpack.c.bf16 %v2352, %v2352
        %v2356 = vpack.c.bf16 %v2353, %v2353
        %v2357 = vpack.c.bf16 %v2354, %v2354
        %v2361 = vunpack.c.l.b16 %v2355
        %v2362 = vunpack.c.l.b16 %v2356
        %v2363 = vunpack.c.l.b16 %v2357
        %v2364 = vpack.c.b16 %v2362, %v2361
        %v2365 = vpack.c.b16 %v2363, %v2363
        %2366 = vrot.lane.b32.xlu0 %v2364, 125
        %v2367 = vpop.permute.xlu0 %2366
        %2368 = vrot.lane.b32.xlu0 %v2365, 125
        %v2369 = vpop.permute.xlu0 %2368
        %v2370 = vrot.slane %v2367, 4
        %v2371 = vrot.slane %v2369, 4
        %v2372 = vsel %vm723, %v2370, %v2371
        %v2373 = vsel %vm1272, %v2367, %v2372
        %2375 = vst [vmem:[#allocation2 + $0x18] sm:$0xff] %v2373
        %v2376 = vlaneseq
        %v2377 = vshrl.u32 %v2376, 7
        %v2378 = vsub.s32 4, %v2377
        %v2379 = vrot.slane %v2229, %v2378
        %v2380 = vlaneseq
        %v2381 = vshrl.u32 %v2380, 7
        %v2382 = vsub.s32 4, %v2381
        %v2383 = vrot.slane %v2230, %v2382
        %2386 = vrot.lane.b32.xlu0 %v2379, 4
        %v2387 = vpop.permute.xlu0 %2386
        %2388 = vrot.lane.b32.xlu0 %v2383, 4
        %v2389 = vpop.permute.xlu0 %2388
        %v2390 = vsel %vm1290, %v2387, %v2389
        %v2394 = vmul.f32 %v2227, %v2387
        %v2395 = vmul.f32 %v2223, %v2390
        %v2396 = vmul.f32 %v2228, %v2389
        %v2397 = vpack.c.bf16 %v2394, %v2394
        %v2398 = vpack.c.bf16 %v2395, %v2395
        %v2399 = vpack.c.bf16 %v2396, %v2396
        %v2403 = vunpack.c.l.b16 %v2397
        %v2404 = vunpack.c.l.b16 %v2398
        %v2405 = vunpack.c.l.b16 %v2399
        %v2406 = vpack.c.b16 %v2404, %v2403
        %v2407 = vpack.c.b16 %v2405, %v2405
        %2408 = vrot.lane.b32.xlu0 %v2406, 124
        %v2409 = vpop.permute.xlu0 %2408
        %2410 = vrot.lane.b32.xlu0 %v2407, 124
        %v2411 = vpop.permute.xlu0 %2410
        %v2412 = vrot.slane %v2409, 4
        %v2413 = vrot.slane %v2411, 4
        %v2414 = vsel %vm723, %v2412, %v2413
        %v2415 = vsel %vm1316, %v2409, %v2414
        %2417 = vst [vmem:[#allocation2 + $0x20] sm:$0xff] %v2415
        %2420 = vrot.lane.b32.xlu0 %v2234, 16
        %v2421 = vpop.permute.xlu0 %2420
        %2422 = vrot.lane.b32.xlu0 %v2238, 16
        %v2423 = vpop.permute.xlu0 %2422
        %v2424 = vsel %vm789, %v2421, %v2423
        %v2428 = vmul.f32 %v2227, %v2421
        %v2429 = vmul.f32 %v2223, %v2424
        %v2430 = vmul.f32 %v2228, %v2423
        %v2431 = vpack.c.bf16 %v2428, %v2428
        %v2432 = vpack.c.bf16 %v2429, %v2429
        %v2433 = vpack.c.bf16 %v2430, %v2430
        %v2437 = vunpack.c.l.b16 %v2431
        %v2438 = vunpack.c.l.b16 %v2432
        %v2439 = vunpack.c.l.b16 %v2433
        %v2440 = vpack.c.b16 %v2438, %v2437
        %v2441 = vpack.c.b16 %v2439, %v2439
        %2442 = vrot.lane.b32.xlu0 %v2440, 112
        %v2443 = vpop.permute.xlu0 %2442
        %2444 = vrot.lane.b32.xlu0 %v2441, 112
        %v2445 = vpop.permute.xlu0 %2444
        %v2446 = vrot.slane %v2443, 4
        %v2447 = vrot.slane %v2445, 4
        %v2448 = vsel %vm723, %v2446, %v2447
        %v2449 = vsel %vm815, %v2443, %v2448
        %2451 = vst [vmem:[#allocation2 + $0x28] sm:$0xff] %v2449
        %2452 = vrot.lane.b32.xlu0 %v2253, 17
        %v2453 = vpop.permute.xlu0 %2452
        %2454 = vrot.lane.b32.xlu0 %v2257, 17
        %v2455 = vpop.permute.xlu0 %2454
        %v2456 = vsel %vm636, %v2453, %v2455
        %v2460 = vmul.f32 %v2227, %v2453
        %v2461 = vmul.f32 %v2223, %v2456
        %v2462 = vmul.f32 %v2228, %v2455
        %v2463 = vpack.c.bf16 %v2460, %v2460
        %v2464 = vpack.c.bf16 %v2461, %v2461
        %v2465 = vpack.c.bf16 %v2462, %v2462
        %v2469 = vunpack.c.l.b16 %v2463
        %v2470 = vunpack.c.l.b16 %v2464
        %v2471 = vunpack.c.l.b16 %v2465
        %v2472 = vpack.c.b16 %v2470, %v2469
        %v2473 = vpack.c.b16 %v2471, %v2471
        %2474 = vrot.lane.b32.xlu0 %v2472, 111
        %v2475 = vpop.permute.xlu0 %2474
        %2476 = vrot.lane.b32.xlu0 %v2473, 111
        %v2477 = vpop.permute.xlu0 %2476
        %v2478 = vrot.slane %v2475, 4
        %v2479 = vrot.slane %v2477, 4
        %v2480 = vsel %vm723, %v2478, %v2479
        %v2481 = vsel %vm848, %v2475, %v2480
        %2483 = vst [vmem:[#allocation2 + $0x30] sm:$0xff] %v2481
        %2484 = vrot.lane.b32.xlu0 %v2295, 18
        %v2485 = vpop.permute.xlu0 %2484
        %2486 = vrot.lane.b32.xlu0 %v2299, 18
        %v2487 = vpop.permute.xlu0 %2486
        %v2488 = vsel %vm856, %v2485, %v2487
        %v2492 = vmul.f32 %v2227, %v2485
        %v2493 = vmul.f32 %v2223, %v2488
        %v2494 = vmul.f32 %v2228, %v2487
        %v2495 = vpack.c.bf16 %v2492, %v2492
        %v2496 = vpack.c.bf16 %v2493, %v2493
        %v2497 = vpack.c.bf16 %v2494, %v2494
        %v2501 = vunpack.c.l.b16 %v2495
        %v2502 = vunpack.c.l.b16 %v2496
        %v2503 = vunpack.c.l.b16 %v2497
        %v2504 = vpack.c.b16 %v2502, %v2501
        %v2505 = vpack.c.b16 %v2503, %v2503
        %2506 = vrot.lane.b32.xlu0 %v2504, 110
        %v2507 = vpop.permute.xlu0 %2506
        %2508 = vrot.lane.b32.xlu0 %v2505, 110
        %v2509 = vpop.permute.xlu0 %2508
        %v2510 = vrot.slane %v2507, 4
        %v2511 = vrot.slane %v2509, 4
        %v2512 = vsel %vm723, %v2510, %v2511
        %v2513 = vsel %vm882, %v2507, %v2512
        %2515 = vst [vmem:[#allocation2 + $0x38] sm:$0xff] %v2513
        %2516 = vrot.lane.b32.xlu0 %v2337, 19
        %v2517 = vpop.permute.xlu0 %2516
        %2518 = vrot.lane.b32.xlu0 %v2341, 19
        %v2519 = vpop.permute.xlu0 %2518
        %v2520 = vsel %vm1422, %v2517, %v2519
        %v2524 = vmul.f32 %v2227, %v2517
        %v2525 = vmul.f32 %v2223, %v2520
        %v2526 = vmul.f32 %v2228, %v2519
        %v2527 = vpack.c.bf16 %v2524, %v2524
        %v2528 = vpack.c.bf16 %v2525, %v2525
        %v2529 = vpack.c.bf16 %v2526, %v2526
        %v2533 = vunpack.c.l.b16 %v2527
        %v2534 = vunpack.c.l.b16 %v2528
        %v2535 = vunpack.c.l.b16 %v2529
        %v2536 = vpack.c.b16 %v2534, %v2533
        %v2537 = vpack.c.b16 %v2535, %v2535
        %2538 = vrot.lane.b32.xlu0 %v2536, 109
        %v2539 = vpop.permute.xlu0 %2538
        %2540 = vrot.lane.b32.xlu0 %v2537, 109
        %v2541 = vpop.permute.xlu0 %2540
        %v2542 = vrot.slane %v2539, 4
        %v2543 = vrot.slane %v2541, 4
        %v2544 = vsel %vm723, %v2542, %v2543
        %v2545 = vsel %vm1448, %v2539, %v2544
        %2547 = vst [vmem:[#allocation2 + $0x40] sm:$0xff] %v2545
        %2548 = vrot.lane.b32.xlu0 %v2379, 20
        %v2549 = vpop.permute.xlu0 %2548
        %2550 = vrot.lane.b32.xlu0 %v2383, 20
        %v2551 = vpop.permute.xlu0 %2550
        %v2552 = vsel %vm1456, %v2549, %v2551
        %v2556 = vmul.f32 %v2227, %v2549
        %v2557 = vmul.f32 %v2223, %v2552
        %v2558 = vmul.f32 %v2228, %v2551
        %v2559 = vpack.c.bf16 %v2556, %v2556
        %v2560 = vpack.c.bf16 %v2557, %v2557
        %v2561 = vpack.c.bf16 %v2558, %v2558
        %v2565 = vunpack.c.l.b16 %v2559
        %v2566 = vunpack.c.l.b16 %v2560
        %v2567 = vunpack.c.l.b16 %v2561
        %v2568 = vpack.c.b16 %v2566, %v2565
        %v2569 = vpack.c.b16 %v2567, %v2567
        %2570 = vrot.lane.b32.xlu0 %v2568, 108
        %v2571 = vpop.permute.xlu0 %2570
        %2572 = vrot.lane.b32.xlu0 %v2569, 108
        %v2573 = vpop.permute.xlu0 %2572
        %v2574 = vrot.slane %v2571, 4
        %v2575 = vrot.slane %v2573, 4
        %v2576 = vsel %vm723, %v2574, %v2575
        %v2577 = vsel %vm1482, %v2571, %v2576
        %2579 = vst [vmem:[#allocation2 + $0x48] sm:$0xff] %v2577
        %2580 = vrot.lane.b32.xlu0 %v2234, 32
        %v2581 = vpop.permute.xlu0 %2580
        %2582 = vrot.lane.b32.xlu0 %v2238, 32
        %v2583 = vpop.permute.xlu0 %2582
        %v2584 = vsel %vm890, %v2581, %v2583
        %v2588 = vmul.f32 %v2227, %v2581
        %v2589 = vmul.f32 %v2223, %v2584
        %v2590 = vmul.f32 %v2228, %v2583
        %v2591 = vpack.c.bf16 %v2588, %v2588
        %v2592 = vpack.c.bf16 %v2589, %v2589
        %v2593 = vpack.c.bf16 %v2590, %v2590
        %v2597 = vunpack.c.l.b16 %v2591
        %v2598 = vunpack.c.l.b16 %v2592
        %v2599 = vunpack.c.l.b16 %v2593
        %v2600 = vpack.c.b16 %v2598, %v2597
        %v2601 = vpack.c.b16 %v2599, %v2599
        %2602 = vrot.lane.b32.xlu0 %v2600, 96
        %v2603 = vpop.permute.xlu0 %2602
        %2604 = vrot.lane.b32.xlu0 %v2601, 96
        %v2605 = vpop.permute.xlu0 %2604
        %v2606 = vrot.slane %v2603, 4
        %v2607 = vrot.slane %v2605, 4
        %v2608 = vsel %vm723, %v2606, %v2607
        %v2609 = vsel %vm916, %v2603, %v2608
        %2611 = vst [vmem:[#allocation2 + $0x50] sm:$0xff] %v2609
        %2612 = vrot.lane.b32.xlu0 %v2253, 33
        %v2613 = vpop.permute.xlu0 %2612
        %2614 = vrot.lane.b32.xlu0 %v2257, 33
        %v2615 = vpop.permute.xlu0 %2614
        %v2616 = vsel %vm924, %v2613, %v2615
        %v2620 = vmul.f32 %v2227, %v2613
        %v2621 = vmul.f32 %v2223, %v2616
        %v2622 = vmul.f32 %v2228, %v2615
        %v2623 = vpack.c.bf16 %v2620, %v2620
        %v2624 = vpack.c.bf16 %v2621, %v2621
        %v2625 = vpack.c.bf16 %v2622, %v2622
        %v2629 = vunpack.c.l.b16 %v2623
        %v2630 = vunpack.c.l.b16 %v2624
        %v2631 = vunpack.c.l.b16 %v2625
        %v2632 = vpack.c.b16 %v2630, %v2629
        %v2633 = vpack.c.b16 %v2631, %v2631
        %2634 = vrot.lane.b32.xlu0 %v2632, 95
        %v2635 = vpop.permute.xlu0 %2634
        %2636 = vrot.lane.b32.xlu0 %v2633, 95
        %v2637 = vpop.permute.xlu0 %2636
        %v2638 = vrot.slane %v2635, 4
        %v2639 = vrot.slane %v2637, 4
        %v2640 = vsel %vm723, %v2638, %v2639
        %v2641 = vsel %vm950, %v2635, %v2640
        %2643 = vst [vmem:[#allocation2 + $0x58] sm:$0xff] %v2641
        %2644 = vrot.lane.b32.xlu0 %v2295, 34
        %v2645 = vpop.permute.xlu0 %2644
        %2646 = vrot.lane.b32.xlu0 %v2299, 34
        %v2647 = vpop.permute.xlu0 %2646
        %v2648 = vsel %vm958, %v2645, %v2647
        %v2652 = vmul.f32 %v2227, %v2645
        %v2653 = vmul.f32 %v2223, %v2648
        %v2654 = vmul.f32 %v2228, %v2647
        %v2655 = vpack.c.bf16 %v2652, %v2652
        %v2656 = vpack.c.bf16 %v2653, %v2653
        %v2657 = vpack.c.bf16 %v2654, %v2654
        %v2661 = vunpack.c.l.b16 %v2655
        %v2662 = vunpack.c.l.b16 %v2656
        %v2663 = vunpack.c.l.b16 %v2657
        %v2664 = vpack.c.b16 %v2662, %v2661
        %v2665 = vpack.c.b16 %v2663, %v2663
        %2666 = vrot.lane.b32.xlu0 %v2664, 94
        %v2667 = vpop.permute.xlu0 %2666
        %2668 = vrot.lane.b32.xlu0 %v2665, 94
        %v2669 = vpop.permute.xlu0 %2668
        %v2670 = vrot.slane %v2667, 4
        %v2671 = vrot.slane %v2669, 4
        %v2672 = vsel %vm723, %v2670, %v2671
        %v2673 = vsel %vm984, %v2667, %v2672
        %2675 = vst [vmem:[#allocation2 + $0x60] sm:$0xff] %v2673
        %2676 = vrot.lane.b32.xlu0 %v2337, 35
        %v2677 = vpop.permute.xlu0 %2676
        %2678 = vrot.lane.b32.xlu0 %v2341, 35
        %v2679 = vpop.permute.xlu0 %2678
        %v2680 = vsel %vm1586, %v2677, %v2679
        %v2684 = vmul.f32 %v2227, %v2677
        %v2685 = vmul.f32 %v2223, %v2680
        %v2686 = vmul.f32 %v2228, %v2679
        %v2687 = vpack.c.bf16 %v2684, %v2684
        %v2688 = vpack.c.bf16 %v2685, %v2685
        %v2689 = vpack.c.bf16 %v2686, %v2686
        %v2693 = vunpack.c.l.b16 %v2687
        %v2694 = vunpack.c.l.b16 %v2688
        %v2695 = vunpack.c.l.b16 %v2689
        %v2696 = vpack.c.b16 %v2694, %v2693
        %v2697 = vpack.c.b16 %v2695, %v2695
        %2698 = vrot.lane.b32.xlu0 %v2696, 93
        %v2699 = vpop.permute.xlu0 %2698
        %2700 = vrot.lane.b32.xlu0 %v2697, 93
        %v2701 = vpop.permute.xlu0 %2700
        %v2702 = vrot.slane %v2699, 4
        %v2703 = vrot.slane %v2701, 4
        %v2704 = vsel %vm723, %v2702, %v2703
        %v2705 = vsel %vm1612, %v2699, %v2704
        %2707 = vst [vmem:[#allocation2 + $0x68] sm:$0xff] %v2705
        %2708 = vrot.lane.b32.xlu0 %v2379, 36
        %v2709 = vpop.permute.xlu0 %2708
        %2710 = vrot.lane.b32.xlu0 %v2383, 36
        %v2711 = vpop.permute.xlu0 %2710
        %v2712 = vsel %vm1620, %v2709, %v2711
        %v2716 = vmul.f32 %v2227, %v2709
        %v2717 = vmul.f32 %v2223, %v2712
        %v2718 = vmul.f32 %v2228, %v2711
        %v2719 = vpack.c.bf16 %v2716, %v2716
        %v2720 = vpack.c.bf16 %v2717, %v2717
        %v2721 = vpack.c.bf16 %v2718, %v2718
        %v2725 = vunpack.c.l.b16 %v2719
        %v2726 = vunpack.c.l.b16 %v2720
        %v2727 = vunpack.c.l.b16 %v2721
        %v2728 = vpack.c.b16 %v2726, %v2725
        %v2729 = vpack.c.b16 %v2727, %v2727
        %2730 = vrot.lane.b32.xlu0 %v2728, 92
        %v2731 = vpop.permute.xlu0 %2730
        %2732 = vrot.lane.b32.xlu0 %v2729, 92
        %v2733 = vpop.permute.xlu0 %2732
        %v2734 = vrot.slane %v2731, 4
        %v2735 = vrot.slane %v2733, 4
        %v2736 = vsel %vm723, %v2734, %v2735
        %v2737 = vsel %vm1646, %v2731, %v2736
        %2739 = vst [vmem:[#allocation2 + $0x70] sm:$0xff] %v2737
        %2740 = vrot.lane.b32.xlu0 %v2234, 48
        %v2741 = vpop.permute.xlu0 %2740
        %2742 = vrot.lane.b32.xlu0 %v2238, 48
        %v2743 = vpop.permute.xlu0 %2742
        %v2744 = vsel %vm1654, %v2741, %v2743
        %v2748 = vmul.f32 %v2227, %v2741
        %v2749 = vmul.f32 %v2223, %v2744
        %v2750 = vmul.f32 %v2228, %v2743
        %v2751 = vpack.c.bf16 %v2748, %v2748
        %v2752 = vpack.c.bf16 %v2749, %v2749
        %v2753 = vpack.c.bf16 %v2750, %v2750
        %v2757 = vunpack.c.l.b16 %v2751
        %v2758 = vunpack.c.l.b16 %v2752
        %v2759 = vunpack.c.l.b16 %v2753
        %v2760 = vpack.c.b16 %v2758, %v2757
        %v2761 = vpack.c.b16 %v2759, %v2759
        %2762 = vrot.lane.b32.xlu0 %v2760, 80
        %v2763 = vpop.permute.xlu0 %2762
        %2764 = vrot.lane.b32.xlu0 %v2761, 80
        %v2765 = vpop.permute.xlu0 %2764
        %v2766 = vrot.slane %v2763, 4
        %v2767 = vrot.slane %v2765, 4
        %v2768 = vsel %vm723, %v2766, %v2767
        %v2769 = vsel %vm1680, %v2763, %v2768
        %2771 = vst [vmem:[#allocation2 + $0x78] sm:$0xff] %v2769
        %2772 = vrot.lane.b32.xlu0 %v2253, 49
        %v2773 = vpop.permute.xlu0 %2772
        %2774 = vrot.lane.b32.xlu0 %v2257, 49
        %v2775 = vpop.permute.xlu0 %2774
        %v2776 = vsel %vm1688, %v2773, %v2775
        %v2780 = vmul.f32 %v2227, %v2773
        %v2781 = vmul.f32 %v2223, %v2776
        %v2782 = vmul.f32 %v2228, %v2775
        %v2783 = vpack.c.bf16 %v2780, %v2780
        %v2784 = vpack.c.bf16 %v2781, %v2781
        %v2785 = vpack.c.bf16 %v2782, %v2782
        %v2789 = vunpack.c.l.b16 %v2783
        %v2790 = vunpack.c.l.b16 %v2784
        %v2791 = vunpack.c.l.b16 %v2785
        %v2792 = vpack.c.b16 %v2790, %v2789
        %v2793 = vpack.c.b16 %v2791, %v2791
        %2794 = vrot.lane.b32.xlu0 %v2792, 79
        %v2795 = vpop.permute.xlu0 %2794
        %2796 = vrot.lane.b32.xlu0 %v2793, 79
        %v2797 = vpop.permute.xlu0 %2796
        %v2798 = vrot.slane %v2795, 4
        %v2799 = vrot.slane %v2797, 4
        %v2800 = vsel %vm723, %v2798, %v2799
        %v2801 = vsel %vm1714, %v2795, %v2800
        %2803 = vst [vmem:[#allocation2 + $0x80] sm:$0xff] %v2801
        %2804 = vrot.lane.b32.xlu0 %v2295, 50
        %v2805 = vpop.permute.xlu0 %2804
        %2806 = vrot.lane.b32.xlu0 %v2299, 50
        %v2807 = vpop.permute.xlu0 %2806
        %v2808 = vsel %vm1722, %v2805, %v2807
        %v2812 = vmul.f32 %v2227, %v2805
        %v2813 = vmul.f32 %v2223, %v2808
        %v2814 = vmul.f32 %v2228, %v2807
        %v2815 = vpack.c.bf16 %v2812, %v2812
        %v2816 = vpack.c.bf16 %v2813, %v2813
        %v2817 = vpack.c.bf16 %v2814, %v2814
        %v2821 = vunpack.c.l.b16 %v2815
        %v2822 = vunpack.c.l.b16 %v2816
        %v2823 = vunpack.c.l.b16 %v2817
        %v2824 = vpack.c.b16 %v2822, %v2821
        %v2825 = vpack.c.b16 %v2823, %v2823
        %2826 = vrot.lane.b32.xlu0 %v2824, 78
        %v2827 = vpop.permute.xlu0 %2826
        %2828 = vrot.lane.b32.xlu0 %v2825, 78
        %v2829 = vpop.permute.xlu0 %2828
        %v2830 = vrot.slane %v2827, 4
        %v2831 = vrot.slane %v2829, 4
        %v2832 = vsel %vm723, %v2830, %v2831
        %v2833 = vsel %vm1748, %v2827, %v2832
        %2835 = vst [vmem:[#allocation2 + $0x88] sm:$0xff] %v2833
        %2836 = vrot.lane.b32.xlu0 %v2337, 51
        %v2837 = vpop.permute.xlu0 %2836
        %2838 = vrot.lane.b32.xlu0 %v2341, 51
        %v2839 = vpop.permute.xlu0 %2838
        %v2840 = vsel %vm1756, %v2837, %v2839
        %v2844 = vmul.f32 %v2227, %v2837
        %v2845 = vmul.f32 %v2223, %v2840
        %v2846 = vmul.f32 %v2228, %v2839
        %v2847 = vpack.c.bf16 %v2844, %v2844
        %v2848 = vpack.c.bf16 %v2845, %v2845
        %v2849 = vpack.c.bf16 %v2846, %v2846
        %v2853 = vunpack.c.l.b16 %v2847
        %v2854 = vunpack.c.l.b16 %v2848
        %v2855 = vunpack.c.l.b16 %v2849
        %v2856 = vpack.c.b16 %v2854, %v2853
        %v2857 = vpack.c.b16 %v2855, %v2855
        %2858 = vrot.lane.b32.xlu0 %v2856, 77
        %v2859 = vpop.permute.xlu0 %2858
        %2860 = vrot.lane.b32.xlu0 %v2857, 77
        %v2861 = vpop.permute.xlu0 %2860
        %v2862 = vrot.slane %v2859, 4
        %v2863 = vrot.slane %v2861, 4
        %v2864 = vsel %vm723, %v2862, %v2863
        %v2865 = vsel %vm1782, %v2859, %v2864
        %2867 = vst [vmem:[#allocation2 + $0x90] sm:$0xff] %v2865
        %2868 = vrot.lane.b32.xlu0 %v2379, 52
        %v2869 = vpop.permute.xlu0 %2868
        %2870 = vrot.lane.b32.xlu0 %v2383, 52
        %v2871 = vpop.permute.xlu0 %2870
        %v2872 = vsel %vm1790, %v2869, %v2871
        %v2876 = vmul.f32 %v2227, %v2869
        %v2877 = vmul.f32 %v2223, %v2872
        %v2878 = vmul.f32 %v2228, %v2871
        %v2879 = vpack.c.bf16 %v2876, %v2876
        %v2880 = vpack.c.bf16 %v2877, %v2877
        %v2881 = vpack.c.bf16 %v2878, %v2878
        %v2885 = vunpack.c.l.b16 %v2879
        %v2886 = vunpack.c.l.b16 %v2880
        %v2887 = vunpack.c.l.b16 %v2881
        %v2888 = vpack.c.b16 %v2886, %v2885
        %v2889 = vpack.c.b16 %v2887, %v2887
        %2890 = vrot.lane.b32.xlu0 %v2888, 76
        %v2891 = vpop.permute.xlu0 %2890
        %2892 = vrot.lane.b32.xlu0 %v2889, 76
        %v2893 = vpop.permute.xlu0 %2892
        %v2894 = vrot.slane %v2891, 4
        %v2895 = vrot.slane %v2893, 4
        %v2896 = vsel %vm723, %v2894, %v2895
        %v2897 = vsel %vm1816, %v2891, %v2896
        %2899 = vst [vmem:[#allocation2 + $0x98] sm:$0xff] %v2897
        %2900 = vrot.lane.b32.xlu0 %v2234, 64
        %v2901 = vpop.permute.xlu0 %2900
        %2902 = vrot.lane.b32.xlu0 %v2238, 64
        %v2903 = vpop.permute.xlu0 %2902
        %v2904 = vsel %vm1824, %v2901, %v2903
        %v2908 = vmul.f32 %v2227, %v2901
        %v2909 = vmul.f32 %v2223, %v2904
        %v2910 = vmul.f32 %v2228, %v2903
        %v2911 = vpack.c.bf16 %v2908, %v2908
        %v2912 = vpack.c.bf16 %v2909, %v2909
        %v2913 = vpack.c.bf16 %v2910, %v2910
        %v2917 = vunpack.c.l.b16 %v2911
        %v2918 = vunpack.c.l.b16 %v2912
        %v2919 = vunpack.c.l.b16 %v2913
        %v2920 = vpack.c.b16 %v2918, %v2917
        %v2921 = vpack.c.b16 %v2919, %v2919
        %2922 = vrot.lane.b32.xlu0 %v2920, 64
        %v2923 = vpop.permute.xlu0 %2922
        %2924 = vrot.lane.b32.xlu0 %v2921, 64
        %v2925 = vpop.permute.xlu0 %2924
        %v2926 = vrot.slane %v2923, 4
        %v2927 = vrot.slane %v2925, 4
        %v2928 = vsel %vm723, %v2926, %v2927
        %v2929 = vsel %vm1850, %v2923, %v2928
        %2931 = vst [vmem:[#allocation2 + $0xa0] sm:$0xff] %v2929
        %2932 = vrot.lane.b32.xlu0 %v2253, 65
        %v2933 = vpop.permute.xlu0 %2932
        %2934 = vrot.lane.b32.xlu0 %v2257, 65
        %v2935 = vpop.permute.xlu0 %2934
        %v2936 = vsel %vm1858, %v2933, %v2935
        %v2940 = vmul.f32 %v2227, %v2933
        %v2941 = vmul.f32 %v2223, %v2936
        %v2942 = vmul.f32 %v2228, %v2935
        %v2943 = vpack.c.bf16 %v2940, %v2940
        %v2944 = vpack.c.bf16 %v2941, %v2941
        %v2945 = vpack.c.bf16 %v2942, %v2942
        %v2949 = vunpack.c.l.b16 %v2943
        %v2950 = vunpack.c.l.b16 %v2944
        %v2951 = vunpack.c.l.b16 %v2945
        %v2952 = vpack.c.b16 %v2950, %v2949
        %v2953 = vpack.c.b16 %v2951, %v2951
        %2954 = vrot.lane.b32.xlu0 %v2952, 63
        %v2955 = vpop.permute.xlu0 %2954
        %2956 = vrot.lane.b32.xlu0 %v2953, 63
        %v2957 = vpop.permute.xlu0 %2956
        %v2958 = vrot.slane %v2955, 4
        %v2959 = vrot.slane %v2957, 4
        %v2960 = vsel %vm723, %v2958, %v2959
        %v2961 = vsel %vm1884, %v2955, %v2960
        %2963 = vst [vmem:[#allocation2 + $0xa8] sm:$0xff] %v2961
        %2964 = vrot.lane.b32.xlu0 %v2295, 66
        %v2965 = vpop.permute.xlu0 %2964
        %2966 = vrot.lane.b32.xlu0 %v2299, 66
        %v2967 = vpop.permute.xlu0 %2966
        %v2968 = vsel %vm1892, %v2965, %v2967
        %v2972 = vmul.f32 %v2227, %v2965
        %v2973 = vmul.f32 %v2223, %v2968
        %v2974 = vmul.f32 %v2228, %v2967
        %v2975 = vpack.c.bf16 %v2972, %v2972
        %v2976 = vpack.c.bf16 %v2973, %v2973
        %v2977 = vpack.c.bf16 %v2974, %v2974
        %v2981 = vunpack.c.l.b16 %v2975
        %v2982 = vunpack.c.l.b16 %v2976
        %v2983 = vunpack.c.l.b16 %v2977
        %v2984 = vpack.c.b16 %v2982, %v2981
        %v2985 = vpack.c.b16 %v2983, %v2983
        %2986 = vrot.lane.b32.xlu0 %v2984, 62
        %v2987 = vpop.permute.xlu0 %2986
        %2988 = vrot.lane.b32.xlu0 %v2985, 62
        %v2989 = vpop.permute.xlu0 %2988
        %v2990 = vrot.slane %v2987, 4
        %v2991 = vrot.slane %v2989, 4
        %v2992 = vsel %vm723, %v2990, %v2991
        %v2993 = vsel %vm1918, %v2987, %v2992
        %2995 = vst [vmem:[#allocation2 + $0xb0] sm:$0xff] %v2993
        %2996 = vrot.lane.b32.xlu0 %v2337, 67
        %v2997 = vpop.permute.xlu0 %2996
        %2998 = vrot.lane.b32.xlu0 %v2341, 67
        %v2999 = vpop.permute.xlu0 %2998
        %v3000 = vsel %vm1926, %v2997, %v2999
        %v3004 = vmul.f32 %v2227, %v2997
        %v3005 = vmul.f32 %v2223, %v3000
        %v3006 = vmul.f32 %v2228, %v2999
        %v3007 = vpack.c.bf16 %v3004, %v3004
        %v3008 = vpack.c.bf16 %v3005, %v3005
        %v3009 = vpack.c.bf16 %v3006, %v3006
        %v3013 = vunpack.c.l.b16 %v3007
        %v3014 = vunpack.c.l.b16 %v3008
        %v3015 = vunpack.c.l.b16 %v3009
        %v3016 = vpack.c.b16 %v3014, %v3013
        %v3017 = vpack.c.b16 %v3015, %v3015
        %3018 = vrot.lane.b32.xlu0 %v3016, 61
        %v3019 = vpop.permute.xlu0 %3018
        %3020 = vrot.lane.b32.xlu0 %v3017, 61
        %v3021 = vpop.permute.xlu0 %3020
        %v3022 = vrot.slane %v3019, 4
        %v3023 = vrot.slane %v3021, 4
        %v3024 = vsel %vm723, %v3022, %v3023
        %v3025 = vsel %vm1952, %v3019, %v3024
        %3027 = vst [vmem:[#allocation2 + $0xb8] sm:$0xff] %v3025
        %3028 = vrot.lane.b32.xlu0 %v2379, 68
        %v3029 = vpop.permute.xlu0 %3028
        %3030 = vrot.lane.b32.xlu0 %v2383, 68
        %v3031 = vpop.permute.xlu0 %3030
        %v3032 = vsel %vm1960, %v3029, %v3031
        %v3036 = vmul.f32 %v2227, %v3029
        %v3037 = vmul.f32 %v2223, %v3032
        %v3038 = vmul.f32 %v2228, %v3031
        %v3039 = vpack.c.bf16 %v3036, %v3036
        %v3040 = vpack.c.bf16 %v3037, %v3037
        %v3041 = vpack.c.bf16 %v3038, %v3038
        %v3045 = vunpack.c.l.b16 %v3039
        %v3046 = vunpack.c.l.b16 %v3040
        %v3047 = vunpack.c.l.b16 %v3041
        %v3048 = vpack.c.b16 %v3046, %v3045
        %v3049 = vpack.c.b16 %v3047, %v3047
        %3050 = vrot.lane.b32.xlu0 %v3048, 60
        %v3051 = vpop.permute.xlu0 %3050
        %3052 = vrot.lane.b32.xlu0 %v3049, 60
        %v3053 = vpop.permute.xlu0 %3052
        %v3054 = vrot.slane %v3051, 4
        %v3055 = vrot.slane %v3053, 4
        %v3056 = vsel %vm723, %v3054, %v3055
        %v3057 = vsel %vm1986, %v3051, %v3056
        %3059 = vst [vmem:[#allocation2 + $0xc0] sm:$0xff] %v3057
        %v3060 = vld [vmem:[%s6] sm:$0xff]
        %v3061 = vld [vmem:[#allocation2] sm:$0xff]
        %v3062 = vld [vmem:[#allocation2 + $0x8] sm:$0xff]
        %v3063 = vld [vmem:[#allocation2 + $0x10] sm:$0xff]
        %v3064 = vld [vmem:[#allocation2 + $0x18] sm:$0xff]
        %v3065 = vld [vmem:[#allocation2 + $0x20] sm:$0xff]
        %v3066 = vld [vmem:[#allocation2 + $0x28] sm:$0xff]
        %v3067 = vld [vmem:[#allocation2 + $0x30] sm:$0xff]
        %v3068 = vld [vmem:[#allocation2 + $0x38] sm:$0xff]
        %v3069 = vld [vmem:[#allocation2 + $0x40] sm:$0xff]
        %v3070 = vld [vmem:[#allocation2 + $0x48] sm:$0xff]
        %v3071 = vld [vmem:[#allocation2 + $0x50] sm:$0xff]
        %v3072 = vld [vmem:[#allocation2 + $0x58] sm:$0xff]
        %v3073 = vld [vmem:[#allocation2 + $0x60] sm:$0xff]
        %v3074 = vld [vmem:[#allocation2 + $0x68] sm:$0xff]
        %v3075 = vld [vmem:[#allocation2 + $0x70] sm:$0xff]
        %v3076 = vld [vmem:[#allocation2 + $0x78] sm:$0xff]
        %v3077 = vld [vmem:[#allocation2 + $0x80] sm:$0xff]
        %v3078 = vld [vmem:[#allocation2 + $0x88] sm:$0xff]
        %v3079 = vld [vmem:[#allocation2 + $0x90] sm:$0xff]
        %v3080 = vld [vmem:[#allocation2 + $0x98] sm:$0xff]
        %v3081 = vld [vmem:[#allocation2 + $0xa0] sm:$0xff]
        %v3082 = vld [vmem:[#allocation2 + $0xa8] sm:$0xff]
        %v3083 = vld [vmem:[#allocation2 + $0xb0] sm:$0xff]
        %v3084 = vld [vmem:[#allocation2 + $0xb8] sm:$0xff]
        %v3085 = vld [vmem:[#allocation2 + $0xc0] sm:$0xff]
        %v3086 = vld [vmem:[%s7] sm:$0xff]
        %3088 = vset.pattern.permute.xlu0 0
        %3089 = vperm.xlu0 %3088, %v3086
        %v3090 = vpop.permute.xlu0 %3089
        %v3093 = vunpack.c.l.b16 %v3060
        %v3094 = vunpack.c.h.b16 %v3060
        %v3095 = vpack.c.b16 %v3093, %v3093
        %v3096 = vpack.c.b16 %v3094, %v3094
        %v3123 = vunpack.c.l.b16 %v3061
        %v3124 = vunpack.c.h.b16 %v3061
        %v3125 = vunpack.c.l.b16 %v3062
        %v3126 = vunpack.c.h.b16 %v3062
        %v3127 = vunpack.c.l.b16 %v3063
        %v3128 = vunpack.c.h.b16 %v3063
        %v3129 = vunpack.c.l.b16 %v3064
        %v3130 = vunpack.c.h.b16 %v3064
        %v3131 = vunpack.c.l.b16 %v3065
        %v3132 = vunpack.c.h.b16 %v3065
        %v3133 = vunpack.c.l.b16 %v3066
        %v3134 = vunpack.c.h.b16 %v3066
        %v3135 = vunpack.c.l.b16 %v3067
        %v3136 = vunpack.c.h.b16 %v3067
        %v3137 = vunpack.c.l.b16 %v3068
        %v3138 = vunpack.c.h.b16 %v3068
        %v3139 = vunpack.c.l.b16 %v3069
        %v3140 = vunpack.c.h.b16 %v3069
        %v3141 = vunpack.c.l.b16 %v3070
        %v3142 = vunpack.c.h.b16 %v3070
        %v3143 = vunpack.c.l.b16 %v3071
        %v3144 = vunpack.c.h.b16 %v3071
        %v3145 = vunpack.c.l.b16 %v3072
        %v3146 = vunpack.c.h.b16 %v3072
        %v3147 = vunpack.c.l.b16 %v3073
        %v3148 = vunpack.c.h.b16 %v3073
        %v3149 = vunpack.c.l.b16 %v3074
        %v3150 = vunpack.c.h.b16 %v3074
        %v3151 = vunpack.c.l.b16 %v3075
        %v3152 = vunpack.c.h.b16 %v3075
        %v3153 = vunpack.c.l.b16 %v3076
        %v3154 = vunpack.c.h.b16 %v3076
        %v3155 = vunpack.c.l.b16 %v3077
        %v3156 = vunpack.c.h.b16 %v3077
        %v3157 = vunpack.c.l.b16 %v3078
        %v3158 = vunpack.c.h.b16 %v3078
        %v3159 = vunpack.c.l.b16 %v3079
        %v3160 = vunpack.c.h.b16 %v3079
        %v3161 = vunpack.c.l.b16 %v3080
        %v3162 = vunpack.c.h.b16 %v3080
        %v3163 = vunpack.c.l.b16 %v3081
        %v3164 = vunpack.c.h.b16 %v3081
        %v3165 = vunpack.c.l.b16 %v3082
        %v3166 = vunpack.c.h.b16 %v3082
        %v3167 = vunpack.c.l.b16 %v3083
        %v3168 = vunpack.c.h.b16 %v3083
        %v3169 = vunpack.c.l.b16 %v3084
        %v3170 = vunpack.c.h.b16 %v3084
        %v3171 = vunpack.c.l.b16 %v3085
        %v3172 = vunpack.c.h.b16 %v3085
        %v3173 = vpack.c.b16 %v3125, %v3123
        %v3174 = vpack.c.b16 %v3126, %v3124
        %v3175 = vpack.c.b16 %v3129, %v3127
        %v3176 = vpack.c.b16 %v3130, %v3128
        %v3177 = vpack.c.b16 %v3133, %v3131
        %v3178 = vpack.c.b16 %v3134, %v3132
        %v3179 = vpack.c.b16 %v3137, %v3135
        %v3180 = vpack.c.b16 %v3138, %v3136
        %v3181 = vpack.c.b16 %v3141, %v3139
        %v3182 = vpack.c.b16 %v3142, %v3140
        %v3183 = vpack.c.b16 %v3145, %v3143
        %v3184 = vpack.c.b16 %v3146, %v3144
        %v3185 = vpack.c.b16 %v3149, %v3147
        %v3186 = vpack.c.b16 %v3150, %v3148
        %v3187 = vpack.c.b16 %v3153, %v3151
        %v3188 = vpack.c.b16 %v3154, %v3152
        %v3189 = vpack.c.b16 %v3157, %v3155
        %v3190 = vpack.c.b16 %v3158, %v3156
        %v3191 = vpack.c.b16 %v3161, %v3159
        %v3192 = vpack.c.b16 %v3162, %v3160
        %v3193 = vpack.c.b16 %v3165, %v3163
        %v3194 = vpack.c.b16 %v3166, %v3164
        %v3195 = vpack.c.b16 %v3169, %v3167
        %v3196 = vpack.c.b16 %v3170, %v3168
        %v3197 = vpack.c.b16 %v3171, %v3171
        %v3198 = vpack.c.b16 %v3172, %v3172
        %v3224 = vsel %vm1049, %v3096, 0
        %v3227 = vsel %vm1053, %v3197, 0
        %v3230 = vsel %vm1053, %v3198, 0
        %3232 = vmatprep.subr.bf16.mxu0 %v3188
        %3233 = vmatpush1.bf16.msra.mxu0 %v3187
        %3234 = vmatprep.subr.bf16.mxu0 %v3186
        %3235 = vmatpush1.bf16.msra.mxu0 %v3185
        %3236 = vmatprep.subr.bf16.mxu0 %v3184
        %3237 = vmatpush1.bf16.msra.mxu0 %v3183
        %3238 = vmatprep.subr.bf16.mxu0 %v3182
        %3239 = vmatpush1.bf16.msra.mxu0 %v3181
        %3240 = vmatprep.subr.bf16.mxu0 %v3180
        %3241 = vmatpush1.bf16.msra.mxu0 %v3179
        %3242 = vmatprep.subr.bf16.mxu0 %v3178
        %3243 = vmatpush1.bf16.msra.mxu0 %v3177
        %3244 = vmatprep.subr.bf16.mxu0 %v3176
        %3245 = vmatpush1.bf16.msra.mxu0 %v3175
        %3246 = vmatprep.subr.bf16.mxu0 %v3174
        %3247 = vmatpush1.bf16.msra.mxu0 %v3173
        %3248 = vmatprep.subr.bf16.mxu0 0
        %3249 = vmatpush2.bf16.msra.mxu0 0
        %3250 = vmatprep.subr.bf16.mxu0 0
        %3251 = vmatpush2.bf16.msra.mxu0 0
        %3252 = vmatprep.subr.bf16.mxu0 0
        %3253 = vmatpush2.bf16.msra.mxu0 0
        %3254 = vmatprep.subr.bf16.mxu0 %v3230
        %3255 = vmatpush2.bf16.msra.mxu0 %v3227
        %3256 = vmatprep.subr.bf16.mxu0 %v3196
        %3257 = vmatpush2.bf16.msra.mxu0 %v3195
        %3258 = vmatprep.subr.bf16.mxu0 %v3194
        %3259 = vmatpush2.bf16.msra.mxu0 %v3193
        %3260 = vmatprep.subr.bf16.mxu0 %v3192
        %3261 = vmatpush2.bf16.msra.mxu0 %v3191
        %3262 = vmatprep.subr.bf16.mxu0 %v3190
        %3263 = vmatpush2.bf16.msra.mxu0 %v3189
        %3264 = vmatprep.mubr.bf16.mxu0 %v3224
        %3265 = vmatmul.mubr.bf16.gmra.mxu0 %v3095
        %v3266 = vpop.f32.mrf.mxu0
        %v3267 = vadd.f32 %v3090, %v3266
        %v3268 = vpop.f32.mrf.mxu0
        %v3269 = vadd.f32 %v3090, %v3268
        %v3270 = vpop.f32.mrf.mxu0
        %v3271 = vpop.f32.mrf.mxu0
        %3272 = vdwg.mxu0
        %v3273 = vsub.f32 0.0, %v3267
        %v3274 = vsub.f32 0.0, %v3269
        %v3275 = vmul.f32 %v3273, 1.442695
        %v3276 = vpow.pop %v3275
        %v3277 = vmul.f32 %v3274, 1.442695
        %v3278 = vpow.pop %v3277
        %v3279 = vadd.f32 %v3276, 1.0
        %v3280 = vadd.f32 %v3278, 1.0
        %v3281 = vrcp.pop %v3279
        %v3282 = vmul.f32 1.0, %v3281
        %v3283 = vrcp.pop %v3280
        %v3284 = vmul.f32 1.0, %v3283
        %v3285 = vmul.f32 %v3267, %v3282
        %v3286 = vmul.f32 %v3269, %v3284
        %v3287 = vadd.f32 %v1113, %v3285
        %v3288 = vadd.f32 %v1114, %v3286
        %3292 = vrot.lane.b32.xlu0 %v3287, 127
        %v3293 = vpop.permute.xlu0 %3292
        %3294 = vrot.lane.b32.xlu0 %v3288, 127
        %v3295 = vpop.permute.xlu0 %3294
        %3296 = vrot.lane.b32.xlu0 0.0, 127
        %v3297 = vpop.permute.xlu0 %3296
        %vm3298 = vcmask 1039360
        %v3299 = vsel %vm3298, %v3293, %v3295
        %v3300 = vsel %vm3298, %v3295, %v3297
        %v3303 = vmax.f32 %v3287, %v3299
        %v3304 = vmax.f32 %v3288, %v3300
        %v3306 = vmax.f32 %v3297, 0.0
        %3310 = vrot.lane.b32.xlu0 %v3303, 112
        %v3311 = vpop.permute.xlu0 %3310
        %3312 = vrot.lane.b32.xlu0 %v3304, 112
        %v3313 = vpop.permute.xlu0 %3312
        %3314 = vrot.lane.b32.xlu0 %v3306, 112
        %v3315 = vpop.permute.xlu0 %3314
        %vm3316 = vcmask 916480
        %v3317 = vsel %vm3316, %v3311, %v3313
        %v3318 = vsel %vm3316, %v3313, %v3315
        %v3321 = vmax.f32 %v3303, %v3317
        %v3322 = vmax.f32 %v3304, %v3318
        %v3323 = vld [vmem:[%s9] sm:$0xff]
        %v3324 = vld [vmem:[%s9 + $0x8] sm:$0xff]
        %v3325 = vld [vmem:[%s9 + $0x10] sm:$0xff]
        %v3326 = vld [vmem:[%s9 + $0x18] sm:$0xff]
        %v3327 = vld [vmem:[%s9 + $0x20] sm:$0xff]
        %v3328 = vld [vmem:[%s9 + $0x28] sm:$0xff]
        %v3329 = vld [vmem:[%s9 + $0x30] sm:$0xff]
        %v3330 = vld [vmem:[%s9 + $0x38] sm:$0xff]
        %v3331 = vld [vmem:[%s9 + $0x40] sm:$0xff]
        %v3332 = vld [vmem:[%s9 + $0x48] sm:$0xff]
        %v3333 = vld [vmem:[%s9 + $0x50] sm:$0xff]
        %v3334 = vld [vmem:[%s9 + $0x58] sm:$0xff]
        %v3335 = vld [vmem:[%s9 + $0x60] sm:$0xff]
        %v3336 = vld [vmem:[%s9 + $0x68] sm:$0xff]
        %v3337 = vld [vmem:[%s9 + $0x70] sm:$0xff]
        %v3338 = vld [vmem:[%s9 + $0x78] sm:$0xff]
        %v3339 = vld [vmem:[%s9 + $0x80] sm:$0xff]
        %v3340 = vld [vmem:[%s9 + $0x88] sm:$0xff]
        %v3341 = vld [vmem:[%s9 + $0x90] sm:$0xff]
        %v3342 = vld [vmem:[%s9 + $0x98] sm:$0xff]
        %v3343 = vld [vmem:[%s9 + $0xa0] sm:$0xff]
        %v3344 = vld [vmem:[%s9 + $0xa8] sm:$0xff]
        %v3345 = vld [vmem:[%s9 + $0xb0] sm:$0xff]
        %v3346 = vld [vmem:[%s9 + $0xb8] sm:$0xff]
        %v3347 = vld [vmem:[%s9 + $0xc0] sm:$0xff]
        %v3348 = vld [vmem:[%s9 + $0xc8] sm:$0xff]
        %v3349 = vld [vmem:[%s9 + $0xd0] sm:$0xff]
        %v3350 = vld [vmem:[%s9 + $0xd8] sm:$0xff]
        %v3351 = vld [vmem:[%s9 + $0xe0] sm:$0xff]
        %v3352 = vld [vmem:[%s9 + $0xe8] sm:$0xff]
        %v3353 = vld [vmem:[%s9 + $0xf0] sm:$0xff]
        %v3354 = vld [vmem:[%s9 + $0xf8] sm:$0xff]
        %3355 = vmatprep.subr.mxu0 0.0
        %3356 = vmatpush1.msra.mxu0 %v3338
        %3357 = vmatprep.subr.mxu0 0.0
        %3358 = vmatpush1.msra.mxu0 %v3337
        %3359 = vmatprep.subr.mxu0 0.0
        %3360 = vmatpush1.msra.mxu0 %v3336
        %3361 = vmatprep.subr.mxu0 0.0
        %3362 = vmatpush1.msra.mxu0 %v3335
        %3363 = vmatprep.subr.mxu0 0.0
        %3364 = vmatpush1.msra.mxu0 %v3334
        %3365 = vmatprep.subr.mxu0 0.0
        %3366 = vmatpush1.msra.mxu0 %v3333
        %3367 = vmatprep.subr.mxu0 0.0
        %3368 = vmatpush1.msra.mxu0 %v3332
        %3369 = vmatprep.subr.mxu0 0.0
        %3370 = vmatpush1.msra.mxu0 %v3331
        %3371 = vmatprep.subr.mxu0 0.0
        %3372 = vmatpush1.msra.mxu0 %v3330
        %3373 = vmatprep.subr.mxu0 0.0
        %3374 = vmatpush1.msra.mxu0 %v3329
        %3375 = vmatprep.subr.mxu0 0.0
        %3376 = vmatpush1.msra.mxu0 %v3328
        %3377 = vmatprep.subr.mxu0 0.0
        %3378 = vmatpush1.msra.mxu0 %v3327
        %3379 = vmatprep.subr.mxu0 0.0
        %3380 = vmatpush1.msra.mxu0 %v3326
        %3381 = vmatprep.subr.mxu0 0.0
        %3382 = vmatpush1.msra.mxu0 %v3325
        %3383 = vmatprep.subr.mxu0 0.0
        %3384 = vmatpush1.msra.mxu0 %v3324
        %3385 = vmatprep.subr.mxu0 0.0
        %3386 = vmatpush1.msra.mxu0 %v3323
        %3387 = vmatprep.subr.mxu0 0.0
        %3388 = vmatpush2.msra.mxu0 %v3354
        %3389 = vmatprep.subr.mxu0 0.0
        %3390 = vmatpush2.msra.mxu0 %v3353
        %3391 = vmatprep.subr.mxu0 0.0
        %3392 = vmatpush2.msra.mxu0 %v3352
        %3393 = vmatprep.subr.mxu0 0.0
        %3394 = vmatpush2.msra.mxu0 %v3351
        %3395 = vmatprep.subr.mxu0 0.0
        %3396 = vmatpush2.msra.mxu0 %v3350
        %3397 = vmatprep.subr.mxu0 0.0
        %3398 = vmatpush2.msra.mxu0 %v3349
        %3399 = vmatprep.subr.mxu0 0.0
        %3400 = vmatpush2.msra.mxu0 %v3348
        %3401 = vmatprep.subr.mxu0 0.0
        %3402 = vmatpush2.msra.mxu0 %v3347
        %3403 = vmatprep.subr.mxu0 0.0
        %3404 = vmatpush2.msra.mxu0 %v3346
        %3405 = vmatprep.subr.mxu0 0.0
        %3406 = vmatpush2.msra.mxu0 %v3345
        %3407 = vmatprep.subr.mxu0 0.0
        %3408 = vmatpush2.msra.mxu0 %v3344
        %3409 = vmatprep.subr.mxu0 0.0
        %3410 = vmatpush2.msra.mxu0 %v3343
        %3411 = vmatprep.subr.mxu0 0.0
        %3412 = vmatpush2.msra.mxu0 %v3342
        %3413 = vmatprep.subr.mxu0 0.0
        %3414 = vmatpush2.msra.mxu0 %v3341
        %3415 = vmatprep.subr.mxu0 0.0
        %3416 = vmatpush2.msra.mxu0 %v3340
        %3417 = vmatprep.subr.mxu0 0.0
        %3418 = vmatpush2.msra.mxu0 %v3339
        %3419 = vmatprep.mubr.f32.mxu0 %v3322
        %3420 = vmatmul.mubr.f32.gmra.mxu0 %v3321
        %v3421 = vpop.f32.mrf.mxu0
        %v3422 = vadd.f32 0.0, %v3421
        %v3423 = vpop.f32.mrf.mxu0
        %3424 = vdwg.mxu0
        %3426 = vrot.lane.b32.xlu0 %v3422, 18
        %v3427 = vpop.permute.xlu0 %3426
        %v3429 = vsel %vm856, 0.0, %v3427
        %vm3430 = vcmask 670720
        %v3431 = vsel %vm3430, %v3429, 0.0
        %v3432 = vld [vmem:[%s14] sm:$0x1f]
        %v3433 = vlaneseq
        %v3434 = vshrl.u32 %v3433, 7
        %v3435 = vsub.s32 0, %v3434
        %v3436 = vrot.slane %v3432, %v3435
        %v3437 = vmul.f32 %v3431, %v3436
        %v3438 = vpack.c.bf16 %v3437, %v3437
        %vm3439 = vcmask 519168
        %3440 = vst.msk [vmem:[#allocation2] sm:$0xf] %vm3439, %v3438
        %v3441 = vlaneseq
        %v3442 = vshrl.u32 %v3441, 7
        %v3443 = vsub.s32 1, %v3442
        %v3444 = vrot.slane %v3432, %v3443
        %3446 = vrot.lane.b32.xlu0 %v3444, 1
        %v3447 = vpop.permute.xlu0 %3446
        %v3449 = vmul.f32 %v3431, %v3447
        %v3450 = vpack.c.bf16 %v3449, %v3449
        %v3452 = vunpack.c.l.b16 %v3450
        %v3453 = vpack.c.b16 %v3452, %v3452
        %3454 = vrot.lane.b32.xlu0 %v3453, 127
        %v3455 = vpop.permute.xlu0 %3454
        %3457 = vst.msk [vmem:[#allocation2 + $0x8] sm:$0xf] %vm3439, %v3455
        %v3458 = vlaneseq
        %v3459 = vshrl.u32 %v3458, 7
        %v3460 = vsub.s32 2, %v3459
        %v3461 = vrot.slane %v3432, %v3460
        %3463 = vrot.lane.b32.xlu0 %v3461, 2
        %v3464 = vpop.permute.xlu0 %3463
        %v3466 = vmul.f32 %v3431, %v3464
        %v3467 = vpack.c.bf16 %v3466, %v3466
        %v3469 = vunpack.c.l.b16 %v3467
        %v3470 = vpack.c.b16 %v3469, %v3469
        %3471 = vrot.lane.b32.xlu0 %v3470, 126
        %v3472 = vpop.permute.xlu0 %3471
        %3474 = vst.msk [vmem:[#allocation2 + $0x10] sm:$0xf] %vm3439, %v3472
        %v3475 = vlaneseq
        %v3476 = vshrl.u32 %v3475, 7
        %v3477 = vsub.s32 3, %v3476
        %v3478 = vrot.slane %v3432, %v3477
        %3480 = vrot.lane.b32.xlu0 %v3478, 3
        %v3481 = vpop.permute.xlu0 %3480
        %v3483 = vmul.f32 %v3431, %v3481
        %v3484 = vpack.c.bf16 %v3483, %v3483
        %v3486 = vunpack.c.l.b16 %v3484
        %v3487 = vpack.c.b16 %v3486, %v3486
        %3488 = vrot.lane.b32.xlu0 %v3487, 125
        %v3489 = vpop.permute.xlu0 %3488
        %3491 = vst.msk [vmem:[#allocation2 + $0x18] sm:$0xf] %vm3439, %v3489
        %v3492 = vlaneseq
        %v3493 = vshrl.u32 %v3492, 7
        %v3494 = vsub.s32 4, %v3493
        %v3495 = vrot.slane %v3432, %v3494
        %3497 = vrot.lane.b32.xlu0 %v3495, 4
        %v3498 = vpop.permute.xlu0 %3497
        %v3500 = vmul.f32 %v3431, %v3498
        %v3501 = vpack.c.bf16 %v3500, %v3500
        %v3503 = vunpack.c.l.b16 %v3501
        %v3504 = vpack.c.b16 %v3503, %v3503
        %3505 = vrot.lane.b32.xlu0 %v3504, 124
        %v3506 = vpop.permute.xlu0 %3505
        %3508 = vst.msk [vmem:[#allocation2 + $0x20] sm:$0xf] %vm3439, %v3506
        %3510 = vrot.lane.b32.xlu0 %v3436, 8
        %v3511 = vpop.permute.xlu0 %3510
        %v3513 = vmul.f32 %v3431, %v3511
        %v3514 = vpack.c.bf16 %v3513, %v3513
        %v3516 = vunpack.c.l.b16 %v3514
        %v3517 = vpack.c.b16 %v3516, %v3516
        %3518 = vrot.lane.b32.xlu0 %v3517, 120
        %v3519 = vpop.permute.xlu0 %3518
        %3521 = vst.msk [vmem:[#allocation2 + $0x28] sm:$0xf] %vm3439, %v3519
        %3522 = vrot.lane.b32.xlu0 %v3444, 9
        %v3523 = vpop.permute.xlu0 %3522
        %v3525 = vmul.f32 %v3431, %v3523
        %v3526 = vpack.c.bf16 %v3525, %v3525
        %v3528 = vunpack.c.l.b16 %v3526
        %v3529 = vpack.c.b16 %v3528, %v3528
        %3530 = vrot.lane.b32.xlu0 %v3529, 119
        %v3531 = vpop.permute.xlu0 %3530
        %3533 = vst.msk [vmem:[#allocation2 + $0x30] sm:$0xf] %vm3439, %v3531
        %3534 = vrot.lane.b32.xlu0 %v3461, 10
        %v3535 = vpop.permute.xlu0 %3534
        %v3537 = vmul.f32 %v3431, %v3535
        %v3538 = vpack.c.bf16 %v3537, %v3537
        %v3540 = vunpack.c.l.b16 %v3538
        %v3541 = vpack.c.b16 %v3540, %v3540
        %3542 = vrot.lane.b32.xlu0 %v3541, 118
        %v3543 = vpop.permute.xlu0 %3542
        %3545 = vst.msk [vmem:[#allocation2 + $0x38] sm:$0xf] %vm3439, %v3543
        %3546 = vrot.lane.b32.xlu0 %v3478, 11
        %v3547 = vpop.permute.xlu0 %3546
        %v3549 = vmul.f32 %v3431, %v3547
        %v3550 = vpack.c.bf16 %v3549, %v3549
        %v3552 = vunpack.c.l.b16 %v3550
        %v3553 = vpack.c.b16 %v3552, %v3552
        %3554 = vrot.lane.b32.xlu0 %v3553, 117
        %v3555 = vpop.permute.xlu0 %3554
        %3557 = vst.msk [vmem:[#allocation2 + $0x40] sm:$0xf] %vm3439, %v3555
        %3558 = vrot.lane.b32.xlu0 %v3495, 12
        %v3559 = vpop.permute.xlu0 %3558
        %v3561 = vmul.f32 %v3431, %v3559
        %v3562 = vpack.c.bf16 %v3561, %v3561
        %v3564 = vunpack.c.l.b16 %v3562
        %v3565 = vpack.c.b16 %v3564, %v3564
        %3566 = vrot.lane.b32.xlu0 %v3565, 116
        %v3567 = vpop.permute.xlu0 %3566
        %3569 = vst.msk [vmem:[#allocation2 + $0x48] sm:$0xf] %vm3439, %v3567
        %3570 = vrot.lane.b32.xlu0 %v3436, 16
        %v3571 = vpop.permute.xlu0 %3570
        %v3573 = vmul.f32 %v3431, %v3571
        %v3574 = vpack.c.bf16 %v3573, %v3573
        %v3576 = vunpack.c.l.b16 %v3574
        %v3577 = vpack.c.b16 %v3576, %v3576
        %3578 = vrot.lane.b32.xlu0 %v3577, 112
        %v3579 = vpop.permute.xlu0 %3578
        %3581 = vst.msk [vmem:[#allocation2 + $0x50] sm:$0xf] %vm3439, %v3579
        %3582 = vrot.lane.b32.xlu0 %v3444, 17
        %v3583 = vpop.permute.xlu0 %3582
        %v3585 = vmul.f32 %v3431, %v3583
        %v3586 = vpack.c.bf16 %v3585, %v3585
        %v3588 = vunpack.c.l.b16 %v3586
        %v3589 = vpack.c.b16 %v3588, %v3588
        %3590 = vrot.lane.b32.xlu0 %v3589, 111
        %v3591 = vpop.permute.xlu0 %3590
        %3593 = vst.msk [vmem:[#allocation2 + $0x58] sm:$0xf] %vm3439, %v3591
        %3594 = vrot.lane.b32.xlu0 %v3461, 18
        %v3595 = vpop.permute.xlu0 %3594
        %v3597 = vmul.f32 %v3431, %v3595
        %v3598 = vpack.c.bf16 %v3597, %v3597
        %v3600 = vunpack.c.l.b16 %v3598
        %v3601 = vpack.c.b16 %v3600, %v3600
        %3602 = vrot.lane.b32.xlu0 %v3601, 110
        %v3603 = vpop.permute.xlu0 %3602
        %3605 = vst.msk [vmem:[#allocation2 + $0x60] sm:$0xf] %vm3439, %v3603
        %3606 = vrot.lane.b32.xlu0 %v3478, 19
        %v3607 = vpop.permute.xlu0 %3606
        %v3609 = vmul.f32 %v3431, %v3607
        %v3610 = vpack.c.bf16 %v3609, %v3609
        %v3612 = vunpack.c.l.b16 %v3610
        %v3613 = vpack.c.b16 %v3612, %v3612
        %3614 = vrot.lane.b32.xlu0 %v3613, 109
        %v3615 = vpop.permute.xlu0 %3614
        %3617 = vst.msk [vmem:[#allocation2 + $0x68] sm:$0xf] %vm3439, %v3615
        %3618 = vrot.lane.b32.xlu0 %v3495, 20
        %v3619 = vpop.permute.xlu0 %3618
        %v3621 = vmul.f32 %v3431, %v3619
        %v3622 = vpack.c.bf16 %v3621, %v3621
        %v3624 = vunpack.c.l.b16 %v3622
        %v3625 = vpack.c.b16 %v3624, %v3624
        %3626 = vrot.lane.b32.xlu0 %v3625, 108
        %v3627 = vpop.permute.xlu0 %3626
        %3629 = vst.msk [vmem:[#allocation2 + $0x70] sm:$0xf] %vm3439, %v3627
        %3630 = vrot.lane.b32.xlu0 %v3436, 24
        %v3631 = vpop.permute.xlu0 %3630
        %v3633 = vmul.f32 %v3431, %v3631
        %v3634 = vpack.c.bf16 %v3633, %v3633
        %v3636 = vunpack.c.l.b16 %v3634
        %v3637 = vpack.c.b16 %v3636, %v3636
        %3638 = vrot.lane.b32.xlu0 %v3637, 104
        %v3639 = vpop.permute.xlu0 %3638
        %3641 = vst.msk [vmem:[#allocation2 + $0x78] sm:$0xf] %vm3439, %v3639
        %3642 = vrot.lane.b32.xlu0 %v3444, 25
        %v3643 = vpop.permute.xlu0 %3642
        %v3645 = vmul.f32 %v3431, %v3643
        %v3646 = vpack.c.bf16 %v3645, %v3645
        %v3648 = vunpack.c.l.b16 %v3646
        %v3649 = vpack.c.b16 %v3648, %v3648
        %3650 = vrot.lane.b32.xlu0 %v3649, 103
        %v3651 = vpop.permute.xlu0 %3650
        %3653 = vst.msk [vmem:[#allocation2 + $0x80] sm:$0xf] %vm3439, %v3651
        %3654 = vrot.lane.b32.xlu0 %v3461, 26
        %v3655 = vpop.permute.xlu0 %3654
        %v3657 = vmul.f32 %v3431, %v3655
        %v3658 = vpack.c.bf16 %v3657, %v3657
        %v3660 = vunpack.c.l.b16 %v3658
        %v3661 = vpack.c.b16 %v3660, %v3660
        %3662 = vrot.lane.b32.xlu0 %v3661, 102
        %v3663 = vpop.permute.xlu0 %3662
        %3665 = vst.msk [vmem:[#allocation2 + $0x88] sm:$0xf] %vm3439, %v3663
        %3666 = vrot.lane.b32.xlu0 %v3478, 27
        %v3667 = vpop.permute.xlu0 %3666
        %v3669 = vmul.f32 %v3431, %v3667
        %v3670 = vpack.c.bf16 %v3669, %v3669
        %v3672 = vunpack.c.l.b16 %v3670
        %v3673 = vpack.c.b16 %v3672, %v3672
        %3674 = vrot.lane.b32.xlu0 %v3673, 101
        %v3675 = vpop.permute.xlu0 %3674
        %3677 = vst.msk [vmem:[#allocation2 + $0x90] sm:$0xf] %vm3439, %v3675
        %3678 = vrot.lane.b32.xlu0 %v3495, 28
        %v3679 = vpop.permute.xlu0 %3678
        %v3681 = vmul.f32 %v3431, %v3679
        %v3682 = vpack.c.bf16 %v3681, %v3681
        %v3684 = vunpack.c.l.b16 %v3682
        %v3685 = vpack.c.b16 %v3684, %v3684
        %3686 = vrot.lane.b32.xlu0 %v3685, 100
        %v3687 = vpop.permute.xlu0 %3686
        %3689 = vst.msk [vmem:[#allocation2 + $0x98] sm:$0xf] %vm3439, %v3687
        %3690 = vrot.lane.b32.xlu0 %v3436, 32
        %v3691 = vpop.permute.xlu0 %3690
        %v3693 = vmul.f32 %v3431, %v3691
        %v3694 = vpack.c.bf16 %v3693, %v3693
        %v3696 = vunpack.c.l.b16 %v3694
        %v3697 = vpack.c.b16 %v3696, %v3696
        %3698 = vrot.lane.b32.xlu0 %v3697, 96
        %v3699 = vpop.permute.xlu0 %3698
        %3701 = vst.msk [vmem:[#allocation2 + $0xa0] sm:$0xf] %vm3439, %v3699
        %3702 = vrot.lane.b32.xlu0 %v3444, 33
        %v3703 = vpop.permute.xlu0 %3702
        %v3705 = vmul.f32 %v3431, %v3703
        %v3706 = vpack.c.bf16 %v3705, %v3705
        %v3708 = vunpack.c.l.b16 %v3706
        %v3709 = vpack.c.b16 %v3708, %v3708
        %3710 = vrot.lane.b32.xlu0 %v3709, 95
        %v3711 = vpop.permute.xlu0 %3710
        %3713 = vst.msk [vmem:[#allocation2 + $0xa8] sm:$0xf] %vm3439, %v3711
        %3714 = vrot.lane.b32.xlu0 %v3461, 34
        %v3715 = vpop.permute.xlu0 %3714
        %v3717 = vmul.f32 %v3431, %v3715
        %v3718 = vpack.c.bf16 %v3717, %v3717
        %v3720 = vunpack.c.l.b16 %v3718
        %v3721 = vpack.c.b16 %v3720, %v3720
        %3722 = vrot.lane.b32.xlu0 %v3721, 94
        %v3723 = vpop.permute.xlu0 %3722
        %3725 = vst.msk [vmem:[#allocation2 + $0xb0] sm:$0xf] %vm3439, %v3723
        %3726 = vrot.lane.b32.xlu0 %v3478, 35
        %v3727 = vpop.permute.xlu0 %3726
        %v3729 = vmul.f32 %v3431, %v3727
        %v3730 = vpack.c.bf16 %v3729, %v3729
        %v3732 = vunpack.c.l.b16 %v3730
        %v3733 = vpack.c.b16 %v3732, %v3732
        %3734 = vrot.lane.b32.xlu0 %v3733, 93
        %v3735 = vpop.permute.xlu0 %3734
        %3737 = vst.msk [vmem:[#allocation2 + $0xb8] sm:$0xf] %vm3439, %v3735
        %3738 = vrot.lane.b32.xlu0 %v3495, 36
        %v3739 = vpop.permute.xlu0 %3738
        %v3741 = vmul.f32 %v3431, %v3739
        %v3742 = vpack.c.bf16 %v3741, %v3741
        %v3744 = vunpack.c.l.b16 %v3742
        %v3745 = vpack.c.b16 %v3744, %v3744
        %3746 = vrot.lane.b32.xlu0 %v3745, 92
        %v3747 = vpop.permute.xlu0 %3746
        %3749 = vst.msk [vmem:[#allocation2 + $0xc0] sm:$0xf] %vm3439, %v3747
        %v3750 = vld [vmem:[%s10] sm:$0xff]
        %v3751 = vld [vmem:[#allocation2] sm:$0xf]
        %v3752 = vld [vmem:[#allocation2 + $0x8] sm:$0xf]
        %v3753 = vld [vmem:[#allocation2 + $0x10] sm:$0xf]
        %v3754 = vld [vmem:[#allocation2 + $0x18] sm:$0xf]
        %v3755 = vld [vmem:[#allocation2 + $0x20] sm:$0xf]
        %v3756 = vld [vmem:[#allocation2 + $0x28] sm:$0xf]
        %v3757 = vld [vmem:[#allocation2 + $0x30] sm:$0xf]
        %v3758 = vld [vmem:[#allocation2 + $0x38] sm:$0xf]
        %v3759 = vld [vmem:[#allocation2 + $0x40] sm:$0xf]
        %v3760 = vld [vmem:[#allocation2 + $0x48] sm:$0xf]
        %v3761 = vld [vmem:[#allocation2 + $0x50] sm:$0xf]
        %v3762 = vld [vmem:[#allocation2 + $0x58] sm:$0xf]
        %v3763 = vld [vmem:[#allocation2 + $0x60] sm:$0xf]
        %v3764 = vld [vmem:[#allocation2 + $0x68] sm:$0xf]
        %v3765 = vld [vmem:[#allocation2 + $0x70] sm:$0xf]
        %v3766 = vld [vmem:[#allocation2 + $0x78] sm:$0xf]
        %v3767 = vld [vmem:[#allocation2 + $0x80] sm:$0xf]
        %v3768 = vld [vmem:[#allocation2 + $0x88] sm:$0xf]
        %v3769 = vld [vmem:[#allocation2 + $0x90] sm:$0xf]
        %v3770 = vld [vmem:[#allocation2 + $0x98] sm:$0xf]
        %v3771 = vld [vmem:[#allocation2 + $0xa0] sm:$0xf]
        %v3772 = vld [vmem:[#allocation2 + $0xa8] sm:$0xf]
        %v3773 = vld [vmem:[#allocation2 + $0xb0] sm:$0xf]
        %v3774 = vld [vmem:[#allocation2 + $0xb8] sm:$0xf]
        %v3775 = vld [vmem:[#allocation2 + $0xc0] sm:$0xf]
        %v3776 = vld [vmem:[%s11] sm:$0xff]
        %3778 = vset.pattern.permute.xlu0 0
        %3779 = vperm.xlu0 %3778, %v3776
        %v3780 = vpop.permute.xlu0 %3779
        %v3783 = vunpack.c.l.b16 %v3750
        %v3784 = vunpack.c.h.b16 %v3750
        %v3785 = vpack.c.b16 %v3783, %v3783
        %v3786 = vpack.c.b16 %v3784, %v3784
        %v3813 = vunpack.c.l.b16 %v3751
        %v3814 = vunpack.c.l.b16 %v3752
        %v3815 = vunpack.c.l.b16 %v3753
        %v3816 = vunpack.c.l.b16 %v3754
        %v3817 = vunpack.c.l.b16 %v3755
        %v3818 = vunpack.c.l.b16 %v3756
        %v3819 = vunpack.c.l.b16 %v3757
        %v3820 = vunpack.c.l.b16 %v3758
        %v3821 = vunpack.c.l.b16 %v3759
        %v3822 = vunpack.c.l.b16 %v3760
        %v3823 = vunpack.c.l.b16 %v3761
        %v3824 = vunpack.c.l.b16 %v3762
        %v3825 = vunpack.c.l.b16 %v3763
        %v3826 = vunpack.c.l.b16 %v3764
        %v3827 = vunpack.c.l.b16 %v3765
        %v3828 = vunpack.c.l.b16 %v3766
        %v3829 = vunpack.c.l.b16 %v3767
        %v3830 = vunpack.c.l.b16 %v3768
        %v3831 = vunpack.c.l.b16 %v3769
        %v3832 = vunpack.c.l.b16 %v3770
        %v3833 = vunpack.c.l.b16 %v3771
        %v3834 = vunpack.c.l.b16 %v3772
        %v3835 = vunpack.c.l.b16 %v3773
        %v3836 = vunpack.c.l.b16 %v3774
        %v3837 = vunpack.c.l.b16 %v3775
        %v3838 = vpack.c.b16 %v3814, %v3813
        %v3839 = vpack.c.b16 %v3816, %v3815
        %v3840 = vpack.c.b16 %v3818, %v3817
        %v3841 = vpack.c.b16 %v3820, %v3819
        %v3842 = vpack.c.b16 %v3822, %v3821
        %v3843 = vpack.c.b16 %v3824, %v3823
        %v3844 = vpack.c.b16 %v3826, %v3825
        %v3845 = vpack.c.b16 %v3828, %v3827
        %v3846 = vpack.c.b16 %v3830, %v3829
        %v3847 = vpack.c.b16 %v3832, %v3831
        %v3848 = vpack.c.b16 %v3834, %v3833
        %v3849 = vpack.c.b16 %v3836, %v3835
        %v3850 = vpack.c.b16 %v3837, %v3837
        %v3864 = vsel %vm1049, %v3786, 0
        %v3867 = vsel %vm1053, %v3850, 0
        %3869 = vmatprep.subr.bf16.mxu0 0
        %3870 = vmatpush1.bf16.msra.mxu0 %v3845
        %3871 = vmatprep.subr.bf16.mxu0 0
        %3872 = vmatpush1.bf16.msra.mxu0 %v3844
        %3873 = vmatprep.subr.bf16.mxu0 0
        %3874 = vmatpush1.bf16.msra.mxu0 %v3843
        %3875 = vmatprep.subr.bf16.mxu0 0
        %3876 = vmatpush1.bf16.msra.mxu0 %v3842
        %3877 = vmatprep.subr.bf16.mxu0 0
        %3878 = vmatpush1.bf16.msra.mxu0 %v3841
        %3879 = vmatprep.subr.bf16.mxu0 0
        %3880 = vmatpush1.bf16.msra.mxu0 %v3840
        %3881 = vmatprep.subr.bf16.mxu0 0
        %3882 = vmatpush1.bf16.msra.mxu0 %v3839
        %3883 = vmatprep.subr.bf16.mxu0 0
        %3884 = vmatpush1.bf16.msra.mxu0 %v3838
        %3885 = vmatprep.subr.bf16.mxu0 0
        %3886 = vmatpush2.bf16.msra.mxu0 0
        %3887 = vmatprep.subr.bf16.mxu0 0
        %3888 = vmatpush2.bf16.msra.mxu0 0
        %3889 = vmatprep.subr.bf16.mxu0 0
        %3890 = vmatpush2.bf16.msra.mxu0 0
        %3891 = vmatprep.subr.bf16.mxu0 0
        %3892 = vmatpush2.bf16.msra.mxu0 %v3867
        %3893 = vmatprep.subr.bf16.mxu0 0
        %3894 = vmatpush2.bf16.msra.mxu0 %v3849
        %3895 = vmatprep.subr.bf16.mxu0 0
        %3896 = vmatpush2.bf16.msra.mxu0 %v3848
        %3897 = vmatprep.subr.bf16.mxu0 0
        %3898 = vmatpush2.bf16.msra.mxu0 %v3847
        %3899 = vmatprep.subr.bf16.mxu0 0
        %3900 = vmatpush2.bf16.msra.mxu0 %v3846
        %3901 = vmatprep.mubr.bf16.mxu0 %v3864
        %3902 = vmatmul.mubr.bf16.gmra.mxu0 %v3785
        %v3903 = vpop.f32.mrf.mxu0
        %v3904 = vadd.f32 %v3780, %v3903
        %v3905 = vpop.f32.mrf.mxu0
        %v3906 = vpop.f32.mrf.mxu0
        %v3907 = vpop.f32.mrf.mxu0
        %3908 = vdwg.mxu0
        %v3909 = vsub.f32 0.0, %v3904
        %v3910 = vmul.f32 %v3909, 1.442695
        %v3911 = vpow.pop %v3910
        %v3912 = vadd.f32 %v3911, 1.0
        %v3913 = vrcp.pop %v3912
        %v3914 = vmul.f32 1.0, %v3913
        %v3915 = vmul.f32 %v3904, %v3914
        %3917 = vrot.lane.b32.xlu0 %v3915, 18
        %v3918 = vpop.permute.xlu0 %3917
        %v3920 = vsel %vm856, 0.0, %v3918
        %v3921 = vsel %vm3430, %v3920, 0.0
        %v3922 = vld [vmem:[%s14] sm:$0x1f]
        %v3923 = vlaneseq
        %v3924 = vshrl.u32 %v3923, 7
        %v3925 = vsub.s32 0, %v3924
        %v3926 = vrot.slane %v3922, %v3925
        %v3927 = vmul.f32 %v3921, %v3926
        %v3928 = vpack.c.bf16 %v3927, %v3927
        %3929 = vst.msk [vmem:[#allocation2] sm:$0xf] %vm3439, %v3928
        %v3930 = vlaneseq
        %v3931 = vshrl.u32 %v3930, 7
        %v3932 = vsub.s32 1, %v3931
        %v3933 = vrot.slane %v3922, %v3932
        %3935 = vrot.lane.b32.xlu0 %v3933, 1
        %v3936 = vpop.permute.xlu0 %3935
        %v3938 = vmul.f32 %v3921, %v3936
        %v3939 = vpack.c.bf16 %v3938, %v3938
        %v3941 = vunpack.c.l.b16 %v3939
        %v3942 = vpack.c.b16 %v3941, %v3941
        %3943 = vrot.lane.b32.xlu0 %v3942, 127
        %v3944 = vpop.permute.xlu0 %3943
        %3946 = vst.msk [vmem:[#allocation2 + $0x8] sm:$0xf] %vm3439, %v3944
        %v3947 = vlaneseq
        %v3948 = vshrl.u32 %v3947, 7
        %v3949 = vsub.s32 2, %v3948
        %v3950 = vrot.slane %v3922, %v3949
        %3952 = vrot.lane.b32.xlu0 %v3950, 2
        %v3953 = vpop.permute.xlu0 %3952
        %v3955 = vmul.f32 %v3921, %v3953
        %v3956 = vpack.c.bf16 %v3955, %v3955
        %v3958 = vunpack.c.l.b16 %v3956
        %v3959 = vpack.c.b16 %v3958, %v3958
        %3960 = vrot.lane.b32.xlu0 %v3959, 126
        %v3961 = vpop.permute.xlu0 %3960
        %3963 = vst.msk [vmem:[#allocation2 + $0x10] sm:$0xf] %vm3439, %v3961
        %v3964 = vlaneseq
        %v3965 = vshrl.u32 %v3964, 7
        %v3966 = vsub.s32 3, %v3965
        %v3967 = vrot.slane %v3922, %v3966
        %3969 = vrot.lane.b32.xlu0 %v3967, 3
        %v3970 = vpop.permute.xlu0 %3969
        %v3972 = vmul.f32 %v3921, %v3970
        %v3973 = vpack.c.bf16 %v3972, %v3972
        %v3975 = vunpack.c.l.b16 %v3973
        %v3976 = vpack.c.b16 %v3975, %v3975
        %3977 = vrot.lane.b32.xlu0 %v3976, 125
        %v3978 = vpop.permute.xlu0 %3977
        %3980 = vst.msk [vmem:[#allocation2 + $0x18] sm:$0xf] %vm3439, %v3978
        %v3981 = vlaneseq
        %v3982 = vshrl.u32 %v3981, 7
        %v3983 = vsub.s32 4, %v3982
        %v3984 = vrot.slane %v3922, %v3983
        %3986 = vrot.lane.b32.xlu0 %v3984, 4
        %v3987 = vpop.permute.xlu0 %3986
        %v3989 = vmul.f32 %v3921, %v3987
        %v3990 = vpack.c.bf16 %v3989, %v3989
        %v3992 = vunpack.c.l.b16 %v3990
        %v3993 = vpack.c.b16 %v3992, %v3992
        %3994 = vrot.lane.b32.xlu0 %v3993, 124
        %v3995 = vpop.permute.xlu0 %3994
        %3997 = vst.msk [vmem:[#allocation2 + $0x20] sm:$0xf] %vm3439, %v3995
        %3999 = vrot.lane.b32.xlu0 %v3926, 8
        %v4000 = vpop.permute.xlu0 %3999
        %v4002 = vmul.f32 %v3921, %v4000
        %v4003 = vpack.c.bf16 %v4002, %v4002
        %v4005 = vunpack.c.l.b16 %v4003
        %v4006 = vpack.c.b16 %v4005, %v4005
        %4007 = vrot.lane.b32.xlu0 %v4006, 120
        %v4008 = vpop.permute.xlu0 %4007
        %4010 = vst.msk [vmem:[#allocation2 + $0x28] sm:$0xf] %vm3439, %v4008
        %4011 = vrot.lane.b32.xlu0 %v3933, 9
        %v4012 = vpop.permute.xlu0 %4011
        %v4014 = vmul.f32 %v3921, %v4012
        %v4015 = vpack.c.bf16 %v4014, %v4014
        %v4017 = vunpack.c.l.b16 %v4015
        %v4018 = vpack.c.b16 %v4017, %v4017
        %4019 = vrot.lane.b32.xlu0 %v4018, 119
        %v4020 = vpop.permute.xlu0 %4019
        %4022 = vst.msk [vmem:[#allocation2 + $0x30] sm:$0xf] %vm3439, %v4020
        %4023 = vrot.lane.b32.xlu0 %v3950, 10
        %v4024 = vpop.permute.xlu0 %4023
        %v4026 = vmul.f32 %v3921, %v4024
        %v4027 = vpack.c.bf16 %v4026, %v4026
        %v4029 = vunpack.c.l.b16 %v4027
        %v4030 = vpack.c.b16 %v4029, %v4029
        %4031 = vrot.lane.b32.xlu0 %v4030, 118
        %v4032 = vpop.permute.xlu0 %4031
        %4034 = vst.msk [vmem:[#allocation2 + $0x38] sm:$0xf] %vm3439, %v4032
        %4035 = vrot.lane.b32.xlu0 %v3967, 11
        %v4036 = vpop.permute.xlu0 %4035
        %v4038 = vmul.f32 %v3921, %v4036
        %v4039 = vpack.c.bf16 %v4038, %v4038
        %v4041 = vunpack.c.l.b16 %v4039
        %v4042 = vpack.c.b16 %v4041, %v4041
        %4043 = vrot.lane.b32.xlu0 %v4042, 117
        %v4044 = vpop.permute.xlu0 %4043
        %4046 = vst.msk [vmem:[#allocation2 + $0x40] sm:$0xf] %vm3439, %v4044
        %4047 = vrot.lane.b32.xlu0 %v3984, 12
        %v4048 = vpop.permute.xlu0 %4047
        %v4050 = vmul.f32 %v3921, %v4048
        %v4051 = vpack.c.bf16 %v4050, %v4050
        %v4053 = vunpack.c.l.b16 %v4051
        %v4054 = vpack.c.b16 %v4053, %v4053
        %4055 = vrot.lane.b32.xlu0 %v4054, 116
        %v4056 = vpop.permute.xlu0 %4055
        %4058 = vst.msk [vmem:[#allocation2 + $0x48] sm:$0xf] %vm3439, %v4056
        %4059 = vrot.lane.b32.xlu0 %v3926, 16
        %v4060 = vpop.permute.xlu0 %4059
        %v4062 = vmul.f32 %v3921, %v4060
        %v4063 = vpack.c.bf16 %v4062, %v4062
        %v4065 = vunpack.c.l.b16 %v4063
        %v4066 = vpack.c.b16 %v4065, %v4065
        %4067 = vrot.lane.b32.xlu0 %v4066, 112
        %v4068 = vpop.permute.xlu0 %4067
        %4070 = vst.msk [vmem:[#allocation2 + $0x50] sm:$0xf] %vm3439, %v4068
        %4071 = vrot.lane.b32.xlu0 %v3933, 17
        %v4072 = vpop.permute.xlu0 %4071
        %v4074 = vmul.f32 %v3921, %v4072
        %v4075 = vpack.c.bf16 %v4074, %v4074
        %v4077 = vunpack.c.l.b16 %v4075
        %v4078 = vpack.c.b16 %v4077, %v4077
        %4079 = vrot.lane.b32.xlu0 %v4078, 111
        %v4080 = vpop.permute.xlu0 %4079
        %4082 = vst.msk [vmem:[#allocation2 + $0x58] sm:$0xf] %vm3439, %v4080
        %4083 = vrot.lane.b32.xlu0 %v3950, 18
        %v4084 = vpop.permute.xlu0 %4083
        %v4086 = vmul.f32 %v3921, %v4084
        %v4087 = vpack.c.bf16 %v4086, %v4086
        %v4089 = vunpack.c.l.b16 %v4087
        %v4090 = vpack.c.b16 %v4089, %v4089
        %4091 = vrot.lane.b32.xlu0 %v4090, 110
        %v4092 = vpop.permute.xlu0 %4091
        %4094 = vst.msk [vmem:[#allocation2 + $0x60] sm:$0xf] %vm3439, %v4092
        %4095 = vrot.lane.b32.xlu0 %v3967, 19
        %v4096 = vpop.permute.xlu0 %4095
        %v4098 = vmul.f32 %v3921, %v4096
        %v4099 = vpack.c.bf16 %v4098, %v4098
        %v4101 = vunpack.c.l.b16 %v4099
        %v4102 = vpack.c.b16 %v4101, %v4101
        %4103 = vrot.lane.b32.xlu0 %v4102, 109
        %v4104 = vpop.permute.xlu0 %4103
        %4106 = vst.msk [vmem:[#allocation2 + $0x68] sm:$0xf] %vm3439, %v4104
        %4107 = vrot.lane.b32.xlu0 %v3984, 20
        %v4108 = vpop.permute.xlu0 %4107
        %v4110 = vmul.f32 %v3921, %v4108
        %v4111 = vpack.c.bf16 %v4110, %v4110
        %v4113 = vunpack.c.l.b16 %v4111
        %v4114 = vpack.c.b16 %v4113, %v4113
        %4115 = vrot.lane.b32.xlu0 %v4114, 108
        %v4116 = vpop.permute.xlu0 %4115
        %4118 = vst.msk [vmem:[#allocation2 + $0x70] sm:$0xf] %vm3439, %v4116
        %4119 = vrot.lane.b32.xlu0 %v3926, 24
        %v4120 = vpop.permute.xlu0 %4119
        %v4122 = vmul.f32 %v3921, %v4120
        %v4123 = vpack.c.bf16 %v4122, %v4122
        %v4125 = vunpack.c.l.b16 %v4123
        %v4126 = vpack.c.b16 %v4125, %v4125
        %4127 = vrot.lane.b32.xlu0 %v4126, 104
        %v4128 = vpop.permute.xlu0 %4127
        %4130 = vst.msk [vmem:[#allocation2 + $0x78] sm:$0xf] %vm3439, %v4128
        %4131 = vrot.lane.b32.xlu0 %v3933, 25
        %v4132 = vpop.permute.xlu0 %4131
        %v4134 = vmul.f32 %v3921, %v4132
        %v4135 = vpack.c.bf16 %v4134, %v4134
        %v4137 = vunpack.c.l.b16 %v4135
        %v4138 = vpack.c.b16 %v4137, %v4137
        %4139 = vrot.lane.b32.xlu0 %v4138, 103
        %v4140 = vpop.permute.xlu0 %4139
        %4142 = vst.msk [vmem:[#allocation2 + $0x80] sm:$0xf] %vm3439, %v4140
        %4143 = vrot.lane.b32.xlu0 %v3950, 26
        %v4144 = vpop.permute.xlu0 %4143
        %v4146 = vmul.f32 %v3921, %v4144
        %v4147 = vpack.c.bf16 %v4146, %v4146
        %v4149 = vunpack.c.l.b16 %v4147
        %v4150 = vpack.c.b16 %v4149, %v4149
        %4151 = vrot.lane.b32.xlu0 %v4150, 102
        %v4152 = vpop.permute.xlu0 %4151
        %4154 = vst.msk [vmem:[#allocation2 + $0x88] sm:$0xf] %vm3439, %v4152
        %4155 = vrot.lane.b32.xlu0 %v3967, 27
        %v4156 = vpop.permute.xlu0 %4155
        %v4158 = vmul.f32 %v3921, %v4156
        %v4159 = vpack.c.bf16 %v4158, %v4158
        %v4161 = vunpack.c.l.b16 %v4159
        %v4162 = vpack.c.b16 %v4161, %v4161
        %4163 = vrot.lane.b32.xlu0 %v4162, 101
        %v4164 = vpop.permute.xlu0 %4163
        %4166 = vst.msk [vmem:[#allocation2 + $0x90] sm:$0xf] %vm3439, %v4164
        %4167 = vrot.lane.b32.xlu0 %v3984, 28
        %v4168 = vpop.permute.xlu0 %4167
        %v4170 = vmul.f32 %v3921, %v4168
        %v4171 = vpack.c.bf16 %v4170, %v4170
        %v4173 = vunpack.c.l.b16 %v4171
        %v4174 = vpack.c.b16 %v4173, %v4173
        %4175 = vrot.lane.b32.xlu0 %v4174, 100
        %v4176 = vpop.permute.xlu0 %4175
        %4178 = vst.msk [vmem:[#allocation2 + $0x98] sm:$0xf] %vm3439, %v4176
        %4179 = vrot.lane.b32.xlu0 %v3926, 32
        %v4180 = vpop.permute.xlu0 %4179
        %v4182 = vmul.f32 %v3921, %v4180
        %v4183 = vpack.c.bf16 %v4182, %v4182
        %v4185 = vunpack.c.l.b16 %v4183
        %v4186 = vpack.c.b16 %v4185, %v4185
        %4187 = vrot.lane.b32.xlu0 %v4186, 96
        %v4188 = vpop.permute.xlu0 %4187
        %4190 = vst.msk [vmem:[#allocation2 + $0xa0] sm:$0xf] %vm3439, %v4188
        %4191 = vrot.lane.b32.xlu0 %v3933, 33
        %v4192 = vpop.permute.xlu0 %4191
        %v4194 = vmul.f32 %v3921, %v4192
        %v4195 = vpack.c.bf16 %v4194, %v4194
        %v4197 = vunpack.c.l.b16 %v4195
        %v4198 = vpack.c.b16 %v4197, %v4197
        %4199 = vrot.lane.b32.xlu0 %v4198, 95
        %v4200 = vpop.permute.xlu0 %4199
        %4202 = vst.msk [vmem:[#allocation2 + $0xa8] sm:$0xf] %vm3439, %v4200
        %4203 = vrot.lane.b32.xlu0 %v3950, 34
        %v4204 = vpop.permute.xlu0 %4203
        %v4206 = vmul.f32 %v3921, %v4204
        %v4207 = vpack.c.bf16 %v4206, %v4206
        %v4209 = vunpack.c.l.b16 %v4207
        %v4210 = vpack.c.b16 %v4209, %v4209
        %4211 = vrot.lane.b32.xlu0 %v4210, 94
        %v4212 = vpop.permute.xlu0 %4211
        %4214 = vst.msk [vmem:[#allocation2 + $0xb0] sm:$0xf] %vm3439, %v4212
        %4215 = vrot.lane.b32.xlu0 %v3967, 35
        %v4216 = vpop.permute.xlu0 %4215
        %v4218 = vmul.f32 %v3921, %v4216
        %v4219 = vpack.c.bf16 %v4218, %v4218
        %v4221 = vunpack.c.l.b16 %v4219
        %v4222 = vpack.c.b16 %v4221, %v4221
        %4223 = vrot.lane.b32.xlu0 %v4222, 93
        %v4224 = vpop.permute.xlu0 %4223
        %4226 = vst.msk [vmem:[#allocation2 + $0xb8] sm:$0xf] %vm3439, %v4224
        %4227 = vrot.lane.b32.xlu0 %v3984, 36
        %v4228 = vpop.permute.xlu0 %4227
        %v4230 = vmul.f32 %v3921, %v4228
        %v4231 = vpack.c.bf16 %v4230, %v4230
        %v4233 = vunpack.c.l.b16 %v4231
        %v4234 = vpack.c.b16 %v4233, %v4233
        %4235 = vrot.lane.b32.xlu0 %v4234, 92
        %v4236 = vpop.permute.xlu0 %4235
        %4238 = vst.msk [vmem:[#allocation2 + $0xc0] sm:$0xf] %vm3439, %v4236
        %v4239 = vld [vmem:[%s12] sm:$0xff]
        %v4240 = vld [vmem:[#allocation2] sm:$0xf]
        %v4241 = vld [vmem:[#allocation2 + $0x8] sm:$0xf]
        %v4242 = vld [vmem:[#allocation2 + $0x10] sm:$0xf]
        %v4243 = vld [vmem:[#allocation2 + $0x18] sm:$0xf]
        %v4244 = vld [vmem:[#allocation2 + $0x20] sm:$0xf]
        %v4245 = vld [vmem:[#allocation2 + $0x28] sm:$0xf]
        %v4246 = vld [vmem:[#allocation2 + $0x30] sm:$0xf]
        %v4247 = vld [vmem:[#allocation2 + $0x38] sm:$0xf]
        %v4248 = vld [vmem:[#allocation2 + $0x40] sm:$0xf]
        %v4249 = vld [vmem:[#allocation2 + $0x48] sm:$0xf]
        %v4250 = vld [vmem:[#allocation2 + $0x50] sm:$0xf]
        %v4251 = vld [vmem:[#allocation2 + $0x58] sm:$0xf]
        %v4252 = vld [vmem:[#allocation2 + $0x60] sm:$0xf]
        %v4253 = vld [vmem:[#allocation2 + $0x68] sm:$0xf]
        %v4254 = vld [vmem:[#allocation2 + $0x70] sm:$0xf]
        %v4255 = vld [vmem:[#allocation2 + $0x78] sm:$0xf]
        %v4256 = vld [vmem:[#allocation2 + $0x80] sm:$0xf]
        %v4257 = vld [vmem:[#allocation2 + $0x88] sm:$0xf]
        %v4258 = vld [vmem:[#allocation2 + $0x90] sm:$0xf]
        %v4259 = vld [vmem:[#allocation2 + $0x98] sm:$0xf]
        %v4260 = vld [vmem:[#allocation2 + $0xa0] sm:$0xf]
        %v4261 = vld [vmem:[#allocation2 + $0xa8] sm:$0xf]
        %v4262 = vld [vmem:[#allocation2 + $0xb0] sm:$0xf]
        %v4263 = vld [vmem:[#allocation2 + $0xb8] sm:$0xf]
        %v4264 = vld [vmem:[#allocation2 + $0xc0] sm:$0xf]
        %v4265 = vld [vmem:[%s13] sm:$0xff]
        %4267 = vset.pattern.permute.xlu0 0
        %4268 = vperm.xlu0 %4267, %v4265
        %v4269 = vpop.permute.xlu0 %4268
        %v4272 = vunpack.c.l.b16 %v4239
        %v4273 = vunpack.c.h.b16 %v4239
        %v4274 = vpack.c.b16 %v4272, %v4272
        %v4275 = vpack.c.b16 %v4273, %v4273
        %v4302 = vunpack.c.l.b16 %v4240
        %v4303 = vunpack.c.l.b16 %v4241
        %v4304 = vunpack.c.l.b16 %v4242
        %v4305 = vunpack.c.l.b16 %v4243
        %v4306 = vunpack.c.l.b16 %v4244
        %v4307 = vunpack.c.l.b16 %v4245
        %v4308 = vunpack.c.l.b16 %v4246
        %v4309 = vunpack.c.l.b16 %v4247
        %v4310 = vunpack.c.l.b16 %v4248
        %v4311 = vunpack.c.l.b16 %v4249
        %v4312 = vunpack.c.l.b16 %v4250
        %v4313 = vunpack.c.l.b16 %v4251
        %v4314 = vunpack.c.l.b16 %v4252
        %v4315 = vunpack.c.l.b16 %v4253
        %v4316 = vunpack.c.l.b16 %v4254
        %v4317 = vunpack.c.l.b16 %v4255
        %v4318 = vunpack.c.l.b16 %v4256
        %v4319 = vunpack.c.l.b16 %v4257
        %v4320 = vunpack.c.l.b16 %v4258
        %v4321 = vunpack.c.l.b16 %v4259
        %v4322 = vunpack.c.l.b16 %v4260
        %v4323 = vunpack.c.l.b16 %v4261
        %v4324 = vunpack.c.l.b16 %v4262
        %v4325 = vunpack.c.l.b16 %v4263
        %v4326 = vunpack.c.l.b16 %v4264
        %v4327 = vpack.c.b16 %v4303, %v4302
        %v4328 = vpack.c.b16 %v4305, %v4304
        %v4329 = vpack.c.b16 %v4307, %v4306
        %v4330 = vpack.c.b16 %v4309, %v4308
        %v4331 = vpack.c.b16 %v4311, %v4310
        %v4332 = vpack.c.b16 %v4313, %v4312
        %v4333 = vpack.c.b16 %v4315, %v4314
        %v4334 = vpack.c.b16 %v4317, %v4316
        %v4335 = vpack.c.b16 %v4319, %v4318
        %v4336 = vpack.c.b16 %v4321, %v4320
        %v4337 = vpack.c.b16 %v4323, %v4322
        %v4338 = vpack.c.b16 %v4325, %v4324
        %v4339 = vpack.c.b16 %v4326, %v4326
        %v4353 = vsel %vm1049, %v4275, 0
        %v4356 = vsel %vm1053, %v4339, 0
        %4358 = vmatprep.subr.bf16.mxu0 0
        %4359 = vmatpush1.bf16.msra.mxu0 %v4334
        %4360 = vmatprep.subr.bf16.mxu0 0
        %4361 = vmatpush1.bf16.msra.mxu0 %v4333
        %4362 = vmatprep.subr.bf16.mxu0 0
        %4363 = vmatpush1.bf16.msra.mxu0 %v4332
        %4364 = vmatprep.subr.bf16.mxu0 0
        %4365 = vmatpush1.bf16.msra.mxu0 %v4331
        %4366 = vmatprep.subr.bf16.mxu0 0
        %4367 = vmatpush1.bf16.msra.mxu0 %v4330
        %4368 = vmatprep.subr.bf16.mxu0 0
        %4369 = vmatpush1.bf16.msra.mxu0 %v4329
        %4370 = vmatprep.subr.bf16.mxu0 0
        %4371 = vmatpush1.bf16.msra.mxu0 %v4328
        %4372 = vmatprep.subr.bf16.mxu0 0
        %4373 = vmatpush1.bf16.msra.mxu0 %v4327
        %4374 = vmatprep.subr.bf16.mxu0 0
        %4375 = vmatpush2.bf16.msra.mxu0 0
        %4376 = vmatprep.subr.bf16.mxu0 0
        %4377 = vmatpush2.bf16.msra.mxu0 0
        %4378 = vmatprep.subr.bf16.mxu0 0
        %4379 = vmatpush2.bf16.msra.mxu0 0
        %4380 = vmatprep.subr.bf16.mxu0 0
        %4381 = vmatpush2.bf16.msra.mxu0 %v4356
        %4382 = vmatprep.subr.bf16.mxu0 0
        %4383 = vmatpush2.bf16.msra.mxu0 %v4338
        %4384 = vmatprep.subr.bf16.mxu0 0
        %4385 = vmatpush2.bf16.msra.mxu0 %v4337
        %4386 = vmatprep.subr.bf16.mxu0 0
        %4387 = vmatpush2.bf16.msra.mxu0 %v4336
        %4388 = vmatprep.subr.bf16.mxu0 0
        %4389 = vmatpush2.bf16.msra.mxu0 %v4335
        %4390 = vmatprep.mubr.bf16.mxu0 %v4353
        %4391 = vmatmul.mubr.bf16.gmra.mxu0 %v4274
        %v4392 = vpop.f32.mrf.mxu0
        %v4393 = vadd.f32 %v4269, %v4392
        %v4394 = vpop.f32.mrf.mxu0
        %v4395 = vpop.f32.mrf.mxu0
        %v4396 = vpop.f32.mrf.mxu0
        %4397 = vdwg.mxu0
        %v4398 = vsub.f32 0.0, %v4393
        %v4399 = vmul.f32 %v4398, 1.442695
        %v4400 = vpow.pop %v4399
        %v4401 = vadd.f32 %v4400, 1.0
        %v4402 = vrcp.pop %v4401
        %v4403 = vmul.f32 1.0, %v4402
        %v4404 = vmul.f32 %v4393, %v4403
        %v4405 = vadd.f32 %v3422, %v4404
        %v4406 = vsel %vm1824, %v4405, 0.0
        %4408 = vrot.lane.b32.xlu0 %v4406, 127
        %v4409 = vpop.permute.xlu0 %4408
        %v4411 = vmax.f32 %v4406, %v4409
        %4413 = vrot.lane.b32.xlu0 %v4411, 120
        %v4414 = vpop.permute.xlu0 %4413
        %v4416 = vmax.f32 %v4411, %v4414
        %v4417 = vld [vmem:[%s15] sm:$0xff]
        %v4418 = vld [vmem:[%s15 + $0x8] sm:$0xff]
        %v4419 = vld [vmem:[%s15 + $0x10] sm:$0xff]
        %v4420 = vld [vmem:[%s15 + $0x18] sm:$0xff]
        %v4421 = vld [vmem:[%s15 + $0x20] sm:$0xff]
        %v4422 = vld [vmem:[%s15 + $0x28] sm:$0xff]
        %v4423 = vld [vmem:[%s15 + $0x30] sm:$0xff]
        %v4424 = vld [vmem:[%s15 + $0x38] sm:$0xff]
        %v4426 = vsel %vm1824, %v4416, 0
        %4428 = vmatprep.subr.mxu0 0.0
        %4429 = vmatpush1.msra.mxu0 0.0
        %4430 = vmatprep.subr.mxu0 0.0
        %4431 = vmatpush1.msra.mxu0 0.0
        %4432 = vmatprep.subr.mxu0 0.0
        %4433 = vmatpush1.msra.mxu0 0.0
        %4434 = vmatprep.subr.mxu0 0.0
        %4435 = vmatpush1.msra.mxu0 0.0
        %4436 = vmatprep.subr.mxu0 0.0
        %4437 = vmatpush1.msra.mxu0 0.0
        %4438 = vmatprep.subr.mxu0 0.0
        %4439 = vmatpush1.msra.mxu0 0.0
        %4440 = vmatprep.subr.mxu0 0.0
        %4441 = vmatpush1.msra.mxu0 0.0
        %4442 = vmatprep.subr.mxu0 0.0
        %4443 = vmatpush1.msra.mxu0 0.0
        %4444 = vmatprep.subr.mxu0 0.0
        %4445 = vmatpush1.msra.mxu0 %v4424
        %4446 = vmatprep.subr.mxu0 0.0
        %4447 = vmatpush1.msra.mxu0 %v4423
        %4448 = vmatprep.subr.mxu0 0.0
        %4449 = vmatpush1.msra.mxu0 %v4422
        %4450 = vmatprep.subr.mxu0 0.0
        %4451 = vmatpush1.msra.mxu0 %v4421
        %4452 = vmatprep.subr.mxu0 0.0
        %4453 = vmatpush1.msra.mxu0 %v4420
        %4454 = vmatprep.subr.mxu0 0.0
        %4455 = vmatpush1.msra.mxu0 %v4419
        %4456 = vmatprep.subr.mxu0 0.0
        %4457 = vmatpush1.msra.mxu0 %v4418
        %4458 = vmatprep.subr.mxu0 0.0
        %4459 = vmatpush1.msra.mxu0 %v4417
        %4460 = vmatprep.subr.mxu0 0.0
        %4461 = vmatpush2.msra.mxu0 0.0
        %4462 = vmatprep.subr.mxu0 0.0
        %4463 = vmatpush2.msra.mxu0 0.0
        %4464 = vmatprep.subr.mxu0 0.0
        %4465 = vmatpush2.msra.mxu0 0.0
        %4466 = vmatprep.subr.mxu0 0.0
        %4467 = vmatpush2.msra.mxu0 0.0
        %4468 = vmatprep.subr.mxu0 0.0
        %4469 = vmatpush2.msra.mxu0 0.0
        %4470 = vmatprep.subr.mxu0 0.0
        %4471 = vmatpush2.msra.mxu0 0.0
        %4472 = vmatprep.subr.mxu0 0.0
        %4473 = vmatpush2.msra.mxu0 0.0
        %4474 = vmatprep.subr.mxu0 0.0
        %4475 = vmatpush2.msra.mxu0 0.0
        %4476 = vmatprep.subr.mxu0 0.0
        %4477 = vmatpush2.msra.mxu0 0.0
        %4478 = vmatprep.subr.mxu0 0.0
        %4479 = vmatpush2.msra.mxu0 0.0
        %4480 = vmatprep.subr.mxu0 0.0
        %4481 = vmatpush2.msra.mxu0 0.0
        %4482 = vmatprep.subr.mxu0 0.0
        %4483 = vmatpush2.msra.mxu0 0.0
        %4484 = vmatprep.subr.mxu0 0.0
        %4485 = vmatpush2.msra.mxu0 0.0
        %4486 = vmatprep.subr.mxu0 0.0
        %4487 = vmatpush2.msra.mxu0 0.0
        %4488 = vmatprep.subr.mxu0 0.0
        %4489 = vmatpush2.msra.mxu0 0.0
        %4490 = vmatprep.subr.mxu0 0.0
        %4491 = vmatpush2.msra.mxu0 0.0
        %4492 = vmatprep.mubr.f32.mxu0 0.0
        %4493 = vmatmul.mubr.f32.gmra.mxu0 %v4426
        %v4494 = vpop.f32.mrf.mxu0
        %v4495 = vadd.f32 0.0, %v4494
        %v4496 = vpop.f32.mrf.mxu0
        %4497 = vdwg.mxu0
        %v4499 = vrot.slane %v4495, 1
        %4500 = vrot.lane.b32.xlu0 %v4499, 16
        %v4501 = vpop.permute.xlu0 %4500
        %v4503 = vrot.slane %v4495, 2
        %4504 = vrot.lane.b32.xlu0 %v4503, 32
        %v4505 = vpop.permute.xlu0 %4504
        %v4507 = vrot.slane %v4495, 3
        %4508 = vrot.lane.b32.xlu0 %v4507, 48
        %v4509 = vpop.permute.xlu0 %4508
        %v4511 = vrot.slane %v4495, 4
        %4512 = vrot.lane.b32.xlu0 %v4511, 64
        %v4513 = vpop.permute.xlu0 %4512
        %v4515 = vrot.slane %v4495, 5
        %4516 = vrot.lane.b32.xlu0 %v4515, 80
        %v4517 = vpop.permute.xlu0 %4516
        %v4519 = vrot.slane %v4495, 6
        %4520 = vrot.lane.b32.xlu0 %v4519, 96
        %v4521 = vpop.permute.xlu0 %4520
        %v4523 = vrot.slane %v4495, 7
        %4524 = vrot.lane.b32.xlu0 %v4523, 112
        %v4525 = vpop.permute.xlu0 %4524
        %v4527 = vsel %vm789, %v4495, %v4501
        %v4528 = vsel %vm890, %v4527, %v4505
        %v4529 = vsel %vm1654, %v4528, %v4509
        %v4530 = vsel %vm1824, %v4529, %v4513
        %vm4531 = vcmask 654336
        %v4532 = vsel %vm4531, %v4530, %v4517
        %vm4533 = vcmask 785408
        %v4534 = vsel %vm4533, %v4532, %v4521
        %v4535 = vsel %vm3316, %v4534, %v4525
        %v4536 = vpack.c.bf16 %v4535, %v4535
        %v4537 = vld [vmem:[%s16] sm:$0xf]
        %v4538 = vld [vmem:[%s16 + $0x4] sm:$0xf]
        %v4539 = vld [vmem:[%s16 + $0x8] sm:$0xf]
        %v4540 = vld [vmem:[%s16 + $0xc] sm:$0xf]
        %v4541 = vld [vmem:[%s16 + $0x10] sm:$0xf]
        %v4542 = vld [vmem:[%s16 + $0x14] sm:$0xf]
        %v4543 = vld [vmem:[%s16 + $0x18] sm:$0xf]
        %v4544 = vld [vmem:[%s16 + $0x1c] sm:$0xf]
        %v4545 = vld [vmem:[%s16 + $0x20] sm:$0xf]
        %v4546 = vld [vmem:[%s16 + $0x24] sm:$0xf]
        %v4547 = vld [vmem:[%s16 + $0x28] sm:$0xf]
        %v4548 = vld [vmem:[%s16 + $0x2c] sm:$0xf]
        %v4549 = vld [vmem:[%s16 + $0x30] sm:$0xf]
        %v4550 = vld [vmem:[%s16 + $0x34] sm:$0xf]
        %v4551 = vld [vmem:[%s16 + $0x38] sm:$0xf]
        %v4552 = vld [vmem:[%s16 + $0x3c] sm:$0xf]
        %v4553 = vld [vmem:[%s17] sm:$0x1]
        %v4570 = vunpack.c.l.b16 %v4537
        %v4571 = vunpack.c.l.b16 %v4538
        %v4572 = vunpack.c.l.b16 %v4539
        %v4573 = vunpack.c.l.b16 %v4540
        %v4574 = vunpack.c.l.b16 %v4541
        %v4575 = vunpack.c.l.b16 %v4542
        %v4576 = vunpack.c.l.b16 %v4543
        %v4577 = vunpack.c.l.b16 %v4544
        %v4578 = vunpack.c.l.b16 %v4545
        %v4579 = vunpack.c.l.b16 %v4546
        %v4580 = vunpack.c.l.b16 %v4547
        %v4581 = vunpack.c.l.b16 %v4548
        %v4582 = vunpack.c.l.b16 %v4549
        %v4583 = vunpack.c.l.b16 %v4550
        %v4584 = vunpack.c.l.b16 %v4551
        %v4585 = vunpack.c.l.b16 %v4552
        %v4586 = vpack.c.b16 %v4571, %v4570
        %v4587 = vpack.c.b16 %v4573, %v4572
        %v4588 = vpack.c.b16 %v4575, %v4574
        %v4589 = vpack.c.b16 %v4577, %v4576
        %v4590 = vpack.c.b16 %v4579, %v4578
        %v4591 = vpack.c.b16 %v4581, %v4580
        %v4592 = vpack.c.b16 %v4583, %v4582
        %v4593 = vpack.c.b16 %v4585, %v4584
        %4602 = vmatprep.subr.bf16.mxu0 0
        %4603 = vmatpush1.bf16.msra.mxu0 %v4593
        %4604 = vmatprep.subr.bf16.mxu0 0
        %4605 = vmatpush1.bf16.msra.mxu0 %v4592
        %4606 = vmatprep.subr.bf16.mxu0 0
        %4607 = vmatpush1.bf16.msra.mxu0 %v4591
        %4608 = vmatprep.subr.bf16.mxu0 0
        %4609 = vmatpush1.bf16.msra.mxu0 %v4590
        %4610 = vmatprep.subr.bf16.mxu0 0
        %4611 = vmatpush1.bf16.msra.mxu0 %v4589
        %4612 = vmatprep.subr.bf16.mxu0 0
        %4613 = vmatpush1.bf16.msra.mxu0 %v4588
        %4614 = vmatprep.subr.bf16.mxu0 0
        %4615 = vmatpush1.bf16.msra.mxu0 %v4587
        %4616 = vmatprep.subr.bf16.mxu0 0
        %4617 = vmatpush1.bf16.msra.mxu0 %v4586
        %4618 = vmatprep.subr.bf16.mxu0 0
        %4619 = vmatpush2.bf16.msra.mxu0 0
        %4620 = vmatprep.subr.bf16.mxu0 0
        %4621 = vmatpush2.bf16.msra.mxu0 0
        %4622 = vmatprep.subr.bf16.mxu0 0
        %4623 = vmatpush2.bf16.msra.mxu0 0
        %4624 = vmatprep.subr.bf16.mxu0 0
        %4625 = vmatpush2.bf16.msra.mxu0 0
        %4626 = vmatprep.subr.bf16.mxu0 0
        %4627 = vmatpush2.bf16.msra.mxu0 0
        %4628 = vmatprep.subr.bf16.mxu0 0
        %4629 = vmatpush2.bf16.msra.mxu0 0
        %4630 = vmatprep.subr.bf16.mxu0 0
        %4631 = vmatpush2.bf16.msra.mxu0 0
        %4632 = vmatprep.subr.bf16.mxu0 0
        %4633 = vmatpush2.bf16.msra.mxu0 0
        %4634 = vmatprep.mubr.bf16.mxu0 0
        %4635 = vmatmul.mubr.bf16.gmra.mxu0 %v4536
        %v4636 = vpop.f32.mrf.mxu0
        %v4637 = vadd.f32 %v4553, %v4636
        %v4638 = vpop.f32.mrf.mxu0
        %v4639 = vpop.f32.mrf.mxu0
        %v4640 = vpop.f32.mrf.mxu0
        %4641 = vdwg.mxu0
        %v4642 = vsub.f32 0.0, %v4637
        %v4643 = vmul.f32 %v4642, 1.442695
        %v4644 = vpow.pop %v4643
        %v4645 = vadd.f32 %v4644, 1.0
        %v4646 = vrcp.pop %v4645
        %v4647 = vmul.f32 1.0, %v4646
        %v4648 = vmul.f32 %v4637, %v4647
        %v4649 = vpack.c.bf16 %v4648, %v4648
        %v4650 = vld [vmem:[%s18] sm:$0xf]
        %v4651 = vld [vmem:[%s18 + $0x4] sm:$0xf]
        %v4652 = vld [vmem:[%s18 + $0x8] sm:$0xf]
        %v4653 = vld [vmem:[%s18 + $0xc] sm:$0xf]
        %v4654 = vld [vmem:[%s18 + $0x10] sm:$0xf]
        %v4655 = vld [vmem:[%s18 + $0x14] sm:$0xf]
        %v4656 = vld [vmem:[%s18 + $0x18] sm:$0xf]
        %v4657 = vld [vmem:[%s18 + $0x1c] sm:$0xf]
        %v4658 = vld [vmem:[%s19] sm:$0x1]
        %v4667 = vunpack.c.l.b16 %v4650
        %v4668 = vunpack.c.l.b16 %v4651
        %v4669 = vunpack.c.l.b16 %v4652
        %v4670 = vunpack.c.l.b16 %v4653
        %v4671 = vunpack.c.l.b16 %v4654
        %v4672 = vunpack.c.l.b16 %v4655
        %v4673 = vunpack.c.l.b16 %v4656
        %v4674 = vunpack.c.l.b16 %v4657
        %v4675 = vpack.c.b16 %v4668, %v4667
        %v4676 = vpack.c.b16 %v4670, %v4669
        %v4677 = vpack.c.b16 %v4672, %v4671
        %v4678 = vpack.c.b16 %v4674, %v4673
        %v4684 = vsel %vm1824, %v4649, 0
        %4686 = vmatprep.subr.bf16.mxu0 0
        %4687 = vmatpush1.bf16.msra.mxu0 0
        %4688 = vmatprep.subr.bf16.mxu0 0
        %4689 = vmatpush1.bf16.msra.mxu0 0
        %4690 = vmatprep.subr.bf16.mxu0 0
        %4691 = vmatpush1.bf16.msra.mxu0 0
        %4692 = vmatprep.subr.bf16.mxu0 0
        %4693 = vmatpush1.bf16.msra.mxu0 0
        %4694 = vmatprep.subr.bf16.mxu0 0
        %4695 = vmatpush1.bf16.msra.mxu0 %v4678
        %4696 = vmatprep.subr.bf16.mxu0 0
        %4697 = vmatpush1.bf16.msra.mxu0 %v4677
        %4698 = vmatprep.subr.bf16.mxu0 0
        %4699 = vmatpush1.bf16.msra.mxu0 %v4676
        %4700 = vmatprep.subr.bf16.mxu0 0
        %4701 = vmatpush1.bf16.msra.mxu0 %v4675
        %4702 = vmatprep.subr.bf16.mxu0 0
        %4703 = vmatpush2.bf16.msra.mxu0 0
        %4704 = vmatprep.subr.bf16.mxu0 0
        %4705 = vmatpush2.bf16.msra.mxu0 0
        %4706 = vmatprep.subr.bf16.mxu0 0
        %4707 = vmatpush2.bf16.msra.mxu0 0
        %4708 = vmatprep.subr.bf16.mxu0 0
        %4709 = vmatpush2.bf16.msra.mxu0 0
        %4710 = vmatprep.subr.bf16.mxu0 0
        %4711 = vmatpush2.bf16.msra.mxu0 0
        %4712 = vmatprep.subr.bf16.mxu0 0
        %4713 = vmatpush2.bf16.msra.mxu0 0
        %4714 = vmatprep.subr.bf16.mxu0 0
        %4715 = vmatpush2.bf16.msra.mxu0 0
        %4716 = vmatprep.subr.bf16.mxu0 0
        %4717 = vmatpush2.bf16.msra.mxu0 0
        %4718 = vmatprep.mubr.bf16.mxu0 0
        %4719 = vmatmul.mubr.bf16.gmra.mxu0 %v4684
        %v4720 = vpop.f32.mrf.mxu0
        %v4721 = vadd.f32 %v4658, %v4720
        %v4722 = vpop.f32.mrf.mxu0
        %v4723 = vpop.f32.mrf.mxu0
        %v4724 = vpop.f32.mrf.mxu0
        %4725 = vdwg.mxu0
        %v4726 = vsub.f32 0.0, %v4721
        %v4727 = vmul.f32 %v4726, 1.442695
        %v4728 = vpow.pop %v4727
        %v4729 = vadd.f32 %v4728, 1.0
        %v4730 = vrcp.pop %v4729
        %v4731 = vmul.f32 1.0, %v4730
        %v4732 = vmul.f32 %v4721, %v4731
        %vm4733 = vcmask 253952
        %4734 = vst.msk [vmem:[%s621] sm:$0x1] %vm4733, %v4732
        %s4735 = sand.u32 %s467, 1
        %s4736 = scalar_lea.sflag [#allocation4], %s4735
        %s4737 = sand.u32 %s467, 1
        %s4738 = scalar_lea.vmem [#allocation3], %s4737
        // Predicated region
        $region101: #{cnn_features_forward.1} parent=99 // pred_check
          %p4739 = pneg %p477
        $region102: #{cnn_features_forward.1} parent=99 // pred_check_branch
          %4741 = sbr.rel (%p4739) target = $region104
        $region103: #{cnn_features_forward.1} parent=99 // pred_region
          %s4743 = ssub.s32 16, 16
          %4744 = vsyncadd %s4736, %s4743
          %s4745 = smul.addr %s34, 16
          %s4746 = scalar_lea.hbm %s20, %s4745
          %s4748 = sshll.u32 %s4738, 4
          %s4749 = int_to_ptr.vmem [resolvable:$true] %s4748
          %4751 = dma.vmem_to_hbm [thread:$0]  %s4749, 16, %s4746, %s4736
        $region104: #{cnn_features_forward.1} parent=99 // pred_fallthru
          _
      $region100: #{cnn_features_forward.1} parent=5 // pred_fallthru
        _
      %p4752 = scmp.le.s32.totalorder 2, %s29
      // Predicated region
      $region105: #{cnn_features_forward.1} parent=5 // pred_check
        %p4753 = pneg %p4752
      $region106: #{cnn_features_forward.1} parent=5 // pred_check_branch
        %4755 = sbr.rel (%p4753) target = $region108
      $region107: #{cnn_features_forward.1} parent=5 // pred_region
        %s4756 = ssub.s32 %s29, 2
        // Predicated region
        $region109: #{cnn_features_forward.1} parent=107 // pred_check
          %p4757 = pneg %p483
        $region110: #{cnn_features_forward.1} parent=107 // pred_check_branch
          %4759 = sbr.rel (%p4757) target = $region112
        $region111: #{cnn_features_forward.1} parent=107 // pred_region
          %s4760 = sand.u32 %s468, 1
          %s4761 = scalar_lea.sflag [#allocation4], %s4760
          %s4762 = sand.u32 %s468, 1
          %s4763 = scalar_lea.vmem [#allocation3], %s4762
          %4764 = dma.done %s4761, 16
        $region112: #{cnn_features_forward.1} parent=107 // pred_fallthru
          _
      $region108: #{cnn_features_forward.1} parent=5 // pred_fallthru
        _
    $region6: #{cnn_features_forward.1} parent=1 // loop_footer
      %s33 = sadd.s32 1, %s29
    $region7: #{cnn_features_forward.1} parent=1 // loop_footer_branch
      %28 = sbr.rel target = $region3
    $region8: #{cnn_features_forward.1} parent=1 // loop_exit
      _
    %4765 = vsyncpa [#allocation4], 1
    %s4766 = scalar_lea.sflag [#allocation4], 1
    %4767 = vsyncpa %s4766, 1

</llo_original>
